<compile_context>
chip_gen: v6e
topology: v6e:2x2x1
jax: 0.10.0
libtpu: 0.0.40
codegen_flags: <defaults>
</compile_context>

<pallas_src>
import functools

import jax
import jax.numpy as jnp
from jax.experimental import pallas as pl
from jax.experimental.pallas import tpu as pltpu

EPS = 1e-5
NEG_SLOPE = 0.01
LANE = 128


def _round_up(n, m):
    return ((n + m - 1) // m) * m


def decoder_kernel(x_ref, w123_ref, vec_ref, w4_hbm_ref, o_ref,
                   w4_vmem, w4_sem, *, offs, widths, w_total):
    # Kick off the layer-4 weight transfer (largest input) so it overlaps
    # with layers 1-3 compute.
    w4_copy = pltpu.make_async_copy(w4_hbm_ref, w4_vmem, w4_sem)
    w4_copy.start()

    h = x_ref[...]                       # (B, H) f32, lane-padded
    inv_b = 1.0 / h.shape[0]

    for j in range(4):
        off, w = offs[j], widths[j]
        if j < 3:
            wt = w123_ref[:, off:off + w]        # static 128-aligned lane slice
        else:
            w4_copy.wait()                       # hide DMA behind layers 1-3
            wt = w4_vmem[...]

        # bias / gamma / beta: row-0 lane slices of the packed vector array.
        b_row = vec_ref[:, off:off + w]
        g_row = vec_ref[:, w_total + off:w_total + off + w]
        be_row = vec_ref[:, 2 * w_total + off:2 * w_total + off + w]

        # Linear (f32 MXU, matches nn.Linear) + LeakyReLU(0.01).
        h = jnp.dot(h, wt, preferred_element_type=jnp.float32,
                    precision=jax.lax.Precision.HIGHEST) + b_row
        h = jnp.maximum(h, NEG_SLOPE * h)

        # BatchNorm1d, training mode (biased batch variance), one-pass stats.
        s1 = jnp.sum(h, axis=0, keepdims=True)
        s2 = jnp.sum(h * h, axis=0, keepdims=True)
        mean = s1 * inv_b
        var = jnp.maximum(s2 * inv_b - mean * mean, 0.0)
        scale = g_row * jax.lax.rsqrt(var + EPS)
        h = (h - mean) * scale + be_row

    o_ref[...] = h


def init_params(key, latent_dim, n_hidden, output_size):
    """Deterministic synthetic init (PyTorch-default-like).
    Returns 4 tuples (W[in,out] f32, b[out], gamma[out], beta[out])."""
    dims = [latent_dim, n_hidden // 4, n_hidden // 2, n_hidden, output_size]
    params = []
    for i in range(4):
        fan_in, fan_out = dims[i], dims[i + 1]
        key, kw, kb = jax.random.split(key, 3)
        bound = 1.0 / (float(fan_in) ** 0.5)
        w = jax.random.uniform(kw, (fan_in, fan_out), jnp.float32, -bound, bound)
        b = jax.random.uniform(kb, (fan_out,), jnp.float32, -bound, bound)
        gamma = jnp.ones((fan_out,), jnp.float32)
        beta = jnp.zeros((fan_out,), jnp.float32)
        params.append((w, b, gamma, beta))
    return params


def prepare_decoder_params(params):
    """ONE-TIME padding / packing of the Decoder parameters for the kernel.

    Returns ((w123, w4, vec), meta):
      w123: (H, 3H) f32   layers 1-3 weights, concatenated along lanes
      w4:   (H, O)  f32   layer-4 weight (stays in HBM, DMA'd in-kernel)
      vec:  (1, 3*(3H+O)) f32  lane-packed [bias | gamma | beta] per layer
    """
    dims_in = [w.shape[0] for (w, _, _, _) in params]
    dims_out = [w.shape[1] for (w, _, _, _) in params]
    H = _round_up(max(dims_in), LANE)      # padded width of x / hidden activations
    O = _round_up(dims_out[-1], LANE)      # padded output width
    assert all(d <= H for d in dims_out[:-1]), "hidden widths must fit H"

    w_total = 3 * H + O
    offs = (0, H, 2 * H, 3 * H)
    widths = (H, H, H, O)

    w123 = jnp.zeros((H, 3 * H), jnp.float32)
    for j in range(3):
        w = params[j][0]
        w123 = w123.at[:w.shape[0], offs[j]:offs[j] + w.shape[1]].set(w)
    w4_raw = params[3][0]
    w4 = jnp.zeros((H, O), jnp.float32)
    w4 = w4.at[:w4_raw.shape[0], :w4_raw.shape[1]].set(w4_raw)

    vec = jnp.zeros((1, 3 * w_total), jnp.float32)
    for j in range(4):
        _, b, g, be = params[j]
        n = b.shape[0]
        vec = vec.at[0, offs[j]:offs[j] + n].set(b)
        vec = vec.at[0, w_total + offs[j]:w_total + offs[j] + n].set(g)
        vec = vec.at[0, 2 * w_total + offs[j]:2 * w_total + offs[j] + n].set(be)

    meta = dict(H=H, O=O, w_total=w_total, offs=offs, widths=widths,
                output_size=dims_out[-1])
    return (w123, w4, vec), meta


def make_decoder_forward(meta):
    """Builds a jitted forward. Per-call work is only: pad x, one pallas_call,
    slice the true output columns."""
    H, O = meta["H"], meta["O"]
    out_true = meta["output_size"]
    kernel = functools.partial(decoder_kernel, offs=meta["offs"],
                               widths=meta["widths"], w_total=meta["w_total"])
    vmem = pl.BlockSpec(memory_space=pltpu.MemorySpace.VMEM)

    @jax.jit
    def forward(x, w123, w4, vec):
        B, d_in = x.shape
        x_pad = jnp.pad(x, ((0, 0), (0, H - d_in)))
        out_pad = pl.pallas_call(
            kernel,
            out_shape=jax.ShapeDtypeStruct((B, O), jnp.float32),
            in_specs=[vmem, vmem, vmem,
                      pl.BlockSpec(memory_space=pl.ANY)],   # w4 stays in HBM
            out_specs=vmem,
            scratch_shapes=[pltpu.VMEM((H, O), jnp.float32),
                            pltpu.SemaphoreType.DMA(())],
        )(x_pad, w123, vec, w4)
        return out_pad[:, :out_true]

    return forward


def reference_forward(x, params):
    """Pure-JAX reference mirroring nn.Sequential train-mode semantics (f32)."""
    h = x
    for (w, b, g, be) in params:
        h = jnp.dot(h, w, preferred_element_type=jnp.float32,
                    precision=jax.lax.Precision.HIGHEST) + b[None, :]
        h = jnp.maximum(h, NEG_SLOPE * h)
        mean = jnp.mean(h, axis=0, keepdims=True)
        var = jnp.mean((h - mean) ** 2, axis=0, keepdims=True)
        h = (h - mean) * jax.lax.rsqrt(var + EPS) * g[None, :] + be[None, :]
    return h


if __name__ == "__main__":
    hparams = {"n_hidden": 128}
    latent_dim = 20
    output_size = 28 * 28
    batch = 8

    key = jax.random.PRNGKey(0)
    kx, kp = jax.random.split(key)
    x = jax.random.normal(kx, (batch, latent_dim), jnp.float32)
    params = init_params(kp, latent_dim, hparams["n_hidden"], output_size)

    # One-time packing -- NOT in the per-call path.
    (w123, w4, vec), meta = prepare_decoder_params(params)
    decoder_forward = make_decoder_forward(meta)

    out = decoder_forward(x, w123, w4, vec)
    out = jax.block_until_ready(out)
    assert out.shape == (batch, output_size)

    ref = reference_forward(x, params)
    max_err = float(jnp.max(jnp.abs(out - ref)))
    assert jnp.allclose(out, ref, atol=2e-3, rtol=2e-3), f"max abs err {max_err}"

    print("KERNEL_OK")
</pallas_src>

<mosaic_0001>
module attributes {stable_mosaic.version = 11 : i64} {
  func.func @decoder_kernel(%arg0: memref<8x128xf32, #tpu.memory_space<vmem>>, %arg1: memref<128x384xf32, #tpu.memory_space<vmem>>, %arg2: memref<1x3840xf32, #tpu.memory_space<vmem>>, %arg3: memref<128x896xf32, #tpu.memory_space<any>>, %arg4: memref<8x896xf32, #tpu.memory_space<vmem>>, %arg5: memref<128x896xf32, #tpu.memory_space<vmem>>, %arg6: memref<!tpu.dma_semaphore, #tpu.memory_space<semaphore_mem>>) attributes {dimension_semantics = [], scalar_prefetch = 0 : i64, scratch_operands = 2 : i64, tpu.core_type = #tpu.core_type<tc>} {
    tpu.enqueue_dma source(%arg3 : memref<128x896xf32, #tpu.memory_space<any>>) target(%arg5 : memref<128x896xf32, #tpu.memory_space<vmem>>) target_semaphore(%arg6 : memref<!tpu.dma_semaphore, #tpu.memory_space<semaphore_mem>>)
    %c0 = arith.constant 0 : index
    %c0_0 = arith.constant 0 : index
    %0 = vector.load %arg0[%c0, %c0_0] : memref<8x128xf32, #tpu.memory_space<vmem>>, vector<8x128xf32>
    %c0_1 = arith.constant 0 : index
    %c0_2 = arith.constant 0 : index
    %1 = vector.load %arg1[%c0_1, %c0_2] : memref<128x384xf32, #tpu.memory_space<vmem>>, vector<128x128xf32>
    %c0_3 = arith.constant 0 : index
    %c0_4 = arith.constant 0 : index
    %2 = vector.load %arg2[%c0_3, %c0_4] : memref<1x3840xf32, #tpu.memory_space<vmem>>, vector<1x128xf32>
    %c0_5 = arith.constant 0 : index
    %c1280 = arith.constant 1280 : index
    %3 = vector.load %arg2[%c0_5, %c1280] : memref<1x3840xf32, #tpu.memory_space<vmem>>, vector<1x128xf32>
    %c0_6 = arith.constant 0 : index
    %c2560 = arith.constant 2560 : index
    %4 = vector.load %arg2[%c0_6, %c2560] : memref<1x3840xf32, #tpu.memory_space<vmem>>, vector<1x128xf32>
    %cst = arith.constant dense<0.000000e+00> : vector<8x128xf32>
    %5 = tpu.matmul %0, %1, %cst {dimension_numbers = #tpu.dot_dimension_numbers<[1], [0], [0], [1], [0, 0, 1, 1], [], []>, precision = #tpu.contract_precision<fp32>} : vector<8x128xf32>, vector<128x128xf32>, vector<8x128xf32> -> vector<8x128xf32>
    %6 = vector.broadcast %2 : vector<1x128xf32> to vector<8x128xf32>
    %7 = arith.addf %5, %6 : vector<8x128xf32>
    %cst_7 = arith.constant 0.00999999977 : f32
    %8 = vector.broadcast %cst_7 : f32 to vector<8x128xf32>
    %9 = arith.mulf %8, %7 : vector<8x128xf32>
    %10 = arith.maximumf %7, %9 : vector<8x128xf32>
    %cst_8 = arith.constant dense<0.000000e+00> : vector<128xf32>
    %11 = vector.multi_reduction <add>, %10, %cst_8 [0] : vector<8x128xf32> to vector<128xf32>
    %12 = vector.shape_cast %11 : vector<128xf32> to vector<1x128xf32>
    %13 = arith.mulf %10, %10 : vector<8x128xf32>
    %cst_9 = arith.constant dense<0.000000e+00> : vector<128xf32>
    %14 = vector.multi_reduction <add>, %13, %cst_9 [0] : vector<8x128xf32> to vector<128xf32>
    %15 = vector.shape_cast %14 : vector<128xf32> to vector<1x128xf32>
    %cst_10 = arith.constant 1.250000e-01 : f32
    %16 = vector.broadcast %cst_10 : f32 to vector<1x128xf32>
    %17 = arith.mulf %12, %16 : vector<1x128xf32>
    %cst_11 = arith.constant 1.250000e-01 : f32
    %18 = vector.broadcast %cst_11 : f32 to vector<1x128xf32>
    %19 = arith.mulf %15, %18 : vector<1x128xf32>
    %20 = arith.mulf %17, %17 : vector<1x128xf32>
    %21 = arith.subf %19, %20 : vector<1x128xf32>
    %cst_12 = arith.constant 0.000000e+00 : f32
    %22 = vector.broadcast %cst_12 : f32 to vector<1x128xf32>
    %23 = arith.maximumf %21, %22 : vector<1x128xf32>
    %cst_13 = arith.constant 9.99999974E-6 : f32
    %24 = vector.broadcast %cst_13 : f32 to vector<1x128xf32>
    %25 = arith.addf %23, %24 : vector<1x128xf32>
    %26 = math.rsqrt %25 : vector<1x128xf32>
    %27 = arith.mulf %3, %26 : vector<1x128xf32>
    %28 = vector.broadcast %17 : vector<1x128xf32> to vector<8x128xf32>
    %29 = arith.subf %10, %28 : vector<8x128xf32>
    %30 = vector.broadcast %27 : vector<1x128xf32> to vector<8x128xf32>
    %31 = arith.mulf %29, %30 : vector<8x128xf32>
    %32 = vector.broadcast %4 : vector<1x128xf32> to vector<8x128xf32>
    %33 = arith.addf %31, %32 : vector<8x128xf32>
    %c0_14 = arith.constant 0 : index
    %c128 = arith.constant 128 : index
    %34 = vector.load %arg1[%c0_14, %c128] : memref<128x384xf32, #tpu.memory_space<vmem>>, vector<128x128xf32>
    %c0_15 = arith.constant 0 : index
    %c128_16 = arith.constant 128 : index
    %35 = vector.load %arg2[%c0_15, %c128_16] : memref<1x3840xf32, #tpu.memory_space<vmem>>, vector<1x128xf32>
    %c0_17 = arith.constant 0 : index
    %c1408 = arith.constant 1408 : index
    %36 = vector.load %arg2[%c0_17, %c1408] : memref<1x3840xf32, #tpu.memory_space<vmem>>, vector<1x128xf32>
    %c0_18 = arith.constant 0 : index
    %c2688 = arith.constant 2688 : index
    %37 = vector.load %arg2[%c0_18, %c2688] : memref<1x3840xf32, #tpu.memory_space<vmem>>, vector<1x128xf32>
    %cst_19 = arith.constant dense<0.000000e+00> : vector<8x128xf32>
    %38 = tpu.matmul %33, %34, %cst_19 {dimension_numbers = #tpu.dot_dimension_numbers<[1], [0], [0], [1], [0, 0, 1, 1], [], []>, precision = #tpu.contract_precision<fp32>} : vector<8x128xf32>, vector<128x128xf32>, vector<8x128xf32> -> vector<8x128xf32>
    %39 = vector.broadcast %35 : vector<1x128xf32> to vector<8x128xf32>
    %40 = arith.addf %38, %39 : vector<8x128xf32>
    %cst_20 = arith.constant 0.00999999977 : f32
    %41 = vector.broadcast %cst_20 : f32 to vector<8x128xf32>
    %42 = arith.mulf %41, %40 : vector<8x128xf32>
    %43 = arith.maximumf %40, %42 : vector<8x128xf32>
    %cst_21 = arith.constant dense<0.000000e+00> : vector<128xf32>
    %44 = vector.multi_reduction <add>, %43, %cst_21 [0] : vector<8x128xf32> to vector<128xf32>
    %45 = vector.shape_cast %44 : vector<128xf32> to vector<1x128xf32>
    %46 = arith.mulf %43, %43 : vector<8x128xf32>
    %cst_22 = arith.constant dense<0.000000e+00> : vector<128xf32>
    %47 = vector.multi_reduction <add>, %46, %cst_22 [0] : vector<8x128xf32> to vector<128xf32>
    %48 = vector.shape_cast %47 : vector<128xf32> to vector<1x128xf32>
    %cst_23 = arith.constant 1.250000e-01 : f32
    %49 = vector.broadcast %cst_23 : f32 to vector<1x128xf32>
    %50 = arith.mulf %45, %49 : vector<1x128xf32>
    %cst_24 = arith.constant 1.250000e-01 : f32
    %51 = vector.broadcast %cst_24 : f32 to vector<1x128xf32>
    %52 = arith.mulf %48, %51 : vector<1x128xf32>
    %53 = arith.mulf %50, %50 : vector<1x128xf32>
    %54 = arith.subf %52, %53 : vector<1x128xf32>
    %cst_25 = arith.constant 0.000000e+00 : f32
    %55 = vector.broadcast %cst_25 : f32 to vector<1x128xf32>
    %56 = arith.maximumf %54, %55 : vector<1x128xf32>
    %cst_26 = arith.constant 9.99999974E-6 : f32
    %57 = vector.broadcast %cst_26 : f32 to vector<1x128xf32>
    %58 = arith.addf %56, %57 : vector<1x128xf32>
    %59 = math.rsqrt %58 : vector<1x128xf32>
    %60 = arith.mulf %36, %59 : vector<1x128xf32>
    %61 = vector.broadcast %50 : vector<1x128xf32> to vector<8x128xf32>
    %62 = arith.subf %43, %61 : vector<8x128xf32>
    %63 = vector.broadcast %60 : vector<1x128xf32> to vector<8x128xf32>
    %64 = arith.mulf %62, %63 : vector<8x128xf32>
    %65 = vector.broadcast %37 : vector<1x128xf32> to vector<8x128xf32>
    %66 = arith.addf %64, %65 : vector<8x128xf32>
    %c0_27 = arith.constant 0 : index
    %c256 = arith.constant 256 : index
    %67 = vector.load %arg1[%c0_27, %c256] : memref<128x384xf32, #tpu.memory_space<vmem>>, vector<128x128xf32>
    %c0_28 = arith.constant 0 : index
    %c256_29 = arith.constant 256 : index
    %68 = vector.load %arg2[%c0_28, %c256_29] : memref<1x3840xf32, #tpu.memory_space<vmem>>, vector<1x128xf32>
    %c0_30 = arith.constant 0 : index
    %c1536 = arith.constant 1536 : index
    %69 = vector.load %arg2[%c0_30, %c1536] : memref<1x3840xf32, #tpu.memory_space<vmem>>, vector<1x128xf32>
    %c0_31 = arith.constant 0 : index
    %c2816 = arith.constant 2816 : index
    %70 = vector.load %arg2[%c0_31, %c2816] : memref<1x3840xf32, #tpu.memory_space<vmem>>, vector<1x128xf32>
    %cst_32 = arith.constant dense<0.000000e+00> : vector<8x128xf32>
    %71 = tpu.matmul %66, %67, %cst_32 {dimension_numbers = #tpu.dot_dimension_numbers<[1], [0], [0], [1], [0, 0, 1, 1], [], []>, precision = #tpu.contract_precision<fp32>} : vector<8x128xf32>, vector<128x128xf32>, vector<8x128xf32> -> vector<8x128xf32>
    %72 = vector.broadcast %68 : vector<1x128xf32> to vector<8x128xf32>
    %73 = arith.addf %71, %72 : vector<8x128xf32>
    %cst_33 = arith.constant 0.00999999977 : f32
    %74 = vector.broadcast %cst_33 : f32 to vector<8x128xf32>
    %75 = arith.mulf %74, %73 : vector<8x128xf32>
    %76 = arith.maximumf %73, %75 : vector<8x128xf32>
    %cst_34 = arith.constant dense<0.000000e+00> : vector<128xf32>
    %77 = vector.multi_reduction <add>, %76, %cst_34 [0] : vector<8x128xf32> to vector<128xf32>
    %78 = vector.shape_cast %77 : vector<128xf32> to vector<1x128xf32>
    %79 = arith.mulf %76, %76 : vector<8x128xf32>
    %cst_35 = arith.constant dense<0.000000e+00> : vector<128xf32>
    %80 = vector.multi_reduction <add>, %79, %cst_35 [0] : vector<8x128xf32> to vector<128xf32>
    %81 = vector.shape_cast %80 : vector<128xf32> to vector<1x128xf32>
    %cst_36 = arith.constant 1.250000e-01 : f32
    %82 = vector.broadcast %cst_36 : f32 to vector<1x128xf32>
    %83 = arith.mulf %78, %82 : vector<1x128xf32>
    %cst_37 = arith.constant 1.250000e-01 : f32
    %84 = vector.broadcast %cst_37 : f32 to vector<1x128xf32>
    %85 = arith.mulf %81, %84 : vector<1x128xf32>
    %86 = arith.mulf %83, %83 : vector<1x128xf32>
    %87 = arith.subf %85, %86 : vector<1x128xf32>
    %cst_38 = arith.constant 0.000000e+00 : f32
    %88 = vector.broadcast %cst_38 : f32 to vector<1x128xf32>
    %89 = arith.maximumf %87, %88 : vector<1x128xf32>
    %cst_39 = arith.constant 9.99999974E-6 : f32
    %90 = vector.broadcast %cst_39 : f32 to vector<1x128xf32>
    %91 = arith.addf %89, %90 : vector<1x128xf32>
    %92 = math.rsqrt %91 : vector<1x128xf32>
    %93 = arith.mulf %69, %92 : vector<1x128xf32>
    %94 = vector.broadcast %83 : vector<1x128xf32> to vector<8x128xf32>
    %95 = arith.subf %76, %94 : vector<8x128xf32>
    %96 = vector.broadcast %93 : vector<1x128xf32> to vector<8x128xf32>
    %97 = arith.mulf %95, %96 : vector<8x128xf32>
    %98 = vector.broadcast %70 : vector<1x128xf32> to vector<8x128xf32>
    %99 = arith.addf %97, %98 : vector<8x128xf32>
    tpu.wait_dma2 semaphore(%arg6 : memref<!tpu.dma_semaphore, #tpu.memory_space<semaphore_mem>>) src(%arg3 : memref<128x896xf32, #tpu.memory_space<any>>) dst(%arg5 : memref<128x896xf32, #tpu.memory_space<vmem>>)
    %c0_40 = arith.constant 0 : index
    %c0_41 = arith.constant 0 : index
    %100 = vector.load %arg5[%c0_40, %c0_41] : memref<128x896xf32, #tpu.memory_space<vmem>>, vector<128x896xf32>
    %c0_42 = arith.constant 0 : index
    %c384 = arith.constant 384 : index
    %101 = vector.load %arg2[%c0_42, %c384] : memref<1x3840xf32, #tpu.memory_space<vmem>>, vector<1x896xf32>
    %c0_43 = arith.constant 0 : index
    %c1664 = arith.constant 1664 : index
    %102 = vector.load %arg2[%c0_43, %c1664] : memref<1x3840xf32, #tpu.memory_space<vmem>>, vector<1x896xf32>
    %c0_44 = arith.constant 0 : index
    %c2944 = arith.constant 2944 : index
    %103 = vector.load %arg2[%c0_44, %c2944] : memref<1x3840xf32, #tpu.memory_space<vmem>>, vector<1x896xf32>
    %cst_45 = arith.constant dense<0.000000e+00> : vector<8x896xf32>
    %104 = tpu.matmul %99, %100, %cst_45 {dimension_numbers = #tpu.dot_dimension_numbers<[1], [0], [0], [1], [0, 0, 1, 1], [], []>, precision = #tpu.contract_precision<fp32>} : vector<8x128xf32>, vector<128x896xf32>, vector<8x896xf32> -> vector<8x896xf32>
    %105 = vector.broadcast %101 : vector<1x896xf32> to vector<8x896xf32>
    %106 = arith.addf %104, %105 : vector<8x896xf32>
    %cst_46 = arith.constant 0.00999999977 : f32
    %107 = vector.broadcast %cst_46 : f32 to vector<8x896xf32>
    %108 = arith.mulf %107, %106 : vector<8x896xf32>
    %109 = arith.maximumf %106, %108 : vector<8x896xf32>
    %cst_47 = arith.constant dense<0.000000e+00> : vector<896xf32>
    %110 = vector.multi_reduction <add>, %109, %cst_47 [0] : vector<8x896xf32> to vector<896xf32>
    %111 = vector.shape_cast %110 : vector<896xf32> to vector<1x896xf32>
    %112 = arith.mulf %109, %109 : vector<8x896xf32>
    %cst_48 = arith.constant dense<0.000000e+00> : vector<896xf32>
    %113 = vector.multi_reduction <add>, %112, %cst_48 [0] : vector<8x896xf32> to vector<896xf32>
    %114 = vector.shape_cast %113 : vector<896xf32> to vector<1x896xf32>
    %cst_49 = arith.constant 1.250000e-01 : f32
    %115 = vector.broadcast %cst_49 : f32 to vector<1x896xf32>
    %116 = arith.mulf %111, %115 : vector<1x896xf32>
    %cst_50 = arith.constant 1.250000e-01 : f32
    %117 = vector.broadcast %cst_50 : f32 to vector<1x896xf32>
    %118 = arith.mulf %114, %117 : vector<1x896xf32>
    %119 = arith.mulf %116, %116 : vector<1x896xf32>
    %120 = arith.subf %118, %119 : vector<1x896xf32>
    %cst_51 = arith.constant 0.000000e+00 : f32
    %121 = vector.broadcast %cst_51 : f32 to vector<1x896xf32>
    %122 = arith.maximumf %120, %121 : vector<1x896xf32>
    %cst_52 = arith.constant 9.99999974E-6 : f32
    %123 = vector.broadcast %cst_52 : f32 to vector<1x896xf32>
    %124 = arith.addf %122, %123 : vector<1x896xf32>
    %125 = math.rsqrt %124 : vector<1x896xf32>
    %126 = arith.mulf %102, %125 : vector<1x896xf32>
    %127 = vector.broadcast %116 : vector<1x896xf32> to vector<8x896xf32>
    %128 = arith.subf %109, %127 : vector<8x896xf32>
    %129 = vector.broadcast %126 : vector<1x896xf32> to vector<8x896xf32>
    %130 = arith.mulf %128, %129 : vector<8x896xf32>
    %131 = vector.broadcast %103 : vector<1x896xf32> to vector<8x896xf32>
    %132 = arith.addf %130, %131 : vector<8x896xf32>
    %c0_53 = arith.constant 0 : index
    %c0_54 = arith.constant 0 : index
    %133 = vector.load %arg4[%c0_53, %c0_54] : memref<8x896xf32, #tpu.memory_space<vmem>>, vector<8x896xf32>
    tpu.vector_store %arg4[%c0_53, %c0_54], %132 {strides = array<i32>} : memref<8x896xf32, #tpu.memory_space<vmem>>, vector<8x896xf32>,
    return
  }
}

</mosaic_0001>

<llo_original>
// kernel: forward.1
$region0: #{forward.1}
  #allocation0 [shape = 'u32[]', space=smem, size = 0x4, offset = 0x4, fixed_abs, tag = 'smem constant byte address 0x4 - core index']
  #allocation1 [shape = 'u32[144,128]{1,0:T(1,128)}', space=vmem, size = 0x12000, scoped, tag = 'internal scratch']
  #allocation2 [shape = 'f32[128,896]{1,0:T(8,128)}', space=vmem, size = 0x70000, scoped, tag = 'scratch operand']
  #allocation3 [shape = 's32[1]{0}', space=sflag, size = 0x4, scoped, tag = 'scratch operand']
  #allocation10 [shape = 's32[]', space=sflag, size = 0x4, offset = 0, fixed_abs, tag = 'sflag constant byte address 0x0 - dummy sync flag']
  #allocation11 [shape = 's32[]', space=sflag, size = 0x4, offset = 0, fixed_abs, tag = 'sflag constant byte address 0x0 - dummy sync flag']
  #allocation12 [shape = 'u32[]', space=smem, size = 0x4, offset = 0x44, fixed_abs, tag = 'smem constant byte address 0x44 - assertion arg 0']
  #allocation13 [shape = 'u32[]', space=smem, size = 0x4, offset = 0x48, fixed_abs, tag = 'smem constant byte address 0x48 - assertion arg 1']
  %s0 = inlined_call_operand.vmem [shape: f32[8,128], index: 0, kind: input, shape index: {}]
  %s1 = inlined_call_operand.hbm [shape: f32[128,384], index: 1, kind: input, shape index: {}]
  %s2 = inlined_call_operand.hbm [shape: f32[1,3840], index: 2, kind: input, shape index: {}]
  %s3 = inlined_call_operand.hbm [shape: f32[128,896], index: 3, kind: input, shape index: {}]
  %s4 = inlined_call_operand.hbm [shape: f32[8,896], index: 4, kind: output, shape index: {}]
  %s5 = sld [smem:[#allocation0]]
  $region34: #{forward.1} parent=0
    _
  %s7 = ssub.s32 1, %s5
  %s8 = scalar_select 0, %s7, %s5
  $region1: #{forward.1} parent=0
    #allocation4 [shape = 'u8[196608]{0}', space=vmem, size = 0x30000, scoped, tag = 'input window, operand 1, single buffered']
    #allocation5 [shape = 's32[1]{0}', space=sflag, size = 0x4, scoped, tag = 'scoped memory for forward.1']
    #allocation6 [shape = 's32[1]{0}', space=sflag, size = 0x4, scoped, tag = 'scoped memory for forward.1']
    #allocation7 [shape = 'u8[15360]{0}', space=vmem, size = 0x3c00, scoped, tag = 'input window, operand 2, single buffered']
    #allocation8 [shape = 's32[1]{0}', space=sflag, size = 0x4, scoped, tag = 'scoped memory for forward.1']
    #allocation9 [shape = 'u8[28672]{0}', space=vmem, size = 0x7000, scoped, tag = 'output window, operand 0, single buffered']
    %9 = vsyncpa [#allocation5], 0
    %10 = vsyncpa [#allocation8], 0
    %11 = vsyncpa [#allocation6], 0
    // Predicated region
    $region2: #{forward.1} parent=1 // pred_check
      _
    $region3: #{forward.1} parent=1 // pred_check_branch
      %13 = sbr.rel (0) target = $region5
    $region4: #{forward.1} parent=1 // pred_region
      _
    $region5: #{forward.1} parent=1 // pred_fallthru
      _
    // Predicated region
    $region6: #{forward.1} parent=1 // pred_check
      _
    $region7: #{forward.1} parent=1 // pred_check_branch
      %15 = sbr.rel (0) target = $region9
    $region8: #{forward.1} parent=1 // pred_region
      %s17 = ssub.s32 6144, 6144
      %18 = vsyncadd [#allocation5], %s17
      %s19 = sshll.u32 [#allocation4], 4
      %s20 = int_to_ptr.vmem [resolvable:$true] %s19
      %25 = dma.hbm_to_vmem [thread:$0]  %s1, 6144, %s20, [#allocation5], 384, 384, 24
    $region9: #{forward.1} parent=1 // pred_fallthru
      _
    // Predicated region
    $region10: #{forward.1} parent=1 // pred_check
      _
    $region11: #{forward.1} parent=1 // pred_check_branch
      %27 = sbr.rel (0) target = $region13
    $region12: #{forward.1} parent=1 // pred_region
      %s29 = ssub.s32 480, 480
      %30 = vsyncadd [#allocation8], %s29
      %s32 = sshll.u32 [#allocation7], 4
      %s33 = int_to_ptr.vmem [resolvable:$true] %s32
      %35 = dma.hbm_to_vmem [thread:$0]  %s2, 480, %s33, [#allocation8]
    $region13: #{forward.1} parent=1 // pred_fallthru
      _
    // Predicated region
    $region14: #{forward.1} parent=1 // pred_check
      _
    $region15: #{forward.1} parent=1 // pred_check_branch
      %37 = sbr.rel (0) target = $region17
    $region16: #{forward.1} parent=1 // pred_region
      %38 = dma.done [#allocation5], 6144
    $region17: #{forward.1} parent=1 // pred_fallthru
      _
    // Predicated region
    $region18: #{forward.1} parent=1 // pred_check
      _
    $region19: #{forward.1} parent=1 // pred_check_branch
      %40 = sbr.rel (0) target = $region21
    $region20: #{forward.1} parent=1 // pred_region
      %41 = dma.done [#allocation8], 480
    $region21: #{forward.1} parent=1 // pred_fallthru
      _
    // Predicated region
    $region22: #{forward.1} parent=1 // pred_check
      _
    $region23: #{forward.1} parent=1 // pred_check_branch
      %43 = sbr.rel target = $region25
    $region24: #{forward.1} parent=1 // pred_region
      %44 = sst [smem:[#allocation12]] [#allocation11]
      %45 = sst [smem:[#allocation13]] [#allocation10]
    $region25: #{forward.1} parent=1 // pred_fallthru
      _
    %47 = shalt.err (0)
    %s49 = sshll.u32 [#allocation2], 4
    %s50 = int_to_ptr.vmem [resolvable:$true] %s49
    %52 = dma.hbm_to_vmem [thread:$0]  %s3, 14336, %s50, [#allocation3]
    %v53 = vld [vmem:[%s0] sm:$0xff]
    %v54 = vld [vmem:[#allocation4] sm:$0xff]
    %v55 = vld [vmem:[#allocation4 + $0x18] sm:$0xff]
    %v56 = vld [vmem:[#allocation4 + $0x30] sm:$0xff]
    %v57 = vld [vmem:[#allocation4 + $0x48] sm:$0xff]
    %v58 = vld [vmem:[#allocation4 + $0x60] sm:$0xff]
    %v59 = vld [vmem:[#allocation4 + $0x78] sm:$0xff]
    %v60 = vld [vmem:[#allocation4 + $0x90] sm:$0xff]
    %v61 = vld [vmem:[#allocation4 + $0xa8] sm:$0xff]
    %v62 = vld [vmem:[#allocation4 + $0xc0] sm:$0xff]
    %v63 = vld [vmem:[#allocation4 + $0xd8] sm:$0xff]
    %v64 = vld [vmem:[#allocation4 + $0xf0] sm:$0xff]
    %v65 = vld [vmem:[#allocation4 + $0x108] sm:$0xff]
    %v66 = vld [vmem:[#allocation4 + $0x120] sm:$0xff]
    %v67 = vld [vmem:[#allocation4 + $0x138] sm:$0xff]
    %v68 = vld [vmem:[#allocation4 + $0x150] sm:$0xff]
    %v69 = vld [vmem:[#allocation4 + $0x168] sm:$0xff]
    %v70 = vld [vmem:[#allocation7] sm:$0x1]
    %v71 = vld [vmem:[#allocation7 + $0xa] sm:$0x1]
    %v72 = vld [vmem:[#allocation7 + $0x14] sm:$0x1]
    %v74 = vlaneseq
    %v75 = vshrl.u32 %v74, 7
    %v76 = vsub.s32 0, %v75
    %v77 = vrot.slane %v70, %v76
    %79 = vmatprep.subr.mxu0 0.0
    %v80 = vand.u32 %v69, 4294901760
    %81 = vmatpush1.msra.mxu0 %v80
    %82 = vmatprep.subr.mxu0 0.0
    %v83 = vand.u32 %v68, 4294901760
    %84 = vmatpush1.msra.mxu0 %v83
    %85 = vmatprep.subr.mxu0 0.0
    %v86 = vand.u32 %v67, 4294901760
    %87 = vmatpush1.msra.mxu0 %v86
    %88 = vmatprep.subr.mxu0 0.0
    %v89 = vand.u32 %v66, 4294901760
    %90 = vmatpush1.msra.mxu0 %v89
    %91 = vmatprep.subr.mxu0 0.0
    %v92 = vand.u32 %v65, 4294901760
    %93 = vmatpush1.msra.mxu0 %v92
    %94 = vmatprep.subr.mxu0 0.0
    %v95 = vand.u32 %v64, 4294901760
    %96 = vmatpush1.msra.mxu0 %v95
    %97 = vmatprep.subr.mxu0 0.0
    %v98 = vand.u32 %v63, 4294901760
    %99 = vmatpush1.msra.mxu0 %v98
    %100 = vmatprep.subr.mxu0 0.0
    %v101 = vand.u32 %v62, 4294901760
    %102 = vmatpush1.msra.mxu0 %v101
    %103 = vmatprep.subr.mxu0 0.0
    %v104 = vand.u32 %v61, 4294901760
    %105 = vmatpush1.msra.mxu0 %v104
    %106 = vmatprep.subr.mxu0 0.0
    %v107 = vand.u32 %v60, 4294901760
    %108 = vmatpush1.msra.mxu0 %v107
    %109 = vmatprep.subr.mxu0 0.0
    %v110 = vand.u32 %v59, 4294901760
    %111 = vmatpush1.msra.mxu0 %v110
    %112 = vmatprep.subr.mxu0 0.0
    %v113 = vand.u32 %v58, 4294901760
    %114 = vmatpush1.msra.mxu0 %v113
    %115 = vmatprep.subr.mxu0 0.0
    %v116 = vand.u32 %v57, 4294901760
    %117 = vmatpush1.msra.mxu0 %v116
    %118 = vmatprep.subr.mxu0 0.0
    %v119 = vand.u32 %v56, 4294901760
    %120 = vmatpush1.msra.mxu0 %v119
    %121 = vmatprep.subr.mxu0 0.0
    %v122 = vand.u32 %v55, 4294901760
    %123 = vmatpush1.msra.mxu0 %v122
    %124 = vmatprep.subr.mxu0 0.0
    %v125 = vand.u32 %v54, 4294901760
    %126 = vmatpush1.msra.mxu0 %v125
    %127 = vmatprep.subr.mxu0 0.0
    %128 = vmatpush2.msra.mxu0 0.0
    %129 = vmatprep.subr.mxu0 0.0
    %130 = vmatpush2.msra.mxu0 0.0
    %131 = vmatprep.subr.mxu0 0.0
    %132 = vmatpush2.msra.mxu0 0.0
    %133 = vmatprep.subr.mxu0 0.0
    %134 = vmatpush2.msra.mxu0 0.0
    %135 = vmatprep.subr.mxu0 0.0
    %136 = vmatpush2.msra.mxu0 0.0
    %137 = vmatprep.subr.mxu0 0.0
    %138 = vmatpush2.msra.mxu0 0.0
    %139 = vmatprep.subr.mxu0 0.0
    %140 = vmatpush2.msra.mxu0 0.0
    %141 = vmatprep.subr.mxu0 0.0
    %142 = vmatpush2.msra.mxu0 0.0
    %143 = vmatprep.subr.mxu0 0.0
    %144 = vmatpush2.msra.mxu0 0.0
    %145 = vmatprep.subr.mxu0 0.0
    %146 = vmatpush2.msra.mxu0 0.0
    %147 = vmatprep.subr.mxu0 0.0
    %148 = vmatpush2.msra.mxu0 0.0
    %149 = vmatprep.subr.mxu0 0.0
    %150 = vmatpush2.msra.mxu0 0.0
    %151 = vmatprep.subr.mxu0 0.0
    %152 = vmatpush2.msra.mxu0 0.0
    %153 = vmatprep.subr.mxu0 0.0
    %154 = vmatpush2.msra.mxu0 0.0
    %155 = vmatprep.subr.mxu0 0.0
    %156 = vmatpush2.msra.mxu0 0.0
    %157 = vmatprep.subr.mxu0 0.0
    %158 = vmatpush2.msra.mxu0 0.0
    %159 = vmatprep.mubr.f32.mxu0 0.0
    %v160 = vand.u32 %v53, 4294901760
    %v161 = vsub.f32 %v53, %v160
    %v162 = vand.u32 %v161, 4294901760
    %v163 = vsub.f32 %v161, %v162
    %v164 = vand.u32 %v163, 4294901760
    %165 = vmatmul.mubr.f32.gmra.mxu0 %v164
    %v166 = vpop.f32.mrf.mxu0
    %v167 = vadd.f32 %v77, %v166
    %v168 = vpop.f32.mrf.mxu0
    %169 = vdwg.mxu0
    %170 = vmatprep.subr.mxu0 0.0
    %v171 = vand.u32 %v69, 4294901760
    %v172 = vsub.f32 %v69, %v171
    %v173 = vand.u32 %v172, 4294901760
    %v174 = vsub.f32 %v172, %v173
    %v175 = vand.u32 %v174, 4294901760
    %176 = vmatpush1.msra.mxu0 %v175
    %177 = vmatprep.subr.mxu0 0.0
    %v178 = vand.u32 %v68, 4294901760
    %v179 = vsub.f32 %v68, %v178
    %v180 = vand.u32 %v179, 4294901760
    %v181 = vsub.f32 %v179, %v180
    %v182 = vand.u32 %v181, 4294901760
    %183 = vmatpush1.msra.mxu0 %v182
    %184 = vmatprep.subr.mxu0 0.0
    %v185 = vand.u32 %v67, 4294901760
    %v186 = vsub.f32 %v67, %v185
    %v187 = vand.u32 %v186, 4294901760
    %v188 = vsub.f32 %v186, %v187
    %v189 = vand.u32 %v188, 4294901760
    %190 = vmatpush1.msra.mxu0 %v189
    %191 = vmatprep.subr.mxu0 0.0
    %v192 = vand.u32 %v66, 4294901760
    %v193 = vsub.f32 %v66, %v192
    %v194 = vand.u32 %v193, 4294901760
    %v195 = vsub.f32 %v193, %v194
    %v196 = vand.u32 %v195, 4294901760
    %197 = vmatpush1.msra.mxu0 %v196
    %198 = vmatprep.subr.mxu0 0.0
    %v199 = vand.u32 %v65, 4294901760
    %v200 = vsub.f32 %v65, %v199
    %v201 = vand.u32 %v200, 4294901760
    %v202 = vsub.f32 %v200, %v201
    %v203 = vand.u32 %v202, 4294901760
    %204 = vmatpush1.msra.mxu0 %v203
    %205 = vmatprep.subr.mxu0 0.0
    %v206 = vand.u32 %v64, 4294901760
    %v207 = vsub.f32 %v64, %v206
    %v208 = vand.u32 %v207, 4294901760
    %v209 = vsub.f32 %v207, %v208
    %v210 = vand.u32 %v209, 4294901760
    %211 = vmatpush1.msra.mxu0 %v210
    %212 = vmatprep.subr.mxu0 0.0
    %v213 = vand.u32 %v63, 4294901760
    %v214 = vsub.f32 %v63, %v213
    %v215 = vand.u32 %v214, 4294901760
    %v216 = vsub.f32 %v214, %v215
    %v217 = vand.u32 %v216, 4294901760
    %218 = vmatpush1.msra.mxu0 %v217
    %219 = vmatprep.subr.mxu0 0.0
    %v220 = vand.u32 %v62, 4294901760
    %v221 = vsub.f32 %v62, %v220
    %v222 = vand.u32 %v221, 4294901760
    %v223 = vsub.f32 %v221, %v222
    %v224 = vand.u32 %v223, 4294901760
    %225 = vmatpush1.msra.mxu0 %v224
    %226 = vmatprep.subr.mxu0 0.0
    %v227 = vand.u32 %v61, 4294901760
    %v228 = vsub.f32 %v61, %v227
    %v229 = vand.u32 %v228, 4294901760
    %v230 = vsub.f32 %v228, %v229
    %v231 = vand.u32 %v230, 4294901760
    %232 = vmatpush1.msra.mxu0 %v231
    %233 = vmatprep.subr.mxu0 0.0
    %v234 = vand.u32 %v60, 4294901760
    %v235 = vsub.f32 %v60, %v234
    %v236 = vand.u32 %v235, 4294901760
    %v237 = vsub.f32 %v235, %v236
    %v238 = vand.u32 %v237, 4294901760
    %239 = vmatpush1.msra.mxu0 %v238
    %240 = vmatprep.subr.mxu0 0.0
    %v241 = vand.u32 %v59, 4294901760
    %v242 = vsub.f32 %v59, %v241
    %v243 = vand.u32 %v242, 4294901760
    %v244 = vsub.f32 %v242, %v243
    %v245 = vand.u32 %v244, 4294901760
    %246 = vmatpush1.msra.mxu0 %v245
    %247 = vmatprep.subr.mxu0 0.0
    %v248 = vand.u32 %v58, 4294901760
    %v249 = vsub.f32 %v58, %v248
    %v250 = vand.u32 %v249, 4294901760
    %v251 = vsub.f32 %v249, %v250
    %v252 = vand.u32 %v251, 4294901760
    %253 = vmatpush1.msra.mxu0 %v252
    %254 = vmatprep.subr.mxu0 0.0
    %v255 = vand.u32 %v57, 4294901760
    %v256 = vsub.f32 %v57, %v255
    %v257 = vand.u32 %v256, 4294901760
    %v258 = vsub.f32 %v256, %v257
    %v259 = vand.u32 %v258, 4294901760
    %260 = vmatpush1.msra.mxu0 %v259
    %261 = vmatprep.subr.mxu0 0.0
    %v262 = vand.u32 %v56, 4294901760
    %v263 = vsub.f32 %v56, %v262
    %v264 = vand.u32 %v263, 4294901760
    %v265 = vsub.f32 %v263, %v264
    %v266 = vand.u32 %v265, 4294901760
    %267 = vmatpush1.msra.mxu0 %v266
    %268 = vmatprep.subr.mxu0 0.0
    %v269 = vand.u32 %v55, 4294901760
    %v270 = vsub.f32 %v55, %v269
    %v271 = vand.u32 %v270, 4294901760
    %v272 = vsub.f32 %v270, %v271
    %v273 = vand.u32 %v272, 4294901760
    %274 = vmatpush1.msra.mxu0 %v273
    %275 = vmatprep.subr.mxu0 0.0
    %v276 = vand.u32 %v54, 4294901760
    %v277 = vsub.f32 %v54, %v276
    %v278 = vand.u32 %v277, 4294901760
    %v279 = vsub.f32 %v277, %v278
    %v280 = vand.u32 %v279, 4294901760
    %281 = vmatpush1.msra.mxu0 %v280
    %282 = vmatprep.subr.mxu0 0.0
    %283 = vmatpush2.msra.mxu0 0.0
    %284 = vmatprep.subr.mxu0 0.0
    %285 = vmatpush2.msra.mxu0 0.0
    %286 = vmatprep.subr.mxu0 0.0
    %287 = vmatpush2.msra.mxu0 0.0
    %288 = vmatprep.subr.mxu0 0.0
    %289 = vmatpush2.msra.mxu0 0.0
    %290 = vmatprep.subr.mxu0 0.0
    %291 = vmatpush2.msra.mxu0 0.0
    %292 = vmatprep.subr.mxu0 0.0
    %293 = vmatpush2.msra.mxu0 0.0
    %294 = vmatprep.subr.mxu0 0.0
    %295 = vmatpush2.msra.mxu0 0.0
    %296 = vmatprep.subr.mxu0 0.0
    %297 = vmatpush2.msra.mxu0 0.0
    %298 = vmatprep.subr.mxu0 0.0
    %299 = vmatpush2.msra.mxu0 0.0
    %300 = vmatprep.subr.mxu0 0.0
    %301 = vmatpush2.msra.mxu0 0.0
    %302 = vmatprep.subr.mxu0 0.0
    %303 = vmatpush2.msra.mxu0 0.0
    %304 = vmatprep.subr.mxu0 0.0
    %305 = vmatpush2.msra.mxu0 0.0
    %306 = vmatprep.subr.mxu0 0.0
    %307 = vmatpush2.msra.mxu0 0.0
    %308 = vmatprep.subr.mxu0 0.0
    %309 = vmatpush2.msra.mxu0 0.0
    %310 = vmatprep.subr.mxu0 0.0
    %311 = vmatpush2.msra.mxu0 0.0
    %312 = vmatprep.subr.mxu0 0.0
    %313 = vmatpush2.msra.mxu0 0.0
    %314 = vmatprep.mubr.f32.mxu0 0.0
    %v315 = vand.u32 %v53, 4294901760
    %316 = vmatmul.mubr.f32.gmra.mxu0 %v315
    %v317 = vpop.f32.mrf.mxu0
    %v318 = vadd.f32 %v167, %v317
    %v319 = vpop.f32.mrf.mxu0
    %320 = vdwg.mxu0
    %321 = vmatprep.subr.mxu0 0.0
    %v322 = vand.u32 %v69, 4294901760
    %v323 = vsub.f32 %v69, %v322
    %324 = vmatpush1.msra.mxu0 %v323
    %325 = vmatprep.subr.mxu0 0.0
    %v326 = vand.u32 %v68, 4294901760
    %v327 = vsub.f32 %v68, %v326
    %328 = vmatpush1.msra.mxu0 %v327
    %329 = vmatprep.subr.mxu0 0.0
    %v330 = vand.u32 %v67, 4294901760
    %v331 = vsub.f32 %v67, %v330
    %332 = vmatpush1.msra.mxu0 %v331
    %333 = vmatprep.subr.mxu0 0.0
    %v334 = vand.u32 %v66, 4294901760
    %v335 = vsub.f32 %v66, %v334
    %336 = vmatpush1.msra.mxu0 %v335
    %337 = vmatprep.subr.mxu0 0.0
    %v338 = vand.u32 %v65, 4294901760
    %v339 = vsub.f32 %v65, %v338
    %340 = vmatpush1.msra.mxu0 %v339
    %341 = vmatprep.subr.mxu0 0.0
    %v342 = vand.u32 %v64, 4294901760
    %v343 = vsub.f32 %v64, %v342
    %344 = vmatpush1.msra.mxu0 %v343
    %345 = vmatprep.subr.mxu0 0.0
    %v346 = vand.u32 %v63, 4294901760
    %v347 = vsub.f32 %v63, %v346
    %348 = vmatpush1.msra.mxu0 %v347
    %349 = vmatprep.subr.mxu0 0.0
    %v350 = vand.u32 %v62, 4294901760
    %v351 = vsub.f32 %v62, %v350
    %352 = vmatpush1.msra.mxu0 %v351
    %353 = vmatprep.subr.mxu0 0.0
    %v354 = vand.u32 %v61, 4294901760
    %v355 = vsub.f32 %v61, %v354
    %356 = vmatpush1.msra.mxu0 %v355
    %357 = vmatprep.subr.mxu0 0.0
    %v358 = vand.u32 %v60, 4294901760
    %v359 = vsub.f32 %v60, %v358
    %360 = vmatpush1.msra.mxu0 %v359
    %361 = vmatprep.subr.mxu0 0.0
    %v362 = vand.u32 %v59, 4294901760
    %v363 = vsub.f32 %v59, %v362
    %364 = vmatpush1.msra.mxu0 %v363
    %365 = vmatprep.subr.mxu0 0.0
    %v366 = vand.u32 %v58, 4294901760
    %v367 = vsub.f32 %v58, %v366
    %368 = vmatpush1.msra.mxu0 %v367
    %369 = vmatprep.subr.mxu0 0.0
    %v370 = vand.u32 %v57, 4294901760
    %v371 = vsub.f32 %v57, %v370
    %372 = vmatpush1.msra.mxu0 %v371
    %373 = vmatprep.subr.mxu0 0.0
    %v374 = vand.u32 %v56, 4294901760
    %v375 = vsub.f32 %v56, %v374
    %376 = vmatpush1.msra.mxu0 %v375
    %377 = vmatprep.subr.mxu0 0.0
    %v378 = vand.u32 %v55, 4294901760
    %v379 = vsub.f32 %v55, %v378
    %380 = vmatpush1.msra.mxu0 %v379
    %381 = vmatprep.subr.mxu0 0.0
    %v382 = vand.u32 %v54, 4294901760
    %v383 = vsub.f32 %v54, %v382
    %384 = vmatpush1.msra.mxu0 %v383
    %385 = vmatprep.subr.mxu0 0.0
    %386 = vmatpush2.msra.mxu0 0.0
    %387 = vmatprep.subr.mxu0 0.0
    %388 = vmatpush2.msra.mxu0 0.0
    %389 = vmatprep.subr.mxu0 0.0
    %390 = vmatpush2.msra.mxu0 0.0
    %391 = vmatprep.subr.mxu0 0.0
    %392 = vmatpush2.msra.mxu0 0.0
    %393 = vmatprep.subr.mxu0 0.0
    %394 = vmatpush2.msra.mxu0 0.0
    %395 = vmatprep.subr.mxu0 0.0
    %396 = vmatpush2.msra.mxu0 0.0
    %397 = vmatprep.subr.mxu0 0.0
    %398 = vmatpush2.msra.mxu0 0.0
    %399 = vmatprep.subr.mxu0 0.0
    %400 = vmatpush2.msra.mxu0 0.0
    %401 = vmatprep.subr.mxu0 0.0
    %402 = vmatpush2.msra.mxu0 0.0
    %403 = vmatprep.subr.mxu0 0.0
    %404 = vmatpush2.msra.mxu0 0.0
    %405 = vmatprep.subr.mxu0 0.0
    %406 = vmatpush2.msra.mxu0 0.0
    %407 = vmatprep.subr.mxu0 0.0
    %408 = vmatpush2.msra.mxu0 0.0
    %409 = vmatprep.subr.mxu0 0.0
    %410 = vmatpush2.msra.mxu0 0.0
    %411 = vmatprep.subr.mxu0 0.0
    %412 = vmatpush2.msra.mxu0 0.0
    %413 = vmatprep.subr.mxu0 0.0
    %414 = vmatpush2.msra.mxu0 0.0
    %415 = vmatprep.subr.mxu0 0.0
    %416 = vmatpush2.msra.mxu0 0.0
    %417 = vmatprep.mubr.f32.mxu0 0.0
    %v418 = vand.u32 %v53, 4294901760
    %v419 = vsub.f32 %v53, %v418
    %420 = vmatmul.mubr.f32.gmra.mxu0 %v419
    %v421 = vpop.f32.mrf.mxu0
    %v422 = vadd.f32 %v318, %v421
    %v423 = vpop.f32.mrf.mxu0
    %424 = vdwg.mxu0
    %425 = vmatprep.subr.mxu0 0.0
    %v426 = vand.u32 %v69, 4294901760
    %427 = vmatpush1.msra.mxu0 %v426
    %428 = vmatprep.subr.mxu0 0.0
    %v429 = vand.u32 %v68, 4294901760
    %430 = vmatpush1.msra.mxu0 %v429
    %431 = vmatprep.subr.mxu0 0.0
    %v432 = vand.u32 %v67, 4294901760
    %433 = vmatpush1.msra.mxu0 %v432
    %434 = vmatprep.subr.mxu0 0.0
    %v435 = vand.u32 %v66, 4294901760
    %436 = vmatpush1.msra.mxu0 %v435
    %437 = vmatprep.subr.mxu0 0.0
    %v438 = vand.u32 %v65, 4294901760
    %439 = vmatpush1.msra.mxu0 %v438
    %440 = vmatprep.subr.mxu0 0.0
    %v441 = vand.u32 %v64, 4294901760
    %442 = vmatpush1.msra.mxu0 %v441
    %443 = vmatprep.subr.mxu0 0.0
    %v444 = vand.u32 %v63, 4294901760
    %445 = vmatpush1.msra.mxu0 %v444
    %446 = vmatprep.subr.mxu0 0.0
    %v447 = vand.u32 %v62, 4294901760
    %448 = vmatpush1.msra.mxu0 %v447
    %449 = vmatprep.subr.mxu0 0.0
    %v450 = vand.u32 %v61, 4294901760
    %451 = vmatpush1.msra.mxu0 %v450
    %452 = vmatprep.subr.mxu0 0.0
    %v453 = vand.u32 %v60, 4294901760
    %454 = vmatpush1.msra.mxu0 %v453
    %455 = vmatprep.subr.mxu0 0.0
    %v456 = vand.u32 %v59, 4294901760
    %457 = vmatpush1.msra.mxu0 %v456
    %458 = vmatprep.subr.mxu0 0.0
    %v459 = vand.u32 %v58, 4294901760
    %460 = vmatpush1.msra.mxu0 %v459
    %461 = vmatprep.subr.mxu0 0.0
    %v462 = vand.u32 %v57, 4294901760
    %463 = vmatpush1.msra.mxu0 %v462
    %464 = vmatprep.subr.mxu0 0.0
    %v465 = vand.u32 %v56, 4294901760
    %466 = vmatpush1.msra.mxu0 %v465
    %467 = vmatprep.subr.mxu0 0.0
    %v468 = vand.u32 %v55, 4294901760
    %469 = vmatpush1.msra.mxu0 %v468
    %470 = vmatprep.subr.mxu0 0.0
    %v471 = vand.u32 %v54, 4294901760
    %472 = vmatpush1.msra.mxu0 %v471
    %473 = vmatprep.subr.mxu0 0.0
    %474 = vmatpush2.msra.mxu0 0.0
    %475 = vmatprep.subr.mxu0 0.0
    %476 = vmatpush2.msra.mxu0 0.0
    %477 = vmatprep.subr.mxu0 0.0
    %478 = vmatpush2.msra.mxu0 0.0
    %479 = vmatprep.subr.mxu0 0.0
    %480 = vmatpush2.msra.mxu0 0.0
    %481 = vmatprep.subr.mxu0 0.0
    %482 = vmatpush2.msra.mxu0 0.0
    %483 = vmatprep.subr.mxu0 0.0
    %484 = vmatpush2.msra.mxu0 0.0
    %485 = vmatprep.subr.mxu0 0.0
    %486 = vmatpush2.msra.mxu0 0.0
    %487 = vmatprep.subr.mxu0 0.0
    %488 = vmatpush2.msra.mxu0 0.0
    %489 = vmatprep.subr.mxu0 0.0
    %490 = vmatpush2.msra.mxu0 0.0
    %491 = vmatprep.subr.mxu0 0.0
    %492 = vmatpush2.msra.mxu0 0.0
    %493 = vmatprep.subr.mxu0 0.0
    %494 = vmatpush2.msra.mxu0 0.0
    %495 = vmatprep.subr.mxu0 0.0
    %496 = vmatpush2.msra.mxu0 0.0
    %497 = vmatprep.subr.mxu0 0.0
    %498 = vmatpush2.msra.mxu0 0.0
    %499 = vmatprep.subr.mxu0 0.0
    %500 = vmatpush2.msra.mxu0 0.0
    %501 = vmatprep.subr.mxu0 0.0
    %502 = vmatpush2.msra.mxu0 0.0
    %503 = vmatprep.subr.mxu0 0.0
    %504 = vmatpush2.msra.mxu0 0.0
    %505 = vmatprep.mubr.f32.mxu0 0.0
    %v506 = vand.u32 %v53, 4294901760
    %v507 = vsub.f32 %v53, %v506
    %v508 = vand.u32 %v507, 4294901760
    %509 = vmatmul.mubr.f32.gmra.mxu0 %v508
    %v510 = vpop.f32.mrf.mxu0
    %v511 = vadd.f32 %v422, %v510
    %v512 = vpop.f32.mrf.mxu0
    %513 = vdwg.mxu0
    %514 = vmatprep.subr.mxu0 0.0
    %v515 = vand.u32 %v69, 4294901760
    %v516 = vsub.f32 %v69, %v515
    %v517 = vand.u32 %v516, 4294901760
    %518 = vmatpush1.msra.mxu0 %v517
    %519 = vmatprep.subr.mxu0 0.0
    %v520 = vand.u32 %v68, 4294901760
    %v521 = vsub.f32 %v68, %v520
    %v522 = vand.u32 %v521, 4294901760
    %523 = vmatpush1.msra.mxu0 %v522
    %524 = vmatprep.subr.mxu0 0.0
    %v525 = vand.u32 %v67, 4294901760
    %v526 = vsub.f32 %v67, %v525
    %v527 = vand.u32 %v526, 4294901760
    %528 = vmatpush1.msra.mxu0 %v527
    %529 = vmatprep.subr.mxu0 0.0
    %v530 = vand.u32 %v66, 4294901760
    %v531 = vsub.f32 %v66, %v530
    %v532 = vand.u32 %v531, 4294901760
    %533 = vmatpush1.msra.mxu0 %v532
    %534 = vmatprep.subr.mxu0 0.0
    %v535 = vand.u32 %v65, 4294901760
    %v536 = vsub.f32 %v65, %v535
    %v537 = vand.u32 %v536, 4294901760
    %538 = vmatpush1.msra.mxu0 %v537
    %539 = vmatprep.subr.mxu0 0.0
    %v540 = vand.u32 %v64, 4294901760
    %v541 = vsub.f32 %v64, %v540
    %v542 = vand.u32 %v541, 4294901760
    %543 = vmatpush1.msra.mxu0 %v542
    %544 = vmatprep.subr.mxu0 0.0
    %v545 = vand.u32 %v63, 4294901760
    %v546 = vsub.f32 %v63, %v545
    %v547 = vand.u32 %v546, 4294901760
    %548 = vmatpush1.msra.mxu0 %v547
    %549 = vmatprep.subr.mxu0 0.0
    %v550 = vand.u32 %v62, 4294901760
    %v551 = vsub.f32 %v62, %v550
    %v552 = vand.u32 %v551, 4294901760
    %553 = vmatpush1.msra.mxu0 %v552
    %554 = vmatprep.subr.mxu0 0.0
    %v555 = vand.u32 %v61, 4294901760
    %v556 = vsub.f32 %v61, %v555
    %v557 = vand.u32 %v556, 4294901760
    %558 = vmatpush1.msra.mxu0 %v557
    %559 = vmatprep.subr.mxu0 0.0
    %v560 = vand.u32 %v60, 4294901760
    %v561 = vsub.f32 %v60, %v560
    %v562 = vand.u32 %v561, 4294901760
    %563 = vmatpush1.msra.mxu0 %v562
    %564 = vmatprep.subr.mxu0 0.0
    %v565 = vand.u32 %v59, 4294901760
    %v566 = vsub.f32 %v59, %v565
    %v567 = vand.u32 %v566, 4294901760
    %568 = vmatpush1.msra.mxu0 %v567
    %569 = vmatprep.subr.mxu0 0.0
    %v570 = vand.u32 %v58, 4294901760
    %v571 = vsub.f32 %v58, %v570
    %v572 = vand.u32 %v571, 4294901760
    %573 = vmatpush1.msra.mxu0 %v572
    %574 = vmatprep.subr.mxu0 0.0
    %v575 = vand.u32 %v57, 4294901760
    %v576 = vsub.f32 %v57, %v575
    %v577 = vand.u32 %v576, 4294901760
    %578 = vmatpush1.msra.mxu0 %v577
    %579 = vmatprep.subr.mxu0 0.0
    %v580 = vand.u32 %v56, 4294901760
    %v581 = vsub.f32 %v56, %v580
    %v582 = vand.u32 %v581, 4294901760
    %583 = vmatpush1.msra.mxu0 %v582
    %584 = vmatprep.subr.mxu0 0.0
    %v585 = vand.u32 %v55, 4294901760
    %v586 = vsub.f32 %v55, %v585
    %v587 = vand.u32 %v586, 4294901760
    %588 = vmatpush1.msra.mxu0 %v587
    %589 = vmatprep.subr.mxu0 0.0
    %v590 = vand.u32 %v54, 4294901760
    %v591 = vsub.f32 %v54, %v590
    %v592 = vand.u32 %v591, 4294901760
    %593 = vmatpush1.msra.mxu0 %v592
    %594 = vmatprep.subr.mxu0 0.0
    %595 = vmatpush2.msra.mxu0 0.0
    %596 = vmatprep.subr.mxu0 0.0
    %597 = vmatpush2.msra.mxu0 0.0
    %598 = vmatprep.subr.mxu0 0.0
    %599 = vmatpush2.msra.mxu0 0.0
    %600 = vmatprep.subr.mxu0 0.0
    %601 = vmatpush2.msra.mxu0 0.0
    %602 = vmatprep.subr.mxu0 0.0
    %603 = vmatpush2.msra.mxu0 0.0
    %604 = vmatprep.subr.mxu0 0.0
    %605 = vmatpush2.msra.mxu0 0.0
    %606 = vmatprep.subr.mxu0 0.0
    %607 = vmatpush2.msra.mxu0 0.0
    %608 = vmatprep.subr.mxu0 0.0
    %609 = vmatpush2.msra.mxu0 0.0
    %610 = vmatprep.subr.mxu0 0.0
    %611 = vmatpush2.msra.mxu0 0.0
    %612 = vmatprep.subr.mxu0 0.0
    %613 = vmatpush2.msra.mxu0 0.0
    %614 = vmatprep.subr.mxu0 0.0
    %615 = vmatpush2.msra.mxu0 0.0
    %616 = vmatprep.subr.mxu0 0.0
    %617 = vmatpush2.msra.mxu0 0.0
    %618 = vmatprep.subr.mxu0 0.0
    %619 = vmatpush2.msra.mxu0 0.0
    %620 = vmatprep.subr.mxu0 0.0
    %621 = vmatpush2.msra.mxu0 0.0
    %622 = vmatprep.subr.mxu0 0.0
    %623 = vmatpush2.msra.mxu0 0.0
    %624 = vmatprep.subr.mxu0 0.0
    %625 = vmatpush2.msra.mxu0 0.0
    %626 = vmatprep.mubr.f32.mxu0 0.0
    %v627 = vand.u32 %v53, 4294901760
    %628 = vmatmul.mubr.f32.gmra.mxu0 %v627
    %v629 = vpop.f32.mrf.mxu0
    %v630 = vadd.f32 %v511, %v629
    %v631 = vpop.f32.mrf.mxu0
    %632 = vdwg.mxu0
    %633 = vmatprep.subr.mxu0 0.0
    %v634 = vand.u32 %v69, 4294901760
    %635 = vmatpush1.msra.mxu0 %v634
    %636 = vmatprep.subr.mxu0 0.0
    %v637 = vand.u32 %v68, 4294901760
    %638 = vmatpush1.msra.mxu0 %v637
    %639 = vmatprep.subr.mxu0 0.0
    %v640 = vand.u32 %v67, 4294901760
    %641 = vmatpush1.msra.mxu0 %v640
    %642 = vmatprep.subr.mxu0 0.0
    %v643 = vand.u32 %v66, 4294901760
    %644 = vmatpush1.msra.mxu0 %v643
    %645 = vmatprep.subr.mxu0 0.0
    %v646 = vand.u32 %v65, 4294901760
    %647 = vmatpush1.msra.mxu0 %v646
    %648 = vmatprep.subr.mxu0 0.0
    %v649 = vand.u32 %v64, 4294901760
    %650 = vmatpush1.msra.mxu0 %v649
    %651 = vmatprep.subr.mxu0 0.0
    %v652 = vand.u32 %v63, 4294901760
    %653 = vmatpush1.msra.mxu0 %v652
    %654 = vmatprep.subr.mxu0 0.0
    %v655 = vand.u32 %v62, 4294901760
    %656 = vmatpush1.msra.mxu0 %v655
    %657 = vmatprep.subr.mxu0 0.0
    %v658 = vand.u32 %v61, 4294901760
    %659 = vmatpush1.msra.mxu0 %v658
    %660 = vmatprep.subr.mxu0 0.0
    %v661 = vand.u32 %v60, 4294901760
    %662 = vmatpush1.msra.mxu0 %v661
    %663 = vmatprep.subr.mxu0 0.0
    %v664 = vand.u32 %v59, 4294901760
    %665 = vmatpush1.msra.mxu0 %v664
    %666 = vmatprep.subr.mxu0 0.0
    %v667 = vand.u32 %v58, 4294901760
    %668 = vmatpush1.msra.mxu0 %v667
    %669 = vmatprep.subr.mxu0 0.0
    %v670 = vand.u32 %v57, 4294901760
    %671 = vmatpush1.msra.mxu0 %v670
    %672 = vmatprep.subr.mxu0 0.0
    %v673 = vand.u32 %v56, 4294901760
    %674 = vmatpush1.msra.mxu0 %v673
    %675 = vmatprep.subr.mxu0 0.0
    %v676 = vand.u32 %v55, 4294901760
    %677 = vmatpush1.msra.mxu0 %v676
    %678 = vmatprep.subr.mxu0 0.0
    %v679 = vand.u32 %v54, 4294901760
    %680 = vmatpush1.msra.mxu0 %v679
    %681 = vmatprep.subr.mxu0 0.0
    %682 = vmatpush2.msra.mxu0 0.0
    %683 = vmatprep.subr.mxu0 0.0
    %684 = vmatpush2.msra.mxu0 0.0
    %685 = vmatprep.subr.mxu0 0.0
    %686 = vmatpush2.msra.mxu0 0.0
    %687 = vmatprep.subr.mxu0 0.0
    %688 = vmatpush2.msra.mxu0 0.0
    %689 = vmatprep.subr.mxu0 0.0
    %690 = vmatpush2.msra.mxu0 0.0
    %691 = vmatprep.subr.mxu0 0.0
    %692 = vmatpush2.msra.mxu0 0.0
    %693 = vmatprep.subr.mxu0 0.0
    %694 = vmatpush2.msra.mxu0 0.0
    %695 = vmatprep.subr.mxu0 0.0
    %696 = vmatpush2.msra.mxu0 0.0
    %697 = vmatprep.subr.mxu0 0.0
    %698 = vmatpush2.msra.mxu0 0.0
    %699 = vmatprep.subr.mxu0 0.0
    %700 = vmatpush2.msra.mxu0 0.0
    %701 = vmatprep.subr.mxu0 0.0
    %702 = vmatpush2.msra.mxu0 0.0
    %703 = vmatprep.subr.mxu0 0.0
    %704 = vmatpush2.msra.mxu0 0.0
    %705 = vmatprep.subr.mxu0 0.0
    %706 = vmatpush2.msra.mxu0 0.0
    %707 = vmatprep.subr.mxu0 0.0
    %708 = vmatpush2.msra.mxu0 0.0
    %709 = vmatprep.subr.mxu0 0.0
    %710 = vmatpush2.msra.mxu0 0.0
    %711 = vmatprep.subr.mxu0 0.0
    %712 = vmatpush2.msra.mxu0 0.0
    %713 = vmatprep.mubr.f32.mxu0 0.0
    %v714 = vand.u32 %v53, 4294901760
    %715 = vmatmul.mubr.f32.gmra.mxu0 %v714
    %v716 = vpop.f32.mrf.mxu0
    %v717 = vadd.f32 %v630, %v716
    %v718 = vpop.f32.mrf.mxu0
    %719 = vdwg.mxu0
    %v720 = vmul.f32 %v717, 0.01
    %v721 = vmax.f32 %v717, %v720
    %v722 = vrot.slane %v721, 4
    %v723 = vadd.f32 %v721, %v722
    %v724 = vrot.slane %v723, 2
    %v725 = vadd.f32 %v723, %v724
    %v726 = vrot.slane %v725, 1
    %v727 = vadd.f32 %v725, %v726
    %v728 = vmul.f32 %v721, %v721
    %v729 = vrot.slane %v728, 4
    %v730 = vadd.f32 %v728, %v729
    %v731 = vrot.slane %v730, 2
    %v732 = vadd.f32 %v730, %v731
    %v733 = vrot.slane %v732, 1
    %v734 = vadd.f32 %v732, %v733
    %v735 = vmul.f32 %v727, 0.125
    %v736 = vmul.f32 %v734, 0.125
    %v737 = vmul.f32 %v735, %v735
    %v738 = vsub.f32 %v736, %v737
    %v739 = vmax.f32 %v738, 0.0
    %v740 = vadd.f32 %v739, 1e-05
    %v741 = vrsqrt.pop %v740
    %v742 = vmul.f32 %v71, %v741
    %v743 = vsub.f32 %v721, %v735
    %v745 = vlaneseq
    %v746 = vshrl.u32 %v745, 7
    %v747 = vsub.s32 0, %v746
    %v748 = vrot.slane %v742, %v747
    %v750 = vmul.f32 %v743, %v748
    %v752 = vlaneseq
    %v753 = vshrl.u32 %v752, 7
    %v754 = vsub.s32 0, %v753
    %v755 = vrot.slane %v72, %v754
    %v757 = vadd.f32 %v750, %v755
    %v758 = vld [vmem:[#allocation4 + $0x8] sm:$0xff]
    %v759 = vld [vmem:[#allocation4 + $0x20] sm:$0xff]
    %v760 = vld [vmem:[#allocation4 + $0x38] sm:$0xff]
    %v761 = vld [vmem:[#allocation4 + $0x50] sm:$0xff]
    %v762 = vld [vmem:[#allocation4 + $0x68] sm:$0xff]
    %v763 = vld [vmem:[#allocation4 + $0x80] sm:$0xff]
    %v764 = vld [vmem:[#allocation4 + $0x98] sm:$0xff]
    %v765 = vld [vmem:[#allocation4 + $0xb0] sm:$0xff]
    %v766 = vld [vmem:[#allocation4 + $0xc8] sm:$0xff]
    %v767 = vld [vmem:[#allocation4 + $0xe0] sm:$0xff]
    %v768 = vld [vmem:[#allocation4 + $0xf8] sm:$0xff]
    %v769 = vld [vmem:[#allocation4 + $0x110] sm:$0xff]
    %v770 = vld [vmem:[#allocation4 + $0x128] sm:$0xff]
    %v771 = vld [vmem:[#allocation4 + $0x140] sm:$0xff]
    %v772 = vld [vmem:[#allocation4 + $0x158] sm:$0xff]
    %v773 = vld [vmem:[#allocation4 + $0x170] sm:$0xff]
    %v774 = vld [vmem:[#allocation7 + $0x1] sm:$0x1]
    %v775 = vld [vmem:[#allocation7 + $0xb] sm:$0x1]
    %v776 = vld [vmem:[#allocation7 + $0x15] sm:$0x1]
    %v778 = vlaneseq
    %v779 = vshrl.u32 %v778, 7
    %v780 = vsub.s32 0, %v779
    %v781 = vrot.slane %v774, %v780
    %783 = vmatprep.subr.mxu0 0.0
    %v784 = vand.u32 %v773, 4294901760
    %785 = vmatpush1.msra.mxu0 %v784
    %786 = vmatprep.subr.mxu0 0.0
    %v787 = vand.u32 %v772, 4294901760
    %788 = vmatpush1.msra.mxu0 %v787
    %789 = vmatprep.subr.mxu0 0.0
    %v790 = vand.u32 %v771, 4294901760
    %791 = vmatpush1.msra.mxu0 %v790
    %792 = vmatprep.subr.mxu0 0.0
    %v793 = vand.u32 %v770, 4294901760
    %794 = vmatpush1.msra.mxu0 %v793
    %795 = vmatprep.subr.mxu0 0.0
    %v796 = vand.u32 %v769, 4294901760
    %797 = vmatpush1.msra.mxu0 %v796
    %798 = vmatprep.subr.mxu0 0.0
    %v799 = vand.u32 %v768, 4294901760
    %800 = vmatpush1.msra.mxu0 %v799
    %801 = vmatprep.subr.mxu0 0.0
    %v802 = vand.u32 %v767, 4294901760
    %803 = vmatpush1.msra.mxu0 %v802
    %804 = vmatprep.subr.mxu0 0.0
    %v805 = vand.u32 %v766, 4294901760
    %806 = vmatpush1.msra.mxu0 %v805
    %807 = vmatprep.subr.mxu0 0.0
    %v808 = vand.u32 %v765, 4294901760
    %809 = vmatpush1.msra.mxu0 %v808
    %810 = vmatprep.subr.mxu0 0.0
    %v811 = vand.u32 %v764, 4294901760
    %812 = vmatpush1.msra.mxu0 %v811
    %813 = vmatprep.subr.mxu0 0.0
    %v814 = vand.u32 %v763, 4294901760
    %815 = vmatpush1.msra.mxu0 %v814
    %816 = vmatprep.subr.mxu0 0.0
    %v817 = vand.u32 %v762, 4294901760
    %818 = vmatpush1.msra.mxu0 %v817
    %819 = vmatprep.subr.mxu0 0.0
    %v820 = vand.u32 %v761, 4294901760
    %821 = vmatpush1.msra.mxu0 %v820
    %822 = vmatprep.subr.mxu0 0.0
    %v823 = vand.u32 %v760, 4294901760
    %824 = vmatpush1.msra.mxu0 %v823
    %825 = vmatprep.subr.mxu0 0.0
    %v826 = vand.u32 %v759, 4294901760
    %827 = vmatpush1.msra.mxu0 %v826
    %828 = vmatprep.subr.mxu0 0.0
    %v829 = vand.u32 %v758, 4294901760
    %830 = vmatpush1.msra.mxu0 %v829
    %831 = vmatprep.subr.mxu0 0.0
    %832 = vmatpush2.msra.mxu0 0.0
    %833 = vmatprep.subr.mxu0 0.0
    %834 = vmatpush2.msra.mxu0 0.0
    %835 = vmatprep.subr.mxu0 0.0
    %836 = vmatpush2.msra.mxu0 0.0
    %837 = vmatprep.subr.mxu0 0.0
    %838 = vmatpush2.msra.mxu0 0.0
    %839 = vmatprep.subr.mxu0 0.0
    %840 = vmatpush2.msra.mxu0 0.0
    %841 = vmatprep.subr.mxu0 0.0
    %842 = vmatpush2.msra.mxu0 0.0
    %843 = vmatprep.subr.mxu0 0.0
    %844 = vmatpush2.msra.mxu0 0.0
    %845 = vmatprep.subr.mxu0 0.0
    %846 = vmatpush2.msra.mxu0 0.0
    %847 = vmatprep.subr.mxu0 0.0
    %848 = vmatpush2.msra.mxu0 0.0
    %849 = vmatprep.subr.mxu0 0.0
    %850 = vmatpush2.msra.mxu0 0.0
    %851 = vmatprep.subr.mxu0 0.0
    %852 = vmatpush2.msra.mxu0 0.0
    %853 = vmatprep.subr.mxu0 0.0
    %854 = vmatpush2.msra.mxu0 0.0
    %855 = vmatprep.subr.mxu0 0.0
    %856 = vmatpush2.msra.mxu0 0.0
    %857 = vmatprep.subr.mxu0 0.0
    %858 = vmatpush2.msra.mxu0 0.0
    %859 = vmatprep.subr.mxu0 0.0
    %860 = vmatpush2.msra.mxu0 0.0
    %861 = vmatprep.subr.mxu0 0.0
    %862 = vmatpush2.msra.mxu0 0.0
    %863 = vmatprep.mubr.f32.mxu0 0.0
    %v864 = vand.u32 %v757, 4294901760
    %v865 = vsub.f32 %v757, %v864
    %v866 = vand.u32 %v865, 4294901760
    %v867 = vsub.f32 %v865, %v866
    %v868 = vand.u32 %v867, 4294901760
    %869 = vmatmul.mubr.f32.gmra.mxu0 %v868
    %v870 = vpop.f32.mrf.mxu0
    %v871 = vadd.f32 %v781, %v870
    %v872 = vpop.f32.mrf.mxu0
    %873 = vdwg.mxu0
    %874 = vmatprep.subr.mxu0 0.0
    %v875 = vand.u32 %v773, 4294901760
    %v876 = vsub.f32 %v773, %v875
    %v877 = vand.u32 %v876, 4294901760
    %v878 = vsub.f32 %v876, %v877
    %v879 = vand.u32 %v878, 4294901760
    %880 = vmatpush1.msra.mxu0 %v879
    %881 = vmatprep.subr.mxu0 0.0
    %v882 = vand.u32 %v772, 4294901760
    %v883 = vsub.f32 %v772, %v882
    %v884 = vand.u32 %v883, 4294901760
    %v885 = vsub.f32 %v883, %v884
    %v886 = vand.u32 %v885, 4294901760
    %887 = vmatpush1.msra.mxu0 %v886
    %888 = vmatprep.subr.mxu0 0.0
    %v889 = vand.u32 %v771, 4294901760
    %v890 = vsub.f32 %v771, %v889
    %v891 = vand.u32 %v890, 4294901760
    %v892 = vsub.f32 %v890, %v891
    %v893 = vand.u32 %v892, 4294901760
    %894 = vmatpush1.msra.mxu0 %v893
    %895 = vmatprep.subr.mxu0 0.0
    %v896 = vand.u32 %v770, 4294901760
    %v897 = vsub.f32 %v770, %v896
    %v898 = vand.u32 %v897, 4294901760
    %v899 = vsub.f32 %v897, %v898
    %v900 = vand.u32 %v899, 4294901760
    %901 = vmatpush1.msra.mxu0 %v900
    %902 = vmatprep.subr.mxu0 0.0
    %v903 = vand.u32 %v769, 4294901760
    %v904 = vsub.f32 %v769, %v903
    %v905 = vand.u32 %v904, 4294901760
    %v906 = vsub.f32 %v904, %v905
    %v907 = vand.u32 %v906, 4294901760
    %908 = vmatpush1.msra.mxu0 %v907
    %909 = vmatprep.subr.mxu0 0.0
    %v910 = vand.u32 %v768, 4294901760
    %v911 = vsub.f32 %v768, %v910
    %v912 = vand.u32 %v911, 4294901760
    %v913 = vsub.f32 %v911, %v912
    %v914 = vand.u32 %v913, 4294901760
    %915 = vmatpush1.msra.mxu0 %v914
    %916 = vmatprep.subr.mxu0 0.0
    %v917 = vand.u32 %v767, 4294901760
    %v918 = vsub.f32 %v767, %v917
    %v919 = vand.u32 %v918, 4294901760
    %v920 = vsub.f32 %v918, %v919
    %v921 = vand.u32 %v920, 4294901760
    %922 = vmatpush1.msra.mxu0 %v921
    %923 = vmatprep.subr.mxu0 0.0
    %v924 = vand.u32 %v766, 4294901760
    %v925 = vsub.f32 %v766, %v924
    %v926 = vand.u32 %v925, 4294901760
    %v927 = vsub.f32 %v925, %v926
    %v928 = vand.u32 %v927, 4294901760
    %929 = vmatpush1.msra.mxu0 %v928
    %930 = vmatprep.subr.mxu0 0.0
    %v931 = vand.u32 %v765, 4294901760
    %v932 = vsub.f32 %v765, %v931
    %v933 = vand.u32 %v932, 4294901760
    %v934 = vsub.f32 %v932, %v933
    %v935 = vand.u32 %v934, 4294901760
    %936 = vmatpush1.msra.mxu0 %v935
    %937 = vmatprep.subr.mxu0 0.0
    %v938 = vand.u32 %v764, 4294901760
    %v939 = vsub.f32 %v764, %v938
    %v940 = vand.u32 %v939, 4294901760
    %v941 = vsub.f32 %v939, %v940
    %v942 = vand.u32 %v941, 4294901760
    %943 = vmatpush1.msra.mxu0 %v942
    %944 = vmatprep.subr.mxu0 0.0
    %v945 = vand.u32 %v763, 4294901760
    %v946 = vsub.f32 %v763, %v945
    %v947 = vand.u32 %v946, 4294901760
    %v948 = vsub.f32 %v946, %v947
    %v949 = vand.u32 %v948, 4294901760
    %950 = vmatpush1.msra.mxu0 %v949
    %951 = vmatprep.subr.mxu0 0.0
    %v952 = vand.u32 %v762, 4294901760
    %v953 = vsub.f32 %v762, %v952
    %v954 = vand.u32 %v953, 4294901760
    %v955 = vsub.f32 %v953, %v954
    %v956 = vand.u32 %v955, 4294901760
    %957 = vmatpush1.msra.mxu0 %v956
    %958 = vmatprep.subr.mxu0 0.0
    %v959 = vand.u32 %v761, 4294901760
    %v960 = vsub.f32 %v761, %v959
    %v961 = vand.u32 %v960, 4294901760
    %v962 = vsub.f32 %v960, %v961
    %v963 = vand.u32 %v962, 4294901760
    %964 = vmatpush1.msra.mxu0 %v963
    %965 = vmatprep.subr.mxu0 0.0
    %v966 = vand.u32 %v760, 4294901760
    %v967 = vsub.f32 %v760, %v966
    %v968 = vand.u32 %v967, 4294901760
    %v969 = vsub.f32 %v967, %v968
    %v970 = vand.u32 %v969, 4294901760
    %971 = vmatpush1.msra.mxu0 %v970
    %972 = vmatprep.subr.mxu0 0.0
    %v973 = vand.u32 %v759, 4294901760
    %v974 = vsub.f32 %v759, %v973
    %v975 = vand.u32 %v974, 4294901760
    %v976 = vsub.f32 %v974, %v975
    %v977 = vand.u32 %v976, 4294901760
    %978 = vmatpush1.msra.mxu0 %v977
    %979 = vmatprep.subr.mxu0 0.0
    %v980 = vand.u32 %v758, 4294901760
    %v981 = vsub.f32 %v758, %v980
    %v982 = vand.u32 %v981, 4294901760
    %v983 = vsub.f32 %v981, %v982
    %v984 = vand.u32 %v983, 4294901760
    %985 = vmatpush1.msra.mxu0 %v984
    %986 = vmatprep.subr.mxu0 0.0
    %987 = vmatpush2.msra.mxu0 0.0
    %988 = vmatprep.subr.mxu0 0.0
    %989 = vmatpush2.msra.mxu0 0.0
    %990 = vmatprep.subr.mxu0 0.0
    %991 = vmatpush2.msra.mxu0 0.0
    %992 = vmatprep.subr.mxu0 0.0
    %993 = vmatpush2.msra.mxu0 0.0
    %994 = vmatprep.subr.mxu0 0.0
    %995 = vmatpush2.msra.mxu0 0.0
    %996 = vmatprep.subr.mxu0 0.0
    %997 = vmatpush2.msra.mxu0 0.0
    %998 = vmatprep.subr.mxu0 0.0
    %999 = vmatpush2.msra.mxu0 0.0
    %1000 = vmatprep.subr.mxu0 0.0
    %1001 = vmatpush2.msra.mxu0 0.0
    %1002 = vmatprep.subr.mxu0 0.0
    %1003 = vmatpush2.msra.mxu0 0.0
    %1004 = vmatprep.subr.mxu0 0.0
    %1005 = vmatpush2.msra.mxu0 0.0
    %1006 = vmatprep.subr.mxu0 0.0
    %1007 = vmatpush2.msra.mxu0 0.0
    %1008 = vmatprep.subr.mxu0 0.0
    %1009 = vmatpush2.msra.mxu0 0.0
    %1010 = vmatprep.subr.mxu0 0.0
    %1011 = vmatpush2.msra.mxu0 0.0
    %1012 = vmatprep.subr.mxu0 0.0
    %1013 = vmatpush2.msra.mxu0 0.0
    %1014 = vmatprep.subr.mxu0 0.0
    %1015 = vmatpush2.msra.mxu0 0.0
    %1016 = vmatprep.subr.mxu0 0.0
    %1017 = vmatpush2.msra.mxu0 0.0
    %1018 = vmatprep.mubr.f32.mxu0 0.0
    %v1019 = vand.u32 %v757, 4294901760
    %1020 = vmatmul.mubr.f32.gmra.mxu0 %v1019
    %v1021 = vpop.f32.mrf.mxu0
    %v1022 = vadd.f32 %v871, %v1021
    %v1023 = vpop.f32.mrf.mxu0
    %1024 = vdwg.mxu0
    %1025 = vmatprep.subr.mxu0 0.0
    %v1026 = vand.u32 %v773, 4294901760
    %v1027 = vsub.f32 %v773, %v1026
    %1028 = vmatpush1.msra.mxu0 %v1027
    %1029 = vmatprep.subr.mxu0 0.0
    %v1030 = vand.u32 %v772, 4294901760
    %v1031 = vsub.f32 %v772, %v1030
    %1032 = vmatpush1.msra.mxu0 %v1031
    %1033 = vmatprep.subr.mxu0 0.0
    %v1034 = vand.u32 %v771, 4294901760
    %v1035 = vsub.f32 %v771, %v1034
    %1036 = vmatpush1.msra.mxu0 %v1035
    %1037 = vmatprep.subr.mxu0 0.0
    %v1038 = vand.u32 %v770, 4294901760
    %v1039 = vsub.f32 %v770, %v1038
    %1040 = vmatpush1.msra.mxu0 %v1039
    %1041 = vmatprep.subr.mxu0 0.0
    %v1042 = vand.u32 %v769, 4294901760
    %v1043 = vsub.f32 %v769, %v1042
    %1044 = vmatpush1.msra.mxu0 %v1043
    %1045 = vmatprep.subr.mxu0 0.0
    %v1046 = vand.u32 %v768, 4294901760
    %v1047 = vsub.f32 %v768, %v1046
    %1048 = vmatpush1.msra.mxu0 %v1047
    %1049 = vmatprep.subr.mxu0 0.0
    %v1050 = vand.u32 %v767, 4294901760
    %v1051 = vsub.f32 %v767, %v1050
    %1052 = vmatpush1.msra.mxu0 %v1051
    %1053 = vmatprep.subr.mxu0 0.0
    %v1054 = vand.u32 %v766, 4294901760
    %v1055 = vsub.f32 %v766, %v1054
    %1056 = vmatpush1.msra.mxu0 %v1055
    %1057 = vmatprep.subr.mxu0 0.0
    %v1058 = vand.u32 %v765, 4294901760
    %v1059 = vsub.f32 %v765, %v1058
    %1060 = vmatpush1.msra.mxu0 %v1059
    %1061 = vmatprep.subr.mxu0 0.0
    %v1062 = vand.u32 %v764, 4294901760
    %v1063 = vsub.f32 %v764, %v1062
    %1064 = vmatpush1.msra.mxu0 %v1063
    %1065 = vmatprep.subr.mxu0 0.0
    %v1066 = vand.u32 %v763, 4294901760
    %v1067 = vsub.f32 %v763, %v1066
    %1068 = vmatpush1.msra.mxu0 %v1067
    %1069 = vmatprep.subr.mxu0 0.0
    %v1070 = vand.u32 %v762, 4294901760
    %v1071 = vsub.f32 %v762, %v1070
    %1072 = vmatpush1.msra.mxu0 %v1071
    %1073 = vmatprep.subr.mxu0 0.0
    %v1074 = vand.u32 %v761, 4294901760
    %v1075 = vsub.f32 %v761, %v1074
    %1076 = vmatpush1.msra.mxu0 %v1075
    %1077 = vmatprep.subr.mxu0 0.0
    %v1078 = vand.u32 %v760, 4294901760
    %v1079 = vsub.f32 %v760, %v1078
    %1080 = vmatpush1.msra.mxu0 %v1079
    %1081 = vmatprep.subr.mxu0 0.0
    %v1082 = vand.u32 %v759, 4294901760
    %v1083 = vsub.f32 %v759, %v1082
    %1084 = vmatpush1.msra.mxu0 %v1083
    %1085 = vmatprep.subr.mxu0 0.0
    %v1086 = vand.u32 %v758, 4294901760
    %v1087 = vsub.f32 %v758, %v1086
    %1088 = vmatpush1.msra.mxu0 %v1087
    %1089 = vmatprep.subr.mxu0 0.0
    %1090 = vmatpush2.msra.mxu0 0.0
    %1091 = vmatprep.subr.mxu0 0.0
    %1092 = vmatpush2.msra.mxu0 0.0
    %1093 = vmatprep.subr.mxu0 0.0
    %1094 = vmatpush2.msra.mxu0 0.0
    %1095 = vmatprep.subr.mxu0 0.0
    %1096 = vmatpush2.msra.mxu0 0.0
    %1097 = vmatprep.subr.mxu0 0.0
    %1098 = vmatpush2.msra.mxu0 0.0
    %1099 = vmatprep.subr.mxu0 0.0
    %1100 = vmatpush2.msra.mxu0 0.0
    %1101 = vmatprep.subr.mxu0 0.0
    %1102 = vmatpush2.msra.mxu0 0.0
    %1103 = vmatprep.subr.mxu0 0.0
    %1104 = vmatpush2.msra.mxu0 0.0
    %1105 = vmatprep.subr.mxu0 0.0
    %1106 = vmatpush2.msra.mxu0 0.0
    %1107 = vmatprep.subr.mxu0 0.0
    %1108 = vmatpush2.msra.mxu0 0.0
    %1109 = vmatprep.subr.mxu0 0.0
    %1110 = vmatpush2.msra.mxu0 0.0
    %1111 = vmatprep.subr.mxu0 0.0
    %1112 = vmatpush2.msra.mxu0 0.0
    %1113 = vmatprep.subr.mxu0 0.0
    %1114 = vmatpush2.msra.mxu0 0.0
    %1115 = vmatprep.subr.mxu0 0.0
    %1116 = vmatpush2.msra.mxu0 0.0
    %1117 = vmatprep.subr.mxu0 0.0
    %1118 = vmatpush2.msra.mxu0 0.0
    %1119 = vmatprep.subr.mxu0 0.0
    %1120 = vmatpush2.msra.mxu0 0.0
    %1121 = vmatprep.mubr.f32.mxu0 0.0
    %v1122 = vand.u32 %v757, 4294901760
    %v1123 = vsub.f32 %v757, %v1122
    %1124 = vmatmul.mubr.f32.gmra.mxu0 %v1123
    %v1125 = vpop.f32.mrf.mxu0
    %v1126 = vadd.f32 %v1022, %v1125
    %v1127 = vpop.f32.mrf.mxu0
    %1128 = vdwg.mxu0
    %1129 = vmatprep.subr.mxu0 0.0
    %v1130 = vand.u32 %v773, 4294901760
    %1131 = vmatpush1.msra.mxu0 %v1130
    %1132 = vmatprep.subr.mxu0 0.0
    %v1133 = vand.u32 %v772, 4294901760
    %1134 = vmatpush1.msra.mxu0 %v1133
    %1135 = vmatprep.subr.mxu0 0.0
    %v1136 = vand.u32 %v771, 4294901760
    %1137 = vmatpush1.msra.mxu0 %v1136
    %1138 = vmatprep.subr.mxu0 0.0
    %v1139 = vand.u32 %v770, 4294901760
    %1140 = vmatpush1.msra.mxu0 %v1139
    %1141 = vmatprep.subr.mxu0 0.0
    %v1142 = vand.u32 %v769, 4294901760
    %1143 = vmatpush1.msra.mxu0 %v1142
    %1144 = vmatprep.subr.mxu0 0.0
    %v1145 = vand.u32 %v768, 4294901760
    %1146 = vmatpush1.msra.mxu0 %v1145
    %1147 = vmatprep.subr.mxu0 0.0
    %v1148 = vand.u32 %v767, 4294901760
    %1149 = vmatpush1.msra.mxu0 %v1148
    %1150 = vmatprep.subr.mxu0 0.0
    %v1151 = vand.u32 %v766, 4294901760
    %1152 = vmatpush1.msra.mxu0 %v1151
    %1153 = vmatprep.subr.mxu0 0.0
    %v1154 = vand.u32 %v765, 4294901760
    %1155 = vmatpush1.msra.mxu0 %v1154
    %1156 = vmatprep.subr.mxu0 0.0
    %v1157 = vand.u32 %v764, 4294901760
    %1158 = vmatpush1.msra.mxu0 %v1157
    %1159 = vmatprep.subr.mxu0 0.0
    %v1160 = vand.u32 %v763, 4294901760
    %1161 = vmatpush1.msra.mxu0 %v1160
    %1162 = vmatprep.subr.mxu0 0.0
    %v1163 = vand.u32 %v762, 4294901760
    %1164 = vmatpush1.msra.mxu0 %v1163
    %1165 = vmatprep.subr.mxu0 0.0
    %v1166 = vand.u32 %v761, 4294901760
    %1167 = vmatpush1.msra.mxu0 %v1166
    %1168 = vmatprep.subr.mxu0 0.0
    %v1169 = vand.u32 %v760, 4294901760
    %1170 = vmatpush1.msra.mxu0 %v1169
    %1171 = vmatprep.subr.mxu0 0.0
    %v1172 = vand.u32 %v759, 4294901760
    %1173 = vmatpush1.msra.mxu0 %v1172
    %1174 = vmatprep.subr.mxu0 0.0
    %v1175 = vand.u32 %v758, 4294901760
    %1176 = vmatpush1.msra.mxu0 %v1175
    %1177 = vmatprep.subr.mxu0 0.0
    %1178 = vmatpush2.msra.mxu0 0.0
    %1179 = vmatprep.subr.mxu0 0.0
    %1180 = vmatpush2.msra.mxu0 0.0
    %1181 = vmatprep.subr.mxu0 0.0
    %1182 = vmatpush2.msra.mxu0 0.0
    %1183 = vmatprep.subr.mxu0 0.0
    %1184 = vmatpush2.msra.mxu0 0.0
    %1185 = vmatprep.subr.mxu0 0.0
    %1186 = vmatpush2.msra.mxu0 0.0
    %1187 = vmatprep.subr.mxu0 0.0
    %1188 = vmatpush2.msra.mxu0 0.0
    %1189 = vmatprep.subr.mxu0 0.0
    %1190 = vmatpush2.msra.mxu0 0.0
    %1191 = vmatprep.subr.mxu0 0.0
    %1192 = vmatpush2.msra.mxu0 0.0
    %1193 = vmatprep.subr.mxu0 0.0
    %1194 = vmatpush2.msra.mxu0 0.0
    %1195 = vmatprep.subr.mxu0 0.0
    %1196 = vmatpush2.msra.mxu0 0.0
    %1197 = vmatprep.subr.mxu0 0.0
    %1198 = vmatpush2.msra.mxu0 0.0
    %1199 = vmatprep.subr.mxu0 0.0
    %1200 = vmatpush2.msra.mxu0 0.0
    %1201 = vmatprep.subr.mxu0 0.0
    %1202 = vmatpush2.msra.mxu0 0.0
    %1203 = vmatprep.subr.mxu0 0.0
    %1204 = vmatpush2.msra.mxu0 0.0
    %1205 = vmatprep.subr.mxu0 0.0
    %1206 = vmatpush2.msra.mxu0 0.0
    %1207 = vmatprep.subr.mxu0 0.0
    %1208 = vmatpush2.msra.mxu0 0.0
    %1209 = vmatprep.mubr.f32.mxu0 0.0
    %v1210 = vand.u32 %v757, 4294901760
    %v1211 = vsub.f32 %v757, %v1210
    %v1212 = vand.u32 %v1211, 4294901760
    %1213 = vmatmul.mubr.f32.gmra.mxu0 %v1212
    %v1214 = vpop.f32.mrf.mxu0
    %v1215 = vadd.f32 %v1126, %v1214
    %v1216 = vpop.f32.mrf.mxu0
    %1217 = vdwg.mxu0
    %1218 = vmatprep.subr.mxu0 0.0
    %v1219 = vand.u32 %v773, 4294901760
    %v1220 = vsub.f32 %v773, %v1219
    %v1221 = vand.u32 %v1220, 4294901760
    %1222 = vmatpush1.msra.mxu0 %v1221
    %1223 = vmatprep.subr.mxu0 0.0
    %v1224 = vand.u32 %v772, 4294901760
    %v1225 = vsub.f32 %v772, %v1224
    %v1226 = vand.u32 %v1225, 4294901760
    %1227 = vmatpush1.msra.mxu0 %v1226
    %1228 = vmatprep.subr.mxu0 0.0
    %v1229 = vand.u32 %v771, 4294901760
    %v1230 = vsub.f32 %v771, %v1229
    %v1231 = vand.u32 %v1230, 4294901760
    %1232 = vmatpush1.msra.mxu0 %v1231
    %1233 = vmatprep.subr.mxu0 0.0
    %v1234 = vand.u32 %v770, 4294901760
    %v1235 = vsub.f32 %v770, %v1234
    %v1236 = vand.u32 %v1235, 4294901760
    %1237 = vmatpush1.msra.mxu0 %v1236
    %1238 = vmatprep.subr.mxu0 0.0
    %v1239 = vand.u32 %v769, 4294901760
    %v1240 = vsub.f32 %v769, %v1239
    %v1241 = vand.u32 %v1240, 4294901760
    %1242 = vmatpush1.msra.mxu0 %v1241
    %1243 = vmatprep.subr.mxu0 0.0
    %v1244 = vand.u32 %v768, 4294901760
    %v1245 = vsub.f32 %v768, %v1244
    %v1246 = vand.u32 %v1245, 4294901760
    %1247 = vmatpush1.msra.mxu0 %v1246
    %1248 = vmatprep.subr.mxu0 0.0
    %v1249 = vand.u32 %v767, 4294901760
    %v1250 = vsub.f32 %v767, %v1249
    %v1251 = vand.u32 %v1250, 4294901760
    %1252 = vmatpush1.msra.mxu0 %v1251
    %1253 = vmatprep.subr.mxu0 0.0
    %v1254 = vand.u32 %v766, 4294901760
    %v1255 = vsub.f32 %v766, %v1254
    %v1256 = vand.u32 %v1255, 4294901760
    %1257 = vmatpush1.msra.mxu0 %v1256
    %1258 = vmatprep.subr.mxu0 0.0
    %v1259 = vand.u32 %v765, 4294901760
    %v1260 = vsub.f32 %v765, %v1259
    %v1261 = vand.u32 %v1260, 4294901760
    %1262 = vmatpush1.msra.mxu0 %v1261
    %1263 = vmatprep.subr.mxu0 0.0
    %v1264 = vand.u32 %v764, 4294901760
    %v1265 = vsub.f32 %v764, %v1264
    %v1266 = vand.u32 %v1265, 4294901760
    %1267 = vmatpush1.msra.mxu0 %v1266
    %1268 = vmatprep.subr.mxu0 0.0
    %v1269 = vand.u32 %v763, 4294901760
    %v1270 = vsub.f32 %v763, %v1269
    %v1271 = vand.u32 %v1270, 4294901760
    %1272 = vmatpush1.msra.mxu0 %v1271
    %1273 = vmatprep.subr.mxu0 0.0
    %v1274 = vand.u32 %v762, 4294901760
    %v1275 = vsub.f32 %v762, %v1274
    %v1276 = vand.u32 %v1275, 4294901760
    %1277 = vmatpush1.msra.mxu0 %v1276
    %1278 = vmatprep.subr.mxu0 0.0
    %v1279 = vand.u32 %v761, 4294901760
    %v1280 = vsub.f32 %v761, %v1279
    %v1281 = vand.u32 %v1280, 4294901760
    %1282 = vmatpush1.msra.mxu0 %v1281
    %1283 = vmatprep.subr.mxu0 0.0
    %v1284 = vand.u32 %v760, 4294901760
    %v1285 = vsub.f32 %v760, %v1284
    %v1286 = vand.u32 %v1285, 4294901760
    %1287 = vmatpush1.msra.mxu0 %v1286
    %1288 = vmatprep.subr.mxu0 0.0
    %v1289 = vand.u32 %v759, 4294901760
    %v1290 = vsub.f32 %v759, %v1289
    %v1291 = vand.u32 %v1290, 4294901760
    %1292 = vmatpush1.msra.mxu0 %v1291
    %1293 = vmatprep.subr.mxu0 0.0
    %v1294 = vand.u32 %v758, 4294901760
    %v1295 = vsub.f32 %v758, %v1294
    %v1296 = vand.u32 %v1295, 4294901760
    %1297 = vmatpush1.msra.mxu0 %v1296
    %1298 = vmatprep.subr.mxu0 0.0
    %1299 = vmatpush2.msra.mxu0 0.0
    %1300 = vmatprep.subr.mxu0 0.0
    %1301 = vmatpush2.msra.mxu0 0.0
    %1302 = vmatprep.subr.mxu0 0.0
    %1303 = vmatpush2.msra.mxu0 0.0
    %1304 = vmatprep.subr.mxu0 0.0
    %1305 = vmatpush2.msra.mxu0 0.0
    %1306 = vmatprep.subr.mxu0 0.0
    %1307 = vmatpush2.msra.mxu0 0.0
    %1308 = vmatprep.subr.mxu0 0.0
    %1309 = vmatpush2.msra.mxu0 0.0
    %1310 = vmatprep.subr.mxu0 0.0
    %1311 = vmatpush2.msra.mxu0 0.0
    %1312 = vmatprep.subr.mxu0 0.0
    %1313 = vmatpush2.msra.mxu0 0.0
    %1314 = vmatprep.subr.mxu0 0.0
    %1315 = vmatpush2.msra.mxu0 0.0
    %1316 = vmatprep.subr.mxu0 0.0
    %1317 = vmatpush2.msra.mxu0 0.0
    %1318 = vmatprep.subr.mxu0 0.0
    %1319 = vmatpush2.msra.mxu0 0.0
    %1320 = vmatprep.subr.mxu0 0.0
    %1321 = vmatpush2.msra.mxu0 0.0
    %1322 = vmatprep.subr.mxu0 0.0
    %1323 = vmatpush2.msra.mxu0 0.0
    %1324 = vmatprep.subr.mxu0 0.0
    %1325 = vmatpush2.msra.mxu0 0.0
    %1326 = vmatprep.subr.mxu0 0.0
    %1327 = vmatpush2.msra.mxu0 0.0
    %1328 = vmatprep.subr.mxu0 0.0
    %1329 = vmatpush2.msra.mxu0 0.0
    %1330 = vmatprep.mubr.f32.mxu0 0.0
    %v1331 = vand.u32 %v757, 4294901760
    %1332 = vmatmul.mubr.f32.gmra.mxu0 %v1331
    %v1333 = vpop.f32.mrf.mxu0
    %v1334 = vadd.f32 %v1215, %v1333
    %v1335 = vpop.f32.mrf.mxu0
    %1336 = vdwg.mxu0
    %1337 = vmatprep.subr.mxu0 0.0
    %v1338 = vand.u32 %v773, 4294901760
    %1339 = vmatpush1.msra.mxu0 %v1338
    %1340 = vmatprep.subr.mxu0 0.0
    %v1341 = vand.u32 %v772, 4294901760
    %1342 = vmatpush1.msra.mxu0 %v1341
    %1343 = vmatprep.subr.mxu0 0.0
    %v1344 = vand.u32 %v771, 4294901760
    %1345 = vmatpush1.msra.mxu0 %v1344
    %1346 = vmatprep.subr.mxu0 0.0
    %v1347 = vand.u32 %v770, 4294901760
    %1348 = vmatpush1.msra.mxu0 %v1347
    %1349 = vmatprep.subr.mxu0 0.0
    %v1350 = vand.u32 %v769, 4294901760
    %1351 = vmatpush1.msra.mxu0 %v1350
    %1352 = vmatprep.subr.mxu0 0.0
    %v1353 = vand.u32 %v768, 4294901760
    %1354 = vmatpush1.msra.mxu0 %v1353
    %1355 = vmatprep.subr.mxu0 0.0
    %v1356 = vand.u32 %v767, 4294901760
    %1357 = vmatpush1.msra.mxu0 %v1356
    %1358 = vmatprep.subr.mxu0 0.0
    %v1359 = vand.u32 %v766, 4294901760
    %1360 = vmatpush1.msra.mxu0 %v1359
    %1361 = vmatprep.subr.mxu0 0.0
    %v1362 = vand.u32 %v765, 4294901760
    %1363 = vmatpush1.msra.mxu0 %v1362
    %1364 = vmatprep.subr.mxu0 0.0
    %v1365 = vand.u32 %v764, 4294901760
    %1366 = vmatpush1.msra.mxu0 %v1365
    %1367 = vmatprep.subr.mxu0 0.0
    %v1368 = vand.u32 %v763, 4294901760
    %1369 = vmatpush1.msra.mxu0 %v1368
    %1370 = vmatprep.subr.mxu0 0.0
    %v1371 = vand.u32 %v762, 4294901760
    %1372 = vmatpush1.msra.mxu0 %v1371
    %1373 = vmatprep.subr.mxu0 0.0
    %v1374 = vand.u32 %v761, 4294901760
    %1375 = vmatpush1.msra.mxu0 %v1374
    %1376 = vmatprep.subr.mxu0 0.0
    %v1377 = vand.u32 %v760, 4294901760
    %1378 = vmatpush1.msra.mxu0 %v1377
    %1379 = vmatprep.subr.mxu0 0.0
    %v1380 = vand.u32 %v759, 4294901760
    %1381 = vmatpush1.msra.mxu0 %v1380
    %1382 = vmatprep.subr.mxu0 0.0
    %v1383 = vand.u32 %v758, 4294901760
    %1384 = vmatpush1.msra.mxu0 %v1383
    %1385 = vmatprep.subr.mxu0 0.0
    %1386 = vmatpush2.msra.mxu0 0.0
    %1387 = vmatprep.subr.mxu0 0.0
    %1388 = vmatpush2.msra.mxu0 0.0
    %1389 = vmatprep.subr.mxu0 0.0
    %1390 = vmatpush2.msra.mxu0 0.0
    %1391 = vmatprep.subr.mxu0 0.0
    %1392 = vmatpush2.msra.mxu0 0.0
    %1393 = vmatprep.subr.mxu0 0.0
    %1394 = vmatpush2.msra.mxu0 0.0
    %1395 = vmatprep.subr.mxu0 0.0
    %1396 = vmatpush2.msra.mxu0 0.0
    %1397 = vmatprep.subr.mxu0 0.0
    %1398 = vmatpush2.msra.mxu0 0.0
    %1399 = vmatprep.subr.mxu0 0.0
    %1400 = vmatpush2.msra.mxu0 0.0
    %1401 = vmatprep.subr.mxu0 0.0
    %1402 = vmatpush2.msra.mxu0 0.0
    %1403 = vmatprep.subr.mxu0 0.0
    %1404 = vmatpush2.msra.mxu0 0.0
    %1405 = vmatprep.subr.mxu0 0.0
    %1406 = vmatpush2.msra.mxu0 0.0
    %1407 = vmatprep.subr.mxu0 0.0
    %1408 = vmatpush2.msra.mxu0 0.0
    %1409 = vmatprep.subr.mxu0 0.0
    %1410 = vmatpush2.msra.mxu0 0.0
    %1411 = vmatprep.subr.mxu0 0.0
    %1412 = vmatpush2.msra.mxu0 0.0
    %1413 = vmatprep.subr.mxu0 0.0
    %1414 = vmatpush2.msra.mxu0 0.0
    %1415 = vmatprep.subr.mxu0 0.0
    %1416 = vmatpush2.msra.mxu0 0.0
    %1417 = vmatprep.mubr.f32.mxu0 0.0
    %v1418 = vand.u32 %v757, 4294901760
    %1419 = vmatmul.mubr.f32.gmra.mxu0 %v1418
    %v1420 = vpop.f32.mrf.mxu0
    %v1421 = vadd.f32 %v1334, %v1420
    %v1422 = vpop.f32.mrf.mxu0
    %1423 = vdwg.mxu0
    %v1424 = vmul.f32 %v1421, 0.01
    %v1425 = vmax.f32 %v1421, %v1424
    %v1426 = vrot.slane %v1425, 4
    %v1427 = vadd.f32 %v1425, %v1426
    %v1428 = vrot.slane %v1427, 2
    %v1429 = vadd.f32 %v1427, %v1428
    %v1430 = vrot.slane %v1429, 1
    %v1431 = vadd.f32 %v1429, %v1430
    %v1432 = vmul.f32 %v1425, %v1425
    %v1433 = vrot.slane %v1432, 4
    %v1434 = vadd.f32 %v1432, %v1433
    %v1435 = vrot.slane %v1434, 2
    %v1436 = vadd.f32 %v1434, %v1435
    %v1437 = vrot.slane %v1436, 1
    %v1438 = vadd.f32 %v1436, %v1437
    %v1439 = vmul.f32 %v1431, 0.125
    %v1440 = vmul.f32 %v1438, 0.125
    %v1441 = vmul.f32 %v1439, %v1439
    %v1442 = vsub.f32 %v1440, %v1441
    %v1443 = vmax.f32 %v1442, 0.0
    %v1444 = vadd.f32 %v1443, 1e-05
    %v1445 = vrsqrt.pop %v1444
    %v1446 = vmul.f32 %v775, %v1445
    %v1447 = vsub.f32 %v1425, %v1439
    %v1449 = vlaneseq
    %v1450 = vshrl.u32 %v1449, 7
    %v1451 = vsub.s32 0, %v1450
    %v1452 = vrot.slane %v1446, %v1451
    %v1454 = vmul.f32 %v1447, %v1452
    %v1456 = vlaneseq
    %v1457 = vshrl.u32 %v1456, 7
    %v1458 = vsub.s32 0, %v1457
    %v1459 = vrot.slane %v776, %v1458
    %v1461 = vadd.f32 %v1454, %v1459
    %v1462 = vld [vmem:[#allocation4 + $0x10] sm:$0xff]
    %v1463 = vld [vmem:[#allocation4 + $0x28] sm:$0xff]
    %v1464 = vld [vmem:[#allocation4 + $0x40] sm:$0xff]
    %v1465 = vld [vmem:[#allocation4 + $0x58] sm:$0xff]
    %v1466 = vld [vmem:[#allocation4 + $0x70] sm:$0xff]
    %v1467 = vld [vmem:[#allocation4 + $0x88] sm:$0xff]
    %v1468 = vld [vmem:[#allocation4 + $0xa0] sm:$0xff]
    %v1469 = vld [vmem:[#allocation4 + $0xb8] sm:$0xff]
    %v1470 = vld [vmem:[#allocation4 + $0xd0] sm:$0xff]
    %v1471 = vld [vmem:[#allocation4 + $0xe8] sm:$0xff]
    %v1472 = vld [vmem:[#allocation4 + $0x100] sm:$0xff]
    %v1473 = vld [vmem:[#allocation4 + $0x118] sm:$0xff]
    %v1474 = vld [vmem:[#allocation4 + $0x130] sm:$0xff]
    %v1475 = vld [vmem:[#allocation4 + $0x148] sm:$0xff]
    %v1476 = vld [vmem:[#allocation4 + $0x160] sm:$0xff]
    %v1477 = vld [vmem:[#allocation4 + $0x178] sm:$0xff]
    %v1478 = vld [vmem:[#allocation7 + $0x2] sm:$0x1]
    %v1479 = vld [vmem:[#allocation7 + $0xc] sm:$0x1]
    %v1480 = vld [vmem:[#allocation7 + $0x16] sm:$0x1]
    %v1482 = vlaneseq
    %v1483 = vshrl.u32 %v1482, 7
    %v1484 = vsub.s32 0, %v1483
    %v1485 = vrot.slane %v1478, %v1484
    %1487 = vmatprep.subr.mxu0 0.0
    %v1488 = vand.u32 %v1477, 4294901760
    %1489 = vmatpush1.msra.mxu0 %v1488
    %1490 = vmatprep.subr.mxu0 0.0
    %v1491 = vand.u32 %v1476, 4294901760
    %1492 = vmatpush1.msra.mxu0 %v1491
    %1493 = vmatprep.subr.mxu0 0.0
    %v1494 = vand.u32 %v1475, 4294901760
    %1495 = vmatpush1.msra.mxu0 %v1494
    %1496 = vmatprep.subr.mxu0 0.0
    %v1497 = vand.u32 %v1474, 4294901760
    %1498 = vmatpush1.msra.mxu0 %v1497
    %1499 = vmatprep.subr.mxu0 0.0
    %v1500 = vand.u32 %v1473, 4294901760
    %1501 = vmatpush1.msra.mxu0 %v1500
    %1502 = vmatprep.subr.mxu0 0.0
    %v1503 = vand.u32 %v1472, 4294901760
    %1504 = vmatpush1.msra.mxu0 %v1503
    %1505 = vmatprep.subr.mxu0 0.0
    %v1506 = vand.u32 %v1471, 4294901760
    %1507 = vmatpush1.msra.mxu0 %v1506
    %1508 = vmatprep.subr.mxu0 0.0
    %v1509 = vand.u32 %v1470, 4294901760
    %1510 = vmatpush1.msra.mxu0 %v1509
    %1511 = vmatprep.subr.mxu0 0.0
    %v1512 = vand.u32 %v1469, 4294901760
    %1513 = vmatpush1.msra.mxu0 %v1512
    %1514 = vmatprep.subr.mxu0 0.0
    %v1515 = vand.u32 %v1468, 4294901760
    %1516 = vmatpush1.msra.mxu0 %v1515
    %1517 = vmatprep.subr.mxu0 0.0
    %v1518 = vand.u32 %v1467, 4294901760
    %1519 = vmatpush1.msra.mxu0 %v1518
    %1520 = vmatprep.subr.mxu0 0.0
    %v1521 = vand.u32 %v1466, 4294901760
    %1522 = vmatpush1.msra.mxu0 %v1521
    %1523 = vmatprep.subr.mxu0 0.0
    %v1524 = vand.u32 %v1465, 4294901760
    %1525 = vmatpush1.msra.mxu0 %v1524
    %1526 = vmatprep.subr.mxu0 0.0
    %v1527 = vand.u32 %v1464, 4294901760
    %1528 = vmatpush1.msra.mxu0 %v1527
    %1529 = vmatprep.subr.mxu0 0.0
    %v1530 = vand.u32 %v1463, 4294901760
    %1531 = vmatpush1.msra.mxu0 %v1530
    %1532 = vmatprep.subr.mxu0 0.0
    %v1533 = vand.u32 %v1462, 4294901760
    %1534 = vmatpush1.msra.mxu0 %v1533
    %1535 = vmatprep.subr.mxu0 0.0
    %1536 = vmatpush2.msra.mxu0 0.0
    %1537 = vmatprep.subr.mxu0 0.0
    %1538 = vmatpush2.msra.mxu0 0.0
    %1539 = vmatprep.subr.mxu0 0.0
    %1540 = vmatpush2.msra.mxu0 0.0
    %1541 = vmatprep.subr.mxu0 0.0
    %1542 = vmatpush2.msra.mxu0 0.0
    %1543 = vmatprep.subr.mxu0 0.0
    %1544 = vmatpush2.msra.mxu0 0.0
    %1545 = vmatprep.subr.mxu0 0.0
    %1546 = vmatpush2.msra.mxu0 0.0
    %1547 = vmatprep.subr.mxu0 0.0
    %1548 = vmatpush2.msra.mxu0 0.0
    %1549 = vmatprep.subr.mxu0 0.0
    %1550 = vmatpush2.msra.mxu0 0.0
    %1551 = vmatprep.subr.mxu0 0.0
    %1552 = vmatpush2.msra.mxu0 0.0
    %1553 = vmatprep.subr.mxu0 0.0
    %1554 = vmatpush2.msra.mxu0 0.0
    %1555 = vmatprep.subr.mxu0 0.0
    %1556 = vmatpush2.msra.mxu0 0.0
    %1557 = vmatprep.subr.mxu0 0.0
    %1558 = vmatpush2.msra.mxu0 0.0
    %1559 = vmatprep.subr.mxu0 0.0
    %1560 = vmatpush2.msra.mxu0 0.0
    %1561 = vmatprep.subr.mxu0 0.0
    %1562 = vmatpush2.msra.mxu0 0.0
    %1563 = vmatprep.subr.mxu0 0.0
    %1564 = vmatpush2.msra.mxu0 0.0
    %1565 = vmatprep.subr.mxu0 0.0
    %1566 = vmatpush2.msra.mxu0 0.0
    %1567 = vmatprep.mubr.f32.mxu0 0.0
    %v1568 = vand.u32 %v1461, 4294901760
    %v1569 = vsub.f32 %v1461, %v1568
    %v1570 = vand.u32 %v1569, 4294901760
    %v1571 = vsub.f32 %v1569, %v1570
    %v1572 = vand.u32 %v1571, 4294901760
    %1573 = vmatmul.mubr.f32.gmra.mxu0 %v1572
    %v1574 = vpop.f32.mrf.mxu0
    %v1575 = vadd.f32 %v1485, %v1574
    %v1576 = vpop.f32.mrf.mxu0
    %1577 = vdwg.mxu0
    %1578 = vmatprep.subr.mxu0 0.0
    %v1579 = vand.u32 %v1477, 4294901760
    %v1580 = vsub.f32 %v1477, %v1579
    %v1581 = vand.u32 %v1580, 4294901760
    %v1582 = vsub.f32 %v1580, %v1581
    %v1583 = vand.u32 %v1582, 4294901760
    %1584 = vmatpush1.msra.mxu0 %v1583
    %1585 = vmatprep.subr.mxu0 0.0
    %v1586 = vand.u32 %v1476, 4294901760
    %v1587 = vsub.f32 %v1476, %v1586
    %v1588 = vand.u32 %v1587, 4294901760
    %v1589 = vsub.f32 %v1587, %v1588
    %v1590 = vand.u32 %v1589, 4294901760
    %1591 = vmatpush1.msra.mxu0 %v1590
    %1592 = vmatprep.subr.mxu0 0.0
    %v1593 = vand.u32 %v1475, 4294901760
    %v1594 = vsub.f32 %v1475, %v1593
    %v1595 = vand.u32 %v1594, 4294901760
    %v1596 = vsub.f32 %v1594, %v1595
    %v1597 = vand.u32 %v1596, 4294901760
    %1598 = vmatpush1.msra.mxu0 %v1597
    %1599 = vmatprep.subr.mxu0 0.0
    %v1600 = vand.u32 %v1474, 4294901760
    %v1601 = vsub.f32 %v1474, %v1600
    %v1602 = vand.u32 %v1601, 4294901760
    %v1603 = vsub.f32 %v1601, %v1602
    %v1604 = vand.u32 %v1603, 4294901760
    %1605 = vmatpush1.msra.mxu0 %v1604
    %1606 = vmatprep.subr.mxu0 0.0
    %v1607 = vand.u32 %v1473, 4294901760
    %v1608 = vsub.f32 %v1473, %v1607
    %v1609 = vand.u32 %v1608, 4294901760
    %v1610 = vsub.f32 %v1608, %v1609
    %v1611 = vand.u32 %v1610, 4294901760
    %1612 = vmatpush1.msra.mxu0 %v1611
    %1613 = vmatprep.subr.mxu0 0.0
    %v1614 = vand.u32 %v1472, 4294901760
    %v1615 = vsub.f32 %v1472, %v1614
    %v1616 = vand.u32 %v1615, 4294901760
    %v1617 = vsub.f32 %v1615, %v1616
    %v1618 = vand.u32 %v1617, 4294901760
    %1619 = vmatpush1.msra.mxu0 %v1618
    %1620 = vmatprep.subr.mxu0 0.0
    %v1621 = vand.u32 %v1471, 4294901760
    %v1622 = vsub.f32 %v1471, %v1621
    %v1623 = vand.u32 %v1622, 4294901760
    %v1624 = vsub.f32 %v1622, %v1623
    %v1625 = vand.u32 %v1624, 4294901760
    %1626 = vmatpush1.msra.mxu0 %v1625
    %1627 = vmatprep.subr.mxu0 0.0
    %v1628 = vand.u32 %v1470, 4294901760
    %v1629 = vsub.f32 %v1470, %v1628
    %v1630 = vand.u32 %v1629, 4294901760
    %v1631 = vsub.f32 %v1629, %v1630
    %v1632 = vand.u32 %v1631, 4294901760
    %1633 = vmatpush1.msra.mxu0 %v1632
    %1634 = vmatprep.subr.mxu0 0.0
    %v1635 = vand.u32 %v1469, 4294901760
    %v1636 = vsub.f32 %v1469, %v1635
    %v1637 = vand.u32 %v1636, 4294901760
    %v1638 = vsub.f32 %v1636, %v1637
    %v1639 = vand.u32 %v1638, 4294901760
    %1640 = vmatpush1.msra.mxu0 %v1639
    %1641 = vmatprep.subr.mxu0 0.0
    %v1642 = vand.u32 %v1468, 4294901760
    %v1643 = vsub.f32 %v1468, %v1642
    %v1644 = vand.u32 %v1643, 4294901760
    %v1645 = vsub.f32 %v1643, %v1644
    %v1646 = vand.u32 %v1645, 4294901760
    %1647 = vmatpush1.msra.mxu0 %v1646
    %1648 = vmatprep.subr.mxu0 0.0
    %v1649 = vand.u32 %v1467, 4294901760
    %v1650 = vsub.f32 %v1467, %v1649
    %v1651 = vand.u32 %v1650, 4294901760
    %v1652 = vsub.f32 %v1650, %v1651
    %v1653 = vand.u32 %v1652, 4294901760
    %1654 = vmatpush1.msra.mxu0 %v1653
    %1655 = vmatprep.subr.mxu0 0.0
    %v1656 = vand.u32 %v1466, 4294901760
    %v1657 = vsub.f32 %v1466, %v1656
    %v1658 = vand.u32 %v1657, 4294901760
    %v1659 = vsub.f32 %v1657, %v1658
    %v1660 = vand.u32 %v1659, 4294901760
    %1661 = vmatpush1.msra.mxu0 %v1660
    %1662 = vmatprep.subr.mxu0 0.0
    %v1663 = vand.u32 %v1465, 4294901760
    %v1664 = vsub.f32 %v1465, %v1663
    %v1665 = vand.u32 %v1664, 4294901760
    %v1666 = vsub.f32 %v1664, %v1665
    %v1667 = vand.u32 %v1666, 4294901760
    %1668 = vmatpush1.msra.mxu0 %v1667
    %1669 = vmatprep.subr.mxu0 0.0
    %v1670 = vand.u32 %v1464, 4294901760
    %v1671 = vsub.f32 %v1464, %v1670
    %v1672 = vand.u32 %v1671, 4294901760
    %v1673 = vsub.f32 %v1671, %v1672
    %v1674 = vand.u32 %v1673, 4294901760
    %1675 = vmatpush1.msra.mxu0 %v1674
    %1676 = vmatprep.subr.mxu0 0.0
    %v1677 = vand.u32 %v1463, 4294901760
    %v1678 = vsub.f32 %v1463, %v1677
    %v1679 = vand.u32 %v1678, 4294901760
    %v1680 = vsub.f32 %v1678, %v1679
    %v1681 = vand.u32 %v1680, 4294901760
    %1682 = vmatpush1.msra.mxu0 %v1681
    %1683 = vmatprep.subr.mxu0 0.0
    %v1684 = vand.u32 %v1462, 4294901760
    %v1685 = vsub.f32 %v1462, %v1684
    %v1686 = vand.u32 %v1685, 4294901760
    %v1687 = vsub.f32 %v1685, %v1686
    %v1688 = vand.u32 %v1687, 4294901760
    %1689 = vmatpush1.msra.mxu0 %v1688
    %1690 = vmatprep.subr.mxu0 0.0
    %1691 = vmatpush2.msra.mxu0 0.0
    %1692 = vmatprep.subr.mxu0 0.0
    %1693 = vmatpush2.msra.mxu0 0.0
    %1694 = vmatprep.subr.mxu0 0.0
    %1695 = vmatpush2.msra.mxu0 0.0
    %1696 = vmatprep.subr.mxu0 0.0
    %1697 = vmatpush2.msra.mxu0 0.0
    %1698 = vmatprep.subr.mxu0 0.0
    %1699 = vmatpush2.msra.mxu0 0.0
    %1700 = vmatprep.subr.mxu0 0.0
    %1701 = vmatpush2.msra.mxu0 0.0
    %1702 = vmatprep.subr.mxu0 0.0
    %1703 = vmatpush2.msra.mxu0 0.0
    %1704 = vmatprep.subr.mxu0 0.0
    %1705 = vmatpush2.msra.mxu0 0.0
    %1706 = vmatprep.subr.mxu0 0.0
    %1707 = vmatpush2.msra.mxu0 0.0
    %1708 = vmatprep.subr.mxu0 0.0
    %1709 = vmatpush2.msra.mxu0 0.0
    %1710 = vmatprep.subr.mxu0 0.0
    %1711 = vmatpush2.msra.mxu0 0.0
    %1712 = vmatprep.subr.mxu0 0.0
    %1713 = vmatpush2.msra.mxu0 0.0
    %1714 = vmatprep.subr.mxu0 0.0
    %1715 = vmatpush2.msra.mxu0 0.0
    %1716 = vmatprep.subr.mxu0 0.0
    %1717 = vmatpush2.msra.mxu0 0.0
    %1718 = vmatprep.subr.mxu0 0.0
    %1719 = vmatpush2.msra.mxu0 0.0
    %1720 = vmatprep.subr.mxu0 0.0
    %1721 = vmatpush2.msra.mxu0 0.0
    %1722 = vmatprep.mubr.f32.mxu0 0.0
    %v1723 = vand.u32 %v1461, 4294901760
    %1724 = vmatmul.mubr.f32.gmra.mxu0 %v1723
    %v1725 = vpop.f32.mrf.mxu0
    %v1726 = vadd.f32 %v1575, %v1725
    %v1727 = vpop.f32.mrf.mxu0
    %1728 = vdwg.mxu0
    %1729 = vmatprep.subr.mxu0 0.0
    %v1730 = vand.u32 %v1477, 4294901760
    %v1731 = vsub.f32 %v1477, %v1730
    %1732 = vmatpush1.msra.mxu0 %v1731
    %1733 = vmatprep.subr.mxu0 0.0
    %v1734 = vand.u32 %v1476, 4294901760
    %v1735 = vsub.f32 %v1476, %v1734
    %1736 = vmatpush1.msra.mxu0 %v1735
    %1737 = vmatprep.subr.mxu0 0.0
    %v1738 = vand.u32 %v1475, 4294901760
    %v1739 = vsub.f32 %v1475, %v1738
    %1740 = vmatpush1.msra.mxu0 %v1739
    %1741 = vmatprep.subr.mxu0 0.0
    %v1742 = vand.u32 %v1474, 4294901760
    %v1743 = vsub.f32 %v1474, %v1742
    %1744 = vmatpush1.msra.mxu0 %v1743
    %1745 = vmatprep.subr.mxu0 0.0
    %v1746 = vand.u32 %v1473, 4294901760
    %v1747 = vsub.f32 %v1473, %v1746
    %1748 = vmatpush1.msra.mxu0 %v1747
    %1749 = vmatprep.subr.mxu0 0.0
    %v1750 = vand.u32 %v1472, 4294901760
    %v1751 = vsub.f32 %v1472, %v1750
    %1752 = vmatpush1.msra.mxu0 %v1751
    %1753 = vmatprep.subr.mxu0 0.0
    %v1754 = vand.u32 %v1471, 4294901760
    %v1755 = vsub.f32 %v1471, %v1754
    %1756 = vmatpush1.msra.mxu0 %v1755
    %1757 = vmatprep.subr.mxu0 0.0
    %v1758 = vand.u32 %v1470, 4294901760
    %v1759 = vsub.f32 %v1470, %v1758
    %1760 = vmatpush1.msra.mxu0 %v1759
    %1761 = vmatprep.subr.mxu0 0.0
    %v1762 = vand.u32 %v1469, 4294901760
    %v1763 = vsub.f32 %v1469, %v1762
    %1764 = vmatpush1.msra.mxu0 %v1763
    %1765 = vmatprep.subr.mxu0 0.0
    %v1766 = vand.u32 %v1468, 4294901760
    %v1767 = vsub.f32 %v1468, %v1766
    %1768 = vmatpush1.msra.mxu0 %v1767
    %1769 = vmatprep.subr.mxu0 0.0
    %v1770 = vand.u32 %v1467, 4294901760
    %v1771 = vsub.f32 %v1467, %v1770
    %1772 = vmatpush1.msra.mxu0 %v1771
    %1773 = vmatprep.subr.mxu0 0.0
    %v1774 = vand.u32 %v1466, 4294901760
    %v1775 = vsub.f32 %v1466, %v1774
    %1776 = vmatpush1.msra.mxu0 %v1775
    %1777 = vmatprep.subr.mxu0 0.0
    %v1778 = vand.u32 %v1465, 4294901760
    %v1779 = vsub.f32 %v1465, %v1778
    %1780 = vmatpush1.msra.mxu0 %v1779
    %1781 = vmatprep.subr.mxu0 0.0
    %v1782 = vand.u32 %v1464, 4294901760
    %v1783 = vsub.f32 %v1464, %v1782
    %1784 = vmatpush1.msra.mxu0 %v1783
    %1785 = vmatprep.subr.mxu0 0.0
    %v1786 = vand.u32 %v1463, 4294901760
    %v1787 = vsub.f32 %v1463, %v1786
    %1788 = vmatpush1.msra.mxu0 %v1787
    %1789 = vmatprep.subr.mxu0 0.0
    %v1790 = vand.u32 %v1462, 4294901760
    %v1791 = vsub.f32 %v1462, %v1790
    %1792 = vmatpush1.msra.mxu0 %v1791
    %1793 = vmatprep.subr.mxu0 0.0
    %1794 = vmatpush2.msra.mxu0 0.0
    %1795 = vmatprep.subr.mxu0 0.0
    %1796 = vmatpush2.msra.mxu0 0.0
    %1797 = vmatprep.subr.mxu0 0.0
    %1798 = vmatpush2.msra.mxu0 0.0
    %1799 = vmatprep.subr.mxu0 0.0
    %1800 = vmatpush2.msra.mxu0 0.0
    %1801 = vmatprep.subr.mxu0 0.0
    %1802 = vmatpush2.msra.mxu0 0.0
    %1803 = vmatprep.subr.mxu0 0.0
    %1804 = vmatpush2.msra.mxu0 0.0
    %1805 = vmatprep.subr.mxu0 0.0
    %1806 = vmatpush2.msra.mxu0 0.0
    %1807 = vmatprep.subr.mxu0 0.0
    %1808 = vmatpush2.msra.mxu0 0.0
    %1809 = vmatprep.subr.mxu0 0.0
    %1810 = vmatpush2.msra.mxu0 0.0
    %1811 = vmatprep.subr.mxu0 0.0
    %1812 = vmatpush2.msra.mxu0 0.0
    %1813 = vmatprep.subr.mxu0 0.0
    %1814 = vmatpush2.msra.mxu0 0.0
    %1815 = vmatprep.subr.mxu0 0.0
    %1816 = vmatpush2.msra.mxu0 0.0
    %1817 = vmatprep.subr.mxu0 0.0
    %1818 = vmatpush2.msra.mxu0 0.0
    %1819 = vmatprep.subr.mxu0 0.0
    %1820 = vmatpush2.msra.mxu0 0.0
    %1821 = vmatprep.subr.mxu0 0.0
    %1822 = vmatpush2.msra.mxu0 0.0
    %1823 = vmatprep.subr.mxu0 0.0
    %1824 = vmatpush2.msra.mxu0 0.0
    %1825 = vmatprep.mubr.f32.mxu0 0.0
    %v1826 = vand.u32 %v1461, 4294901760
    %v1827 = vsub.f32 %v1461, %v1826
    %1828 = vmatmul.mubr.f32.gmra.mxu0 %v1827
    %v1829 = vpop.f32.mrf.mxu0
    %v1830 = vadd.f32 %v1726, %v1829
    %v1831 = vpop.f32.mrf.mxu0
    %1832 = vdwg.mxu0
    %1833 = vmatprep.subr.mxu0 0.0
    %v1834 = vand.u32 %v1477, 4294901760
    %1835 = vmatpush1.msra.mxu0 %v1834
    %1836 = vmatprep.subr.mxu0 0.0
    %v1837 = vand.u32 %v1476, 4294901760
    %1838 = vmatpush1.msra.mxu0 %v1837
    %1839 = vmatprep.subr.mxu0 0.0
    %v1840 = vand.u32 %v1475, 4294901760
    %1841 = vmatpush1.msra.mxu0 %v1840
    %1842 = vmatprep.subr.mxu0 0.0
    %v1843 = vand.u32 %v1474, 4294901760
    %1844 = vmatpush1.msra.mxu0 %v1843
    %1845 = vmatprep.subr.mxu0 0.0
    %v1846 = vand.u32 %v1473, 4294901760
    %1847 = vmatpush1.msra.mxu0 %v1846
    %1848 = vmatprep.subr.mxu0 0.0
    %v1849 = vand.u32 %v1472, 4294901760
    %1850 = vmatpush1.msra.mxu0 %v1849
    %1851 = vmatprep.subr.mxu0 0.0
    %v1852 = vand.u32 %v1471, 4294901760
    %1853 = vmatpush1.msra.mxu0 %v1852
    %1854 = vmatprep.subr.mxu0 0.0
    %v1855 = vand.u32 %v1470, 4294901760
    %1856 = vmatpush1.msra.mxu0 %v1855
    %1857 = vmatprep.subr.mxu0 0.0
    %v1858 = vand.u32 %v1469, 4294901760
    %1859 = vmatpush1.msra.mxu0 %v1858
    %1860 = vmatprep.subr.mxu0 0.0
    %v1861 = vand.u32 %v1468, 4294901760
    %1862 = vmatpush1.msra.mxu0 %v1861
    %1863 = vmatprep.subr.mxu0 0.0
    %v1864 = vand.u32 %v1467, 4294901760
    %1865 = vmatpush1.msra.mxu0 %v1864
    %1866 = vmatprep.subr.mxu0 0.0
    %v1867 = vand.u32 %v1466, 4294901760
    %1868 = vmatpush1.msra.mxu0 %v1867
    %1869 = vmatprep.subr.mxu0 0.0
    %v1870 = vand.u32 %v1465, 4294901760
    %1871 = vmatpush1.msra.mxu0 %v1870
    %1872 = vmatprep.subr.mxu0 0.0
    %v1873 = vand.u32 %v1464, 4294901760
    %1874 = vmatpush1.msra.mxu0 %v1873
    %1875 = vmatprep.subr.mxu0 0.0
    %v1876 = vand.u32 %v1463, 4294901760
    %1877 = vmatpush1.msra.mxu0 %v1876
    %1878 = vmatprep.subr.mxu0 0.0
    %v1879 = vand.u32 %v1462, 4294901760
    %1880 = vmatpush1.msra.mxu0 %v1879
    %1881 = vmatprep.subr.mxu0 0.0
    %1882 = vmatpush2.msra.mxu0 0.0
    %1883 = vmatprep.subr.mxu0 0.0
    %1884 = vmatpush2.msra.mxu0 0.0
    %1885 = vmatprep.subr.mxu0 0.0
    %1886 = vmatpush2.msra.mxu0 0.0
    %1887 = vmatprep.subr.mxu0 0.0
    %1888 = vmatpush2.msra.mxu0 0.0
    %1889 = vmatprep.subr.mxu0 0.0
    %1890 = vmatpush2.msra.mxu0 0.0
    %1891 = vmatprep.subr.mxu0 0.0
    %1892 = vmatpush2.msra.mxu0 0.0
    %1893 = vmatprep.subr.mxu0 0.0
    %1894 = vmatpush2.msra.mxu0 0.0
    %1895 = vmatprep.subr.mxu0 0.0
    %1896 = vmatpush2.msra.mxu0 0.0
    %1897 = vmatprep.subr.mxu0 0.0
    %1898 = vmatpush2.msra.mxu0 0.0
    %1899 = vmatprep.subr.mxu0 0.0
    %1900 = vmatpush2.msra.mxu0 0.0
    %1901 = vmatprep.subr.mxu0 0.0
    %1902 = vmatpush2.msra.mxu0 0.0
    %1903 = vmatprep.subr.mxu0 0.0
    %1904 = vmatpush2.msra.mxu0 0.0
    %1905 = vmatprep.subr.mxu0 0.0
    %1906 = vmatpush2.msra.mxu0 0.0
    %1907 = vmatprep.subr.mxu0 0.0
    %1908 = vmatpush2.msra.mxu0 0.0
    %1909 = vmatprep.subr.mxu0 0.0
    %1910 = vmatpush2.msra.mxu0 0.0
    %1911 = vmatprep.subr.mxu0 0.0
    %1912 = vmatpush2.msra.mxu0 0.0
    %1913 = vmatprep.mubr.f32.mxu0 0.0
    %v1914 = vand.u32 %v1461, 4294901760
    %v1915 = vsub.f32 %v1461, %v1914
    %v1916 = vand.u32 %v1915, 4294901760
    %1917 = vmatmul.mubr.f32.gmra.mxu0 %v1916
    %v1918 = vpop.f32.mrf.mxu0
    %v1919 = vadd.f32 %v1830, %v1918
    %v1920 = vpop.f32.mrf.mxu0
    %1921 = vdwg.mxu0
    %1922 = vmatprep.subr.mxu0 0.0
    %v1923 = vand.u32 %v1477, 4294901760
    %v1924 = vsub.f32 %v1477, %v1923
    %v1925 = vand.u32 %v1924, 4294901760
    %1926 = vmatpush1.msra.mxu0 %v1925
    %1927 = vmatprep.subr.mxu0 0.0
    %v1928 = vand.u32 %v1476, 4294901760
    %v1929 = vsub.f32 %v1476, %v1928
    %v1930 = vand.u32 %v1929, 4294901760
    %1931 = vmatpush1.msra.mxu0 %v1930
    %1932 = vmatprep.subr.mxu0 0.0
    %v1933 = vand.u32 %v1475, 4294901760
    %v1934 = vsub.f32 %v1475, %v1933
    %v1935 = vand.u32 %v1934, 4294901760
    %1936 = vmatpush1.msra.mxu0 %v1935
    %1937 = vmatprep.subr.mxu0 0.0
    %v1938 = vand.u32 %v1474, 4294901760
    %v1939 = vsub.f32 %v1474, %v1938
    %v1940 = vand.u32 %v1939, 4294901760
    %1941 = vmatpush1.msra.mxu0 %v1940
    %1942 = vmatprep.subr.mxu0 0.0
    %v1943 = vand.u32 %v1473, 4294901760
    %v1944 = vsub.f32 %v1473, %v1943
    %v1945 = vand.u32 %v1944, 4294901760
    %1946 = vmatpush1.msra.mxu0 %v1945
    %1947 = vmatprep.subr.mxu0 0.0
    %v1948 = vand.u32 %v1472, 4294901760
    %v1949 = vsub.f32 %v1472, %v1948
    %v1950 = vand.u32 %v1949, 4294901760
    %1951 = vmatpush1.msra.mxu0 %v1950
    %1952 = vmatprep.subr.mxu0 0.0
    %v1953 = vand.u32 %v1471, 4294901760
    %v1954 = vsub.f32 %v1471, %v1953
    %v1955 = vand.u32 %v1954, 4294901760
    %1956 = vmatpush1.msra.mxu0 %v1955
    %1957 = vmatprep.subr.mxu0 0.0
    %v1958 = vand.u32 %v1470, 4294901760
    %v1959 = vsub.f32 %v1470, %v1958
    %v1960 = vand.u32 %v1959, 4294901760
    %1961 = vmatpush1.msra.mxu0 %v1960
    %1962 = vmatprep.subr.mxu0 0.0
    %v1963 = vand.u32 %v1469, 4294901760
    %v1964 = vsub.f32 %v1469, %v1963
    %v1965 = vand.u32 %v1964, 4294901760
    %1966 = vmatpush1.msra.mxu0 %v1965
    %1967 = vmatprep.subr.mxu0 0.0
    %v1968 = vand.u32 %v1468, 4294901760
    %v1969 = vsub.f32 %v1468, %v1968
    %v1970 = vand.u32 %v1969, 4294901760
    %1971 = vmatpush1.msra.mxu0 %v1970
    %1972 = vmatprep.subr.mxu0 0.0
    %v1973 = vand.u32 %v1467, 4294901760
    %v1974 = vsub.f32 %v1467, %v1973
    %v1975 = vand.u32 %v1974, 4294901760
    %1976 = vmatpush1.msra.mxu0 %v1975
    %1977 = vmatprep.subr.mxu0 0.0
    %v1978 = vand.u32 %v1466, 4294901760
    %v1979 = vsub.f32 %v1466, %v1978
    %v1980 = vand.u32 %v1979, 4294901760
    %1981 = vmatpush1.msra.mxu0 %v1980
    %1982 = vmatprep.subr.mxu0 0.0
    %v1983 = vand.u32 %v1465, 4294901760
    %v1984 = vsub.f32 %v1465, %v1983
    %v1985 = vand.u32 %v1984, 4294901760
    %1986 = vmatpush1.msra.mxu0 %v1985
    %1987 = vmatprep.subr.mxu0 0.0
    %v1988 = vand.u32 %v1464, 4294901760
    %v1989 = vsub.f32 %v1464, %v1988
    %v1990 = vand.u32 %v1989, 4294901760
    %1991 = vmatpush1.msra.mxu0 %v1990
    %1992 = vmatprep.subr.mxu0 0.0
    %v1993 = vand.u32 %v1463, 4294901760
    %v1994 = vsub.f32 %v1463, %v1993
    %v1995 = vand.u32 %v1994, 4294901760
    %1996 = vmatpush1.msra.mxu0 %v1995
    %1997 = vmatprep.subr.mxu0 0.0
    %v1998 = vand.u32 %v1462, 4294901760
    %v1999 = vsub.f32 %v1462, %v1998
    %v2000 = vand.u32 %v1999, 4294901760
    %2001 = vmatpush1.msra.mxu0 %v2000
    %2002 = vmatprep.subr.mxu0 0.0
    %2003 = vmatpush2.msra.mxu0 0.0
    %2004 = vmatprep.subr.mxu0 0.0
    %2005 = vmatpush2.msra.mxu0 0.0
    %2006 = vmatprep.subr.mxu0 0.0
    %2007 = vmatpush2.msra.mxu0 0.0
    %2008 = vmatprep.subr.mxu0 0.0
    %2009 = vmatpush2.msra.mxu0 0.0
    %2010 = vmatprep.subr.mxu0 0.0
    %2011 = vmatpush2.msra.mxu0 0.0
    %2012 = vmatprep.subr.mxu0 0.0
    %2013 = vmatpush2.msra.mxu0 0.0
    %2014 = vmatprep.subr.mxu0 0.0
    %2015 = vmatpush2.msra.mxu0 0.0
    %2016 = vmatprep.subr.mxu0 0.0
    %2017 = vmatpush2.msra.mxu0 0.0
    %2018 = vmatprep.subr.mxu0 0.0
    %2019 = vmatpush2.msra.mxu0 0.0
    %2020 = vmatprep.subr.mxu0 0.0
    %2021 = vmatpush2.msra.mxu0 0.0
    %2022 = vmatprep.subr.mxu0 0.0
    %2023 = vmatpush2.msra.mxu0 0.0
    %2024 = vmatprep.subr.mxu0 0.0
    %2025 = vmatpush2.msra.mxu0 0.0
    %2026 = vmatprep.subr.mxu0 0.0
    %2027 = vmatpush2.msra.mxu0 0.0
    %2028 = vmatprep.subr.mxu0 0.0
    %2029 = vmatpush2.msra.mxu0 0.0
    %2030 = vmatprep.subr.mxu0 0.0
    %2031 = vmatpush2.msra.mxu0 0.0
    %2032 = vmatprep.subr.mxu0 0.0
    %2033 = vmatpush2.msra.mxu0 0.0
    %2034 = vmatprep.mubr.f32.mxu0 0.0
    %v2035 = vand.u32 %v1461, 4294901760
    %2036 = vmatmul.mubr.f32.gmra.mxu0 %v2035
    %v2037 = vpop.f32.mrf.mxu0
    %v2038 = vadd.f32 %v1919, %v2037
    %v2039 = vpop.f32.mrf.mxu0
    %2040 = vdwg.mxu0
    %2041 = vmatprep.subr.mxu0 0.0
    %v2042 = vand.u32 %v1477, 4294901760
    %2043 = vmatpush1.msra.mxu0 %v2042
    %2044 = vmatprep.subr.mxu0 0.0
    %v2045 = vand.u32 %v1476, 4294901760
    %2046 = vmatpush1.msra.mxu0 %v2045
    %2047 = vmatprep.subr.mxu0 0.0
    %v2048 = vand.u32 %v1475, 4294901760
    %2049 = vmatpush1.msra.mxu0 %v2048
    %2050 = vmatprep.subr.mxu0 0.0
    %v2051 = vand.u32 %v1474, 4294901760
    %2052 = vmatpush1.msra.mxu0 %v2051
    %2053 = vmatprep.subr.mxu0 0.0
    %v2054 = vand.u32 %v1473, 4294901760
    %2055 = vmatpush1.msra.mxu0 %v2054
    %2056 = vmatprep.subr.mxu0 0.0
    %v2057 = vand.u32 %v1472, 4294901760
    %2058 = vmatpush1.msra.mxu0 %v2057
    %2059 = vmatprep.subr.mxu0 0.0
    %v2060 = vand.u32 %v1471, 4294901760
    %2061 = vmatpush1.msra.mxu0 %v2060
    %2062 = vmatprep.subr.mxu0 0.0
    %v2063 = vand.u32 %v1470, 4294901760
    %2064 = vmatpush1.msra.mxu0 %v2063
    %2065 = vmatprep.subr.mxu0 0.0
    %v2066 = vand.u32 %v1469, 4294901760
    %2067 = vmatpush1.msra.mxu0 %v2066
    %2068 = vmatprep.subr.mxu0 0.0
    %v2069 = vand.u32 %v1468, 4294901760
    %2070 = vmatpush1.msra.mxu0 %v2069
    %2071 = vmatprep.subr.mxu0 0.0
    %v2072 = vand.u32 %v1467, 4294901760
    %2073 = vmatpush1.msra.mxu0 %v2072
    %2074 = vmatprep.subr.mxu0 0.0
    %v2075 = vand.u32 %v1466, 4294901760
    %2076 = vmatpush1.msra.mxu0 %v2075
    %2077 = vmatprep.subr.mxu0 0.0
    %v2078 = vand.u32 %v1465, 4294901760
    %2079 = vmatpush1.msra.mxu0 %v2078
    %2080 = vmatprep.subr.mxu0 0.0
    %v2081 = vand.u32 %v1464, 4294901760
    %2082 = vmatpush1.msra.mxu0 %v2081
    %2083 = vmatprep.subr.mxu0 0.0
    %v2084 = vand.u32 %v1463, 4294901760
    %2085 = vmatpush1.msra.mxu0 %v2084
    %2086 = vmatprep.subr.mxu0 0.0
    %v2087 = vand.u32 %v1462, 4294901760
    %2088 = vmatpush1.msra.mxu0 %v2087
    %2089 = vmatprep.subr.mxu0 0.0
    %2090 = vmatpush2.msra.mxu0 0.0
    %2091 = vmatprep.subr.mxu0 0.0
    %2092 = vmatpush2.msra.mxu0 0.0
    %2093 = vmatprep.subr.mxu0 0.0
    %2094 = vmatpush2.msra.mxu0 0.0
    %2095 = vmatprep.subr.mxu0 0.0
    %2096 = vmatpush2.msra.mxu0 0.0
    %2097 = vmatprep.subr.mxu0 0.0
    %2098 = vmatpush2.msra.mxu0 0.0
    %2099 = vmatprep.subr.mxu0 0.0
    %2100 = vmatpush2.msra.mxu0 0.0
    %2101 = vmatprep.subr.mxu0 0.0
    %2102 = vmatpush2.msra.mxu0 0.0
    %2103 = vmatprep.subr.mxu0 0.0
    %2104 = vmatpush2.msra.mxu0 0.0
    %2105 = vmatprep.subr.mxu0 0.0
    %2106 = vmatpush2.msra.mxu0 0.0
    %2107 = vmatprep.subr.mxu0 0.0
    %2108 = vmatpush2.msra.mxu0 0.0
    %2109 = vmatprep.subr.mxu0 0.0
    %2110 = vmatpush2.msra.mxu0 0.0
    %2111 = vmatprep.subr.mxu0 0.0
    %2112 = vmatpush2.msra.mxu0 0.0
    %2113 = vmatprep.subr.mxu0 0.0
    %2114 = vmatpush2.msra.mxu0 0.0
    %2115 = vmatprep.subr.mxu0 0.0
    %2116 = vmatpush2.msra.mxu0 0.0
    %2117 = vmatprep.subr.mxu0 0.0
    %2118 = vmatpush2.msra.mxu0 0.0
    %2119 = vmatprep.subr.mxu0 0.0
    %2120 = vmatpush2.msra.mxu0 0.0
    %2121 = vmatprep.mubr.f32.mxu0 0.0
    %v2122 = vand.u32 %v1461, 4294901760
    %2123 = vmatmul.mubr.f32.gmra.mxu0 %v2122
    %v2124 = vpop.f32.mrf.mxu0
    %v2125 = vadd.f32 %v2038, %v2124
    %v2126 = vpop.f32.mrf.mxu0
    %2127 = vdwg.mxu0
    %v2128 = vmul.f32 %v2125, 0.01
    %v2129 = vmax.f32 %v2125, %v2128
    %v2130 = vrot.slane %v2129, 4
    %v2131 = vadd.f32 %v2129, %v2130
    %v2132 = vrot.slane %v2131, 2
    %v2133 = vadd.f32 %v2131, %v2132
    %v2134 = vrot.slane %v2133, 1
    %v2135 = vadd.f32 %v2133, %v2134
    %v2136 = vmul.f32 %v2129, %v2129
    %v2137 = vrot.slane %v2136, 4
    %v2138 = vadd.f32 %v2136, %v2137
    %v2139 = vrot.slane %v2138, 2
    %v2140 = vadd.f32 %v2138, %v2139
    %v2141 = vrot.slane %v2140, 1
    %v2142 = vadd.f32 %v2140, %v2141
    %v2143 = vmul.f32 %v2135, 0.125
    %v2144 = vmul.f32 %v2142, 0.125
    %v2145 = vmul.f32 %v2143, %v2143
    %v2146 = vsub.f32 %v2144, %v2145
    %v2147 = vmax.f32 %v2146, 0.0
    %v2148 = vadd.f32 %v2147, 1e-05
    %v2149 = vrsqrt.pop %v2148
    %v2150 = vmul.f32 %v1479, %v2149
    %v2151 = vsub.f32 %v2129, %v2143
    %v2153 = vlaneseq
    %v2154 = vshrl.u32 %v2153, 7
    %v2155 = vsub.s32 0, %v2154
    %v2156 = vrot.slane %v2150, %v2155
    %v2158 = vmul.f32 %v2151, %v2156
    %v2160 = vlaneseq
    %v2161 = vshrl.u32 %v2160, 7
    %v2162 = vsub.s32 0, %v2161
    %v2163 = vrot.slane %v1480, %v2162
    %v2165 = vadd.f32 %v2158, %v2163
    %s2166 = smul.u32 8, 16
    %s2167 = smul.u32 %s2166, 7
    %s2168 = sshll.u32 %s2167, 4
    %2169 = dma.done [#allocation3], %s2168
    %v2170 = vld [vmem:[#allocation2] sm:$0xff]
    %v2171 = vld [vmem:[#allocation2 + $0x8] sm:$0xff]
    %v2172 = vld [vmem:[#allocation2 + $0x10] sm:$0xff]
    %v2173 = vld [vmem:[#allocation2 + $0x18] sm:$0xff]
    %v2174 = vld [vmem:[#allocation2 + $0x20] sm:$0xff]
    %v2175 = vld [vmem:[#allocation2 + $0x28] sm:$0xff]
    %v2176 = vld [vmem:[#allocation2 + $0x30] sm:$0xff]
    %v2177 = vld [vmem:[#allocation2 + $0x38] sm:$0xff]
    %v2178 = vld [vmem:[#allocation2 + $0x40] sm:$0xff]
    %v2179 = vld [vmem:[#allocation2 + $0x48] sm:$0xff]
    %v2180 = vld [vmem:[#allocation2 + $0x50] sm:$0xff]
    %v2181 = vld [vmem:[#allocation2 + $0x58] sm:$0xff]
    %v2182 = vld [vmem:[#allocation2 + $0x60] sm:$0xff]
    %v2183 = vld [vmem:[#allocation2 + $0x68] sm:$0xff]
    %v2184 = vld [vmem:[#allocation2 + $0x70] sm:$0xff]
    %v2185 = vld [vmem:[#allocation2 + $0x78] sm:$0xff]
    %v2186 = vld [vmem:[#allocation2 + $0x80] sm:$0xff]
    %v2187 = vld [vmem:[#allocation2 + $0x88] sm:$0xff]
    %v2188 = vld [vmem:[#allocation2 + $0x90] sm:$0xff]
    %v2189 = vld [vmem:[#allocation2 + $0x98] sm:$0xff]
    %v2190 = vld [vmem:[#allocation2 + $0xa0] sm:$0xff]
    %v2191 = vld [vmem:[#allocation2 + $0xa8] sm:$0xff]
    %v2192 = vld [vmem:[#allocation2 + $0xb0] sm:$0xff]
    %v2193 = vld [vmem:[#allocation2 + $0xb8] sm:$0xff]
    %v2194 = vld [vmem:[#allocation2 + $0xc0] sm:$0xff]
    %v2195 = vld [vmem:[#allocation2 + $0xc8] sm:$0xff]
    %v2196 = vld [vmem:[#allocation2 + $0xd0] sm:$0xff]
    %v2197 = vld [vmem:[#allocation2 + $0xd8] sm:$0xff]
    %v2198 = vld [vmem:[#allocation2 + $0xe0] sm:$0xff]
    %v2199 = vld [vmem:[#allocation2 + $0xe8] sm:$0xff]
    %v2200 = vld [vmem:[#allocation2 + $0xf0] sm:$0xff]
    %v2201 = vld [vmem:[#allocation2 + $0xf8] sm:$0xff]
    %v2202 = vld [vmem:[#allocation2 + $0x100] sm:$0xff]
    %v2203 = vld [vmem:[#allocation2 + $0x108] sm:$0xff]
    %v2204 = vld [vmem:[#allocation2 + $0x110] sm:$0xff]
    %v2205 = vld [vmem:[#allocation2 + $0x118] sm:$0xff]
    %v2206 = vld [vmem:[#allocation2 + $0x120] sm:$0xff]
    %v2207 = vld [vmem:[#allocation2 + $0x128] sm:$0xff]
    %v2208 = vld [vmem:[#allocation2 + $0x130] sm:$0xff]
    %v2209 = vld [vmem:[#allocation2 + $0x138] sm:$0xff]
    %v2210 = vld [vmem:[#allocation2 + $0x140] sm:$0xff]
    %v2211 = vld [vmem:[#allocation2 + $0x148] sm:$0xff]
    %v2212 = vld [vmem:[#allocation2 + $0x150] sm:$0xff]
    %v2213 = vld [vmem:[#allocation2 + $0x158] sm:$0xff]
    %v2214 = vld [vmem:[#allocation2 + $0x160] sm:$0xff]
    %v2215 = vld [vmem:[#allocation2 + $0x168] sm:$0xff]
    %v2216 = vld [vmem:[#allocation2 + $0x170] sm:$0xff]
    %v2217 = vld [vmem:[#allocation2 + $0x178] sm:$0xff]
    %v2218 = vld [vmem:[#allocation2 + $0x180] sm:$0xff]
    %v2219 = vld [vmem:[#allocation2 + $0x188] sm:$0xff]
    %v2220 = vld [vmem:[#allocation2 + $0x190] sm:$0xff]
    %v2221 = vld [vmem:[#allocation2 + $0x198] sm:$0xff]
    %v2222 = vld [vmem:[#allocation2 + $0x1a0] sm:$0xff]
    %v2223 = vld [vmem:[#allocation2 + $0x1a8] sm:$0xff]
    %v2224 = vld [vmem:[#allocation2 + $0x1b0] sm:$0xff]
    %v2225 = vld [vmem:[#allocation2 + $0x1b8] sm:$0xff]
    %v2226 = vld [vmem:[#allocation2 + $0x1c0] sm:$0xff]
    %v2227 = vld [vmem:[#allocation2 + $0x1c8] sm:$0xff]
    %v2228 = vld [vmem:[#allocation2 + $0x1d0] sm:$0xff]
    %v2229 = vld [vmem:[#allocation2 + $0x1d8] sm:$0xff]
    %v2230 = vld [vmem:[#allocation2 + $0x1e0] sm:$0xff]
    %v2231 = vld [vmem:[#allocation2 + $0x1e8] sm:$0xff]
    %v2232 = vld [vmem:[#allocation2 + $0x1f0] sm:$0xff]
    %v2233 = vld [vmem:[#allocation2 + $0x1f8] sm:$0xff]
    %v2234 = vld [vmem:[#allocation2 + $0x200] sm:$0xff]
    %v2235 = vld [vmem:[#allocation2 + $0x208] sm:$0xff]
    %v2236 = vld [vmem:[#allocation2 + $0x210] sm:$0xff]
    %v2237 = vld [vmem:[#allocation2 + $0x218] sm:$0xff]
    %v2238 = vld [vmem:[#allocation2 + $0x220] sm:$0xff]
    %v2239 = vld [vmem:[#allocation2 + $0x228] sm:$0xff]
    %v2240 = vld [vmem:[#allocation2 + $0x230] sm:$0xff]
    %v2241 = vld [vmem:[#allocation2 + $0x238] sm:$0xff]
    %v2242 = vld [vmem:[#allocation2 + $0x240] sm:$0xff]
    %v2243 = vld [vmem:[#allocation2 + $0x248] sm:$0xff]
    %v2244 = vld [vmem:[#allocation2 + $0x250] sm:$0xff]
    %v2245 = vld [vmem:[#allocation2 + $0x258] sm:$0xff]
    %v2246 = vld [vmem:[#allocation2 + $0x260] sm:$0xff]
    %v2247 = vld [vmem:[#allocation2 + $0x268] sm:$0xff]
    %v2248 = vld [vmem:[#allocation2 + $0x270] sm:$0xff]
    %v2249 = vld [vmem:[#allocation2 + $0x278] sm:$0xff]
    %v2250 = vld [vmem:[#allocation2 + $0x280] sm:$0xff]
    %v2251 = vld [vmem:[#allocation2 + $0x288] sm:$0xff]
    %v2252 = vld [vmem:[#allocation2 + $0x290] sm:$0xff]
    %v2253 = vld [vmem:[#allocation2 + $0x298] sm:$0xff]
    %v2254 = vld [vmem:[#allocation2 + $0x2a0] sm:$0xff]
    %v2255 = vld [vmem:[#allocation2 + $0x2a8] sm:$0xff]
    %v2256 = vld [vmem:[#allocation2 + $0x2b0] sm:$0xff]
    %v2257 = vld [vmem:[#allocation2 + $0x2b8] sm:$0xff]
    %v2258 = vld [vmem:[#allocation2 + $0x2c0] sm:$0xff]
    %v2259 = vld [vmem:[#allocation2 + $0x2c8] sm:$0xff]
    %v2260 = vld [vmem:[#allocation2 + $0x2d0] sm:$0xff]
    %v2261 = vld [vmem:[#allocation2 + $0x2d8] sm:$0xff]
    %v2262 = vld [vmem:[#allocation2 + $0x2e0] sm:$0xff]
    %v2263 = vld [vmem:[#allocation2 + $0x2e8] sm:$0xff]
    %v2264 = vld [vmem:[#allocation2 + $0x2f0] sm:$0xff]
    %v2265 = vld [vmem:[#allocation2 + $0x2f8] sm:$0xff]
    %v2266 = vld [vmem:[#allocation2 + $0x300] sm:$0xff]
    %v2267 = vld [vmem:[#allocation2 + $0x308] sm:$0xff]
    %v2268 = vld [vmem:[#allocation2 + $0x310] sm:$0xff]
    %v2269 = vld [vmem:[#allocation2 + $0x318] sm:$0xff]
    %v2270 = vld [vmem:[#allocation2 + $0x320] sm:$0xff]
    %v2271 = vld [vmem:[#allocation2 + $0x328] sm:$0xff]
    %v2272 = vld [vmem:[#allocation2 + $0x330] sm:$0xff]
    %v2273 = vld [vmem:[#allocation2 + $0x338] sm:$0xff]
    %v2274 = vld [vmem:[#allocation2 + $0x340] sm:$0xff]
    %v2275 = vld [vmem:[#allocation2 + $0x348] sm:$0xff]
    %v2276 = vld [vmem:[#allocation2 + $0x350] sm:$0xff]
    %v2277 = vld [vmem:[#allocation2 + $0x358] sm:$0xff]
    %v2278 = vld [vmem:[#allocation2 + $0x360] sm:$0xff]
    %v2279 = vld [vmem:[#allocation2 + $0x368] sm:$0xff]
    %v2280 = vld [vmem:[#allocation2 + $0x370] sm:$0xff]
    %v2281 = vld [vmem:[#allocation2 + $0x378] sm:$0xff]
    %v2282 = vld [vmem:[#allocation7 + $0x3] sm:$0xff]
    %v2283 = vld [vmem:[#allocation7 + $0xd] sm:$0xff]
    %v2284 = vld [vmem:[#allocation7 + $0x17] sm:$0xff]
    %v2286 = vlaneseq
    %v2287 = vshrl.u32 %v2286, 7
    %v2288 = vsub.s32 0, %v2287
    %v2289 = vrot.slane %v2282, %v2288
    %v2290 = vlaneseq
    %v2291 = vshrl.u32 %v2290, 7
    %v2292 = vsub.s32 1, %v2291
    %v2293 = vrot.slane %v2282, %v2292
    %v2294 = vlaneseq
    %v2295 = vshrl.u32 %v2294, 7
    %v2296 = vsub.s32 2, %v2295
    %v2297 = vrot.slane %v2282, %v2296
    %v2298 = vlaneseq
    %v2299 = vshrl.u32 %v2298, 7
    %v2300 = vsub.s32 3, %v2299
    %v2301 = vrot.slane %v2282, %v2300
    %v2302 = vlaneseq
    %v2303 = vshrl.u32 %v2302, 7
    %v2304 = vsub.s32 4, %v2303
    %v2305 = vrot.slane %v2282, %v2304
    %v2306 = vlaneseq
    %v2307 = vshrl.u32 %v2306, 7
    %v2308 = vsub.s32 5, %v2307
    %v2309 = vrot.slane %v2282, %v2308
    %v2310 = vlaneseq
    %v2311 = vshrl.u32 %v2310, 7
    %v2312 = vsub.s32 6, %v2311
    %v2313 = vrot.slane %v2282, %v2312
    %v2321 = vand.u32 %v2276, 4294901760
    %2322 = vmatprep.subr.mxu0 %v2321
    %v2323 = vand.u32 %v2275, 4294901760
    %2324 = vmatpush1.msra.mxu0 %v2323
    %v2325 = vand.u32 %v2269, 4294901760
    %2326 = vmatprep.subr.mxu0 %v2325
    %v2327 = vand.u32 %v2268, 4294901760
    %2328 = vmatpush1.msra.mxu0 %v2327
    %v2329 = vand.u32 %v2262, 4294901760
    %2330 = vmatprep.subr.mxu0 %v2329
    %v2331 = vand.u32 %v2261, 4294901760
    %2332 = vmatpush1.msra.mxu0 %v2331
    %v2333 = vand.u32 %v2255, 4294901760
    %2334 = vmatprep.subr.mxu0 %v2333
    %v2335 = vand.u32 %v2254, 4294901760
    %2336 = vmatpush1.msra.mxu0 %v2335
    %v2337 = vand.u32 %v2248, 4294901760
    %2338 = vmatprep.subr.mxu0 %v2337
    %v2339 = vand.u32 %v2247, 4294901760
    %2340 = vmatpush1.msra.mxu0 %v2339
    %v2341 = vand.u32 %v2241, 4294901760
    %2342 = vmatprep.subr.mxu0 %v2341
    %v2343 = vand.u32 %v2240, 4294901760
    %2344 = vmatpush1.msra.mxu0 %v2343
    %v2345 = vand.u32 %v2234, 4294901760
    %2346 = vmatprep.subr.mxu0 %v2345
    %v2347 = vand.u32 %v2233, 4294901760
    %2348 = vmatpush1.msra.mxu0 %v2347
    %v2349 = vand.u32 %v2227, 4294901760
    %2350 = vmatprep.subr.mxu0 %v2349
    %v2351 = vand.u32 %v2226, 4294901760
    %2352 = vmatpush1.msra.mxu0 %v2351
    %v2353 = vand.u32 %v2220, 4294901760
    %2354 = vmatprep.subr.mxu0 %v2353
    %v2355 = vand.u32 %v2219, 4294901760
    %2356 = vmatpush1.msra.mxu0 %v2355
    %v2357 = vand.u32 %v2213, 4294901760
    %2358 = vmatprep.subr.mxu0 %v2357
    %v2359 = vand.u32 %v2212, 4294901760
    %2360 = vmatpush1.msra.mxu0 %v2359
    %v2361 = vand.u32 %v2206, 4294901760
    %2362 = vmatprep.subr.mxu0 %v2361
    %v2363 = vand.u32 %v2205, 4294901760
    %2364 = vmatpush1.msra.mxu0 %v2363
    %v2365 = vand.u32 %v2199, 4294901760
    %2366 = vmatprep.subr.mxu0 %v2365
    %v2367 = vand.u32 %v2198, 4294901760
    %2368 = vmatpush1.msra.mxu0 %v2367
    %v2369 = vand.u32 %v2192, 4294901760
    %2370 = vmatprep.subr.mxu0 %v2369
    %v2371 = vand.u32 %v2191, 4294901760
    %2372 = vmatpush1.msra.mxu0 %v2371
    %v2373 = vand.u32 %v2185, 4294901760
    %2374 = vmatprep.subr.mxu0 %v2373
    %v2375 = vand.u32 %v2184, 4294901760
    %2376 = vmatpush1.msra.mxu0 %v2375
    %v2377 = vand.u32 %v2178, 4294901760
    %2378 = vmatprep.subr.mxu0 %v2377
    %v2379 = vand.u32 %v2177, 4294901760
    %2380 = vmatpush1.msra.mxu0 %v2379
    %v2381 = vand.u32 %v2171, 4294901760
    %2382 = vmatprep.subr.mxu0 %v2381
    %v2383 = vand.u32 %v2170, 4294901760
    %2384 = vmatpush1.msra.mxu0 %v2383
    %2385 = vmatprep.subr.mxu0 0.0
    %2386 = vmatpush2.msra.mxu0 0.0
    %2387 = vmatprep.subr.mxu0 0.0
    %2388 = vmatpush2.msra.mxu0 0.0
    %2389 = vmatprep.subr.mxu0 0.0
    %2390 = vmatpush2.msra.mxu0 0.0
    %2391 = vmatprep.subr.mxu0 0.0
    %2392 = vmatpush2.msra.mxu0 0.0
    %2393 = vmatprep.subr.mxu0 0.0
    %2394 = vmatpush2.msra.mxu0 0.0
    %2395 = vmatprep.subr.mxu0 0.0
    %2396 = vmatpush2.msra.mxu0 0.0
    %2397 = vmatprep.subr.mxu0 0.0
    %2398 = vmatpush2.msra.mxu0 0.0
    %2399 = vmatprep.subr.mxu0 0.0
    %2400 = vmatpush2.msra.mxu0 0.0
    %2401 = vmatprep.subr.mxu0 0.0
    %2402 = vmatpush2.msra.mxu0 0.0
    %2403 = vmatprep.subr.mxu0 0.0
    %2404 = vmatpush2.msra.mxu0 0.0
    %2405 = vmatprep.subr.mxu0 0.0
    %2406 = vmatpush2.msra.mxu0 0.0
    %2407 = vmatprep.subr.mxu0 0.0
    %2408 = vmatpush2.msra.mxu0 0.0
    %2409 = vmatprep.subr.mxu0 0.0
    %2410 = vmatpush2.msra.mxu0 0.0
    %2411 = vmatprep.subr.mxu0 0.0
    %2412 = vmatpush2.msra.mxu0 0.0
    %2413 = vmatprep.subr.mxu0 0.0
    %2414 = vmatpush2.msra.mxu0 0.0
    %2415 = vmatprep.subr.mxu0 0.0
    %2416 = vmatpush2.msra.mxu0 0.0
    %2417 = vmatprep.mubr.f32.mxu0 0.0
    %v2418 = vand.u32 %v2165, 4294901760
    %v2419 = vsub.f32 %v2165, %v2418
    %v2420 = vand.u32 %v2419, 4294901760
    %v2421 = vsub.f32 %v2419, %v2420
    %v2422 = vand.u32 %v2421, 4294901760
    %2423 = vmatmul.mubr.f32.gmra.mxu0 %v2422
    %v2424 = vpop.f32.mrf.mxu0
    %v2425 = vadd.f32 %v2289, %v2424
    %v2426 = vpop.f32.mrf.mxu0
    %v2427 = vadd.f32 %v2293, %v2426
    %2428 = vdwg.mxu0
    %v2429 = vand.u32 %v2276, 4294901760
    %v2430 = vsub.f32 %v2276, %v2429
    %v2431 = vand.u32 %v2430, 4294901760
    %v2432 = vsub.f32 %v2430, %v2431
    %v2433 = vand.u32 %v2432, 4294901760
    %2434 = vmatprep.subr.mxu0 %v2433
    %v2435 = vand.u32 %v2275, 4294901760
    %v2436 = vsub.f32 %v2275, %v2435
    %v2437 = vand.u32 %v2436, 4294901760
    %v2438 = vsub.f32 %v2436, %v2437
    %v2439 = vand.u32 %v2438, 4294901760
    %2440 = vmatpush1.msra.mxu0 %v2439
    %v2441 = vand.u32 %v2269, 4294901760
    %v2442 = vsub.f32 %v2269, %v2441
    %v2443 = vand.u32 %v2442, 4294901760
    %v2444 = vsub.f32 %v2442, %v2443
    %v2445 = vand.u32 %v2444, 4294901760
    %2446 = vmatprep.subr.mxu0 %v2445
    %v2447 = vand.u32 %v2268, 4294901760
    %v2448 = vsub.f32 %v2268, %v2447
    %v2449 = vand.u32 %v2448, 4294901760
    %v2450 = vsub.f32 %v2448, %v2449
    %v2451 = vand.u32 %v2450, 4294901760
    %2452 = vmatpush1.msra.mxu0 %v2451
    %v2453 = vand.u32 %v2262, 4294901760
    %v2454 = vsub.f32 %v2262, %v2453
    %v2455 = vand.u32 %v2454, 4294901760
    %v2456 = vsub.f32 %v2454, %v2455
    %v2457 = vand.u32 %v2456, 4294901760
    %2458 = vmatprep.subr.mxu0 %v2457
    %v2459 = vand.u32 %v2261, 4294901760
    %v2460 = vsub.f32 %v2261, %v2459
    %v2461 = vand.u32 %v2460, 4294901760
    %v2462 = vsub.f32 %v2460, %v2461
    %v2463 = vand.u32 %v2462, 4294901760
    %2464 = vmatpush1.msra.mxu0 %v2463
    %v2465 = vand.u32 %v2255, 4294901760
    %v2466 = vsub.f32 %v2255, %v2465
    %v2467 = vand.u32 %v2466, 4294901760
    %v2468 = vsub.f32 %v2466, %v2467
    %v2469 = vand.u32 %v2468, 4294901760
    %2470 = vmatprep.subr.mxu0 %v2469
    %v2471 = vand.u32 %v2254, 4294901760
    %v2472 = vsub.f32 %v2254, %v2471
    %v2473 = vand.u32 %v2472, 4294901760
    %v2474 = vsub.f32 %v2472, %v2473
    %v2475 = vand.u32 %v2474, 4294901760
    %2476 = vmatpush1.msra.mxu0 %v2475
    %v2477 = vand.u32 %v2248, 4294901760
    %v2478 = vsub.f32 %v2248, %v2477
    %v2479 = vand.u32 %v2478, 4294901760
    %v2480 = vsub.f32 %v2478, %v2479
    %v2481 = vand.u32 %v2480, 4294901760
    %2482 = vmatprep.subr.mxu0 %v2481
    %v2483 = vand.u32 %v2247, 4294901760
    %v2484 = vsub.f32 %v2247, %v2483
    %v2485 = vand.u32 %v2484, 4294901760
    %v2486 = vsub.f32 %v2484, %v2485
    %v2487 = vand.u32 %v2486, 4294901760
    %2488 = vmatpush1.msra.mxu0 %v2487
    %v2489 = vand.u32 %v2241, 4294901760
    %v2490 = vsub.f32 %v2241, %v2489
    %v2491 = vand.u32 %v2490, 4294901760
    %v2492 = vsub.f32 %v2490, %v2491
    %v2493 = vand.u32 %v2492, 4294901760
    %2494 = vmatprep.subr.mxu0 %v2493
    %v2495 = vand.u32 %v2240, 4294901760
    %v2496 = vsub.f32 %v2240, %v2495
    %v2497 = vand.u32 %v2496, 4294901760
    %v2498 = vsub.f32 %v2496, %v2497
    %v2499 = vand.u32 %v2498, 4294901760
    %2500 = vmatpush1.msra.mxu0 %v2499
    %v2501 = vand.u32 %v2234, 4294901760
    %v2502 = vsub.f32 %v2234, %v2501
    %v2503 = vand.u32 %v2502, 4294901760
    %v2504 = vsub.f32 %v2502, %v2503
    %v2505 = vand.u32 %v2504, 4294901760
    %2506 = vmatprep.subr.mxu0 %v2505
    %v2507 = vand.u32 %v2233, 4294901760
    %v2508 = vsub.f32 %v2233, %v2507
    %v2509 = vand.u32 %v2508, 4294901760
    %v2510 = vsub.f32 %v2508, %v2509
    %v2511 = vand.u32 %v2510, 4294901760
    %2512 = vmatpush1.msra.mxu0 %v2511
    %v2513 = vand.u32 %v2227, 4294901760
    %v2514 = vsub.f32 %v2227, %v2513
    %v2515 = vand.u32 %v2514, 4294901760
    %v2516 = vsub.f32 %v2514, %v2515
    %v2517 = vand.u32 %v2516, 4294901760
    %2518 = vmatprep.subr.mxu0 %v2517
    %v2519 = vand.u32 %v2226, 4294901760
    %v2520 = vsub.f32 %v2226, %v2519
    %v2521 = vand.u32 %v2520, 4294901760
    %v2522 = vsub.f32 %v2520, %v2521
    %v2523 = vand.u32 %v2522, 4294901760
    %2524 = vmatpush1.msra.mxu0 %v2523
    %v2525 = vand.u32 %v2220, 4294901760
    %v2526 = vsub.f32 %v2220, %v2525
    %v2527 = vand.u32 %v2526, 4294901760
    %v2528 = vsub.f32 %v2526, %v2527
    %v2529 = vand.u32 %v2528, 4294901760
    %2530 = vmatprep.subr.mxu0 %v2529
    %v2531 = vand.u32 %v2219, 4294901760
    %v2532 = vsub.f32 %v2219, %v2531
    %v2533 = vand.u32 %v2532, 4294901760
    %v2534 = vsub.f32 %v2532, %v2533
    %v2535 = vand.u32 %v2534, 4294901760
    %2536 = vmatpush1.msra.mxu0 %v2535
    %v2537 = vand.u32 %v2213, 4294901760
    %v2538 = vsub.f32 %v2213, %v2537
    %v2539 = vand.u32 %v2538, 4294901760
    %v2540 = vsub.f32 %v2538, %v2539
    %v2541 = vand.u32 %v2540, 4294901760
    %2542 = vmatprep.subr.mxu0 %v2541
    %v2543 = vand.u32 %v2212, 4294901760
    %v2544 = vsub.f32 %v2212, %v2543
    %v2545 = vand.u32 %v2544, 4294901760
    %v2546 = vsub.f32 %v2544, %v2545
    %v2547 = vand.u32 %v2546, 4294901760
    %2548 = vmatpush1.msra.mxu0 %v2547
    %v2549 = vand.u32 %v2206, 4294901760
    %v2550 = vsub.f32 %v2206, %v2549
    %v2551 = vand.u32 %v2550, 4294901760
    %v2552 = vsub.f32 %v2550, %v2551
    %v2553 = vand.u32 %v2552, 4294901760
    %2554 = vmatprep.subr.mxu0 %v2553
    %v2555 = vand.u32 %v2205, 4294901760
    %v2556 = vsub.f32 %v2205, %v2555
    %v2557 = vand.u32 %v2556, 4294901760
    %v2558 = vsub.f32 %v2556, %v2557
    %v2559 = vand.u32 %v2558, 4294901760
    %2560 = vmatpush1.msra.mxu0 %v2559
    %v2561 = vand.u32 %v2199, 4294901760
    %v2562 = vsub.f32 %v2199, %v2561
    %v2563 = vand.u32 %v2562, 4294901760
    %v2564 = vsub.f32 %v2562, %v2563
    %v2565 = vand.u32 %v2564, 4294901760
    %2566 = vmatprep.subr.mxu0 %v2565
    %v2567 = vand.u32 %v2198, 4294901760
    %v2568 = vsub.f32 %v2198, %v2567
    %v2569 = vand.u32 %v2568, 4294901760
    %v2570 = vsub.f32 %v2568, %v2569
    %v2571 = vand.u32 %v2570, 4294901760
    %2572 = vmatpush1.msra.mxu0 %v2571
    %v2573 = vand.u32 %v2192, 4294901760
    %v2574 = vsub.f32 %v2192, %v2573
    %v2575 = vand.u32 %v2574, 4294901760
    %v2576 = vsub.f32 %v2574, %v2575
    %v2577 = vand.u32 %v2576, 4294901760
    %2578 = vmatprep.subr.mxu0 %v2577
    %v2579 = vand.u32 %v2191, 4294901760
    %v2580 = vsub.f32 %v2191, %v2579
    %v2581 = vand.u32 %v2580, 4294901760
    %v2582 = vsub.f32 %v2580, %v2581
    %v2583 = vand.u32 %v2582, 4294901760
    %2584 = vmatpush1.msra.mxu0 %v2583
    %v2585 = vand.u32 %v2185, 4294901760
    %v2586 = vsub.f32 %v2185, %v2585
    %v2587 = vand.u32 %v2586, 4294901760
    %v2588 = vsub.f32 %v2586, %v2587
    %v2589 = vand.u32 %v2588, 4294901760
    %2590 = vmatprep.subr.mxu0 %v2589
    %v2591 = vand.u32 %v2184, 4294901760
    %v2592 = vsub.f32 %v2184, %v2591
    %v2593 = vand.u32 %v2592, 4294901760
    %v2594 = vsub.f32 %v2592, %v2593
    %v2595 = vand.u32 %v2594, 4294901760
    %2596 = vmatpush1.msra.mxu0 %v2595
    %v2597 = vand.u32 %v2178, 4294901760
    %v2598 = vsub.f32 %v2178, %v2597
    %v2599 = vand.u32 %v2598, 4294901760
    %v2600 = vsub.f32 %v2598, %v2599
    %v2601 = vand.u32 %v2600, 4294901760
    %2602 = vmatprep.subr.mxu0 %v2601
    %v2603 = vand.u32 %v2177, 4294901760
    %v2604 = vsub.f32 %v2177, %v2603
    %v2605 = vand.u32 %v2604, 4294901760
    %v2606 = vsub.f32 %v2604, %v2605
    %v2607 = vand.u32 %v2606, 4294901760
    %2608 = vmatpush1.msra.mxu0 %v2607
    %v2609 = vand.u32 %v2171, 4294901760
    %v2610 = vsub.f32 %v2171, %v2609
    %v2611 = vand.u32 %v2610, 4294901760
    %v2612 = vsub.f32 %v2610, %v2611
    %v2613 = vand.u32 %v2612, 4294901760
    %2614 = vmatprep.subr.mxu0 %v2613
    %v2615 = vand.u32 %v2170, 4294901760
    %v2616 = vsub.f32 %v2170, %v2615
    %v2617 = vand.u32 %v2616, 4294901760
    %v2618 = vsub.f32 %v2616, %v2617
    %v2619 = vand.u32 %v2618, 4294901760
    %2620 = vmatpush1.msra.mxu0 %v2619
    %2621 = vmatprep.subr.mxu0 0.0
    %2622 = vmatpush2.msra.mxu0 0.0
    %2623 = vmatprep.subr.mxu0 0.0
    %2624 = vmatpush2.msra.mxu0 0.0
    %2625 = vmatprep.subr.mxu0 0.0
    %2626 = vmatpush2.msra.mxu0 0.0
    %2627 = vmatprep.subr.mxu0 0.0
    %2628 = vmatpush2.msra.mxu0 0.0
    %2629 = vmatprep.subr.mxu0 0.0
    %2630 = vmatpush2.msra.mxu0 0.0
    %2631 = vmatprep.subr.mxu0 0.0
    %2632 = vmatpush2.msra.mxu0 0.0
    %2633 = vmatprep.subr.mxu0 0.0
    %2634 = vmatpush2.msra.mxu0 0.0
    %2635 = vmatprep.subr.mxu0 0.0
    %2636 = vmatpush2.msra.mxu0 0.0
    %2637 = vmatprep.subr.mxu0 0.0
    %2638 = vmatpush2.msra.mxu0 0.0
    %2639 = vmatprep.subr.mxu0 0.0
    %2640 = vmatpush2.msra.mxu0 0.0
    %2641 = vmatprep.subr.mxu0 0.0
    %2642 = vmatpush2.msra.mxu0 0.0
    %2643 = vmatprep.subr.mxu0 0.0
    %2644 = vmatpush2.msra.mxu0 0.0
    %2645 = vmatprep.subr.mxu0 0.0
    %2646 = vmatpush2.msra.mxu0 0.0
    %2647 = vmatprep.subr.mxu0 0.0
    %2648 = vmatpush2.msra.mxu0 0.0
    %2649 = vmatprep.subr.mxu0 0.0
    %2650 = vmatpush2.msra.mxu0 0.0
    %2651 = vmatprep.subr.mxu0 0.0
    %2652 = vmatpush2.msra.mxu0 0.0
    %2653 = vmatprep.mubr.f32.mxu0 0.0
    %v2654 = vand.u32 %v2165, 4294901760
    %2655 = vmatmul.mubr.f32.gmra.mxu0 %v2654
    %v2656 = vpop.f32.mrf.mxu0
    %v2657 = vadd.f32 %v2425, %v2656
    %v2658 = vpop.f32.mrf.mxu0
    %v2659 = vadd.f32 %v2427, %v2658
    %2660 = vdwg.mxu0
    %v2661 = vand.u32 %v2276, 4294901760
    %v2662 = vsub.f32 %v2276, %v2661
    %2663 = vmatprep.subr.mxu0 %v2662
    %v2664 = vand.u32 %v2275, 4294901760
    %v2665 = vsub.f32 %v2275, %v2664
    %2666 = vmatpush1.msra.mxu0 %v2665
    %v2667 = vand.u32 %v2269, 4294901760
    %v2668 = vsub.f32 %v2269, %v2667
    %2669 = vmatprep.subr.mxu0 %v2668
    %v2670 = vand.u32 %v2268, 4294901760
    %v2671 = vsub.f32 %v2268, %v2670
    %2672 = vmatpush1.msra.mxu0 %v2671
    %v2673 = vand.u32 %v2262, 4294901760
    %v2674 = vsub.f32 %v2262, %v2673
    %2675 = vmatprep.subr.mxu0 %v2674
    %v2676 = vand.u32 %v2261, 4294901760
    %v2677 = vsub.f32 %v2261, %v2676
    %2678 = vmatpush1.msra.mxu0 %v2677
    %v2679 = vand.u32 %v2255, 4294901760
    %v2680 = vsub.f32 %v2255, %v2679
    %2681 = vmatprep.subr.mxu0 %v2680
    %v2682 = vand.u32 %v2254, 4294901760
    %v2683 = vsub.f32 %v2254, %v2682
    %2684 = vmatpush1.msra.mxu0 %v2683
    %v2685 = vand.u32 %v2248, 4294901760
    %v2686 = vsub.f32 %v2248, %v2685
    %2687 = vmatprep.subr.mxu0 %v2686
    %v2688 = vand.u32 %v2247, 4294901760
    %v2689 = vsub.f32 %v2247, %v2688
    %2690 = vmatpush1.msra.mxu0 %v2689
    %v2691 = vand.u32 %v2241, 4294901760
    %v2692 = vsub.f32 %v2241, %v2691
    %2693 = vmatprep.subr.mxu0 %v2692
    %v2694 = vand.u32 %v2240, 4294901760
    %v2695 = vsub.f32 %v2240, %v2694
    %2696 = vmatpush1.msra.mxu0 %v2695
    %v2697 = vand.u32 %v2234, 4294901760
    %v2698 = vsub.f32 %v2234, %v2697
    %2699 = vmatprep.subr.mxu0 %v2698
    %v2700 = vand.u32 %v2233, 4294901760
    %v2701 = vsub.f32 %v2233, %v2700
    %2702 = vmatpush1.msra.mxu0 %v2701
    %v2703 = vand.u32 %v2227, 4294901760
    %v2704 = vsub.f32 %v2227, %v2703
    %2705 = vmatprep.subr.mxu0 %v2704
    %v2706 = vand.u32 %v2226, 4294901760
    %v2707 = vsub.f32 %v2226, %v2706
    %2708 = vmatpush1.msra.mxu0 %v2707
    %v2709 = vand.u32 %v2220, 4294901760
    %v2710 = vsub.f32 %v2220, %v2709
    %2711 = vmatprep.subr.mxu0 %v2710
    %v2712 = vand.u32 %v2219, 4294901760
    %v2713 = vsub.f32 %v2219, %v2712
    %2714 = vmatpush1.msra.mxu0 %v2713
    %v2715 = vand.u32 %v2213, 4294901760
    %v2716 = vsub.f32 %v2213, %v2715
    %2717 = vmatprep.subr.mxu0 %v2716
    %v2718 = vand.u32 %v2212, 4294901760
    %v2719 = vsub.f32 %v2212, %v2718
    %2720 = vmatpush1.msra.mxu0 %v2719
    %v2721 = vand.u32 %v2206, 4294901760
    %v2722 = vsub.f32 %v2206, %v2721
    %2723 = vmatprep.subr.mxu0 %v2722
    %v2724 = vand.u32 %v2205, 4294901760
    %v2725 = vsub.f32 %v2205, %v2724
    %2726 = vmatpush1.msra.mxu0 %v2725
    %v2727 = vand.u32 %v2199, 4294901760
    %v2728 = vsub.f32 %v2199, %v2727
    %2729 = vmatprep.subr.mxu0 %v2728
    %v2730 = vand.u32 %v2198, 4294901760
    %v2731 = vsub.f32 %v2198, %v2730
    %2732 = vmatpush1.msra.mxu0 %v2731
    %v2733 = vand.u32 %v2192, 4294901760
    %v2734 = vsub.f32 %v2192, %v2733
    %2735 = vmatprep.subr.mxu0 %v2734
    %v2736 = vand.u32 %v2191, 4294901760
    %v2737 = vsub.f32 %v2191, %v2736
    %2738 = vmatpush1.msra.mxu0 %v2737
    %v2739 = vand.u32 %v2185, 4294901760
    %v2740 = vsub.f32 %v2185, %v2739
    %2741 = vmatprep.subr.mxu0 %v2740
    %v2742 = vand.u32 %v2184, 4294901760
    %v2743 = vsub.f32 %v2184, %v2742
    %2744 = vmatpush1.msra.mxu0 %v2743
    %v2745 = vand.u32 %v2178, 4294901760
    %v2746 = vsub.f32 %v2178, %v2745
    %2747 = vmatprep.subr.mxu0 %v2746
    %v2748 = vand.u32 %v2177, 4294901760
    %v2749 = vsub.f32 %v2177, %v2748
    %2750 = vmatpush1.msra.mxu0 %v2749
    %v2751 = vand.u32 %v2171, 4294901760
    %v2752 = vsub.f32 %v2171, %v2751
    %2753 = vmatprep.subr.mxu0 %v2752
    %v2754 = vand.u32 %v2170, 4294901760
    %v2755 = vsub.f32 %v2170, %v2754
    %2756 = vmatpush1.msra.mxu0 %v2755
    %2757 = vmatprep.subr.mxu0 0.0
    %2758 = vmatpush2.msra.mxu0 0.0
    %2759 = vmatprep.subr.mxu0 0.0
    %2760 = vmatpush2.msra.mxu0 0.0
    %2761 = vmatprep.subr.mxu0 0.0
    %2762 = vmatpush2.msra.mxu0 0.0
    %2763 = vmatprep.subr.mxu0 0.0
    %2764 = vmatpush2.msra.mxu0 0.0
    %2765 = vmatprep.subr.mxu0 0.0
    %2766 = vmatpush2.msra.mxu0 0.0
    %2767 = vmatprep.subr.mxu0 0.0
    %2768 = vmatpush2.msra.mxu0 0.0
    %2769 = vmatprep.subr.mxu0 0.0
    %2770 = vmatpush2.msra.mxu0 0.0
    %2771 = vmatprep.subr.mxu0 0.0
    %2772 = vmatpush2.msra.mxu0 0.0
    %2773 = vmatprep.subr.mxu0 0.0
    %2774 = vmatpush2.msra.mxu0 0.0
    %2775 = vmatprep.subr.mxu0 0.0
    %2776 = vmatpush2.msra.mxu0 0.0
    %2777 = vmatprep.subr.mxu0 0.0
    %2778 = vmatpush2.msra.mxu0 0.0
    %2779 = vmatprep.subr.mxu0 0.0
    %2780 = vmatpush2.msra.mxu0 0.0
    %2781 = vmatprep.subr.mxu0 0.0
    %2782 = vmatpush2.msra.mxu0 0.0
    %2783 = vmatprep.subr.mxu0 0.0
    %2784 = vmatpush2.msra.mxu0 0.0
    %2785 = vmatprep.subr.mxu0 0.0
    %2786 = vmatpush2.msra.mxu0 0.0
    %2787 = vmatprep.subr.mxu0 0.0
    %2788 = vmatpush2.msra.mxu0 0.0
    %2789 = vmatprep.mubr.f32.mxu0 0.0
    %v2790 = vand.u32 %v2165, 4294901760
    %v2791 = vsub.f32 %v2165, %v2790
    %2792 = vmatmul.mubr.f32.gmra.mxu0 %v2791
    %v2793 = vpop.f32.mrf.mxu0
    %v2794 = vadd.f32 %v2657, %v2793
    %v2795 = vpop.f32.mrf.mxu0
    %v2796 = vadd.f32 %v2659, %v2795
    %2797 = vdwg.mxu0
    %v2798 = vand.u32 %v2276, 4294901760
    %2799 = vmatprep.subr.mxu0 %v2798
    %v2800 = vand.u32 %v2275, 4294901760
    %2801 = vmatpush1.msra.mxu0 %v2800
    %v2802 = vand.u32 %v2269, 4294901760
    %2803 = vmatprep.subr.mxu0 %v2802
    %v2804 = vand.u32 %v2268, 4294901760
    %2805 = vmatpush1.msra.mxu0 %v2804
    %v2806 = vand.u32 %v2262, 4294901760
    %2807 = vmatprep.subr.mxu0 %v2806
    %v2808 = vand.u32 %v2261, 4294901760
    %2809 = vmatpush1.msra.mxu0 %v2808
    %v2810 = vand.u32 %v2255, 4294901760
    %2811 = vmatprep.subr.mxu0 %v2810
    %v2812 = vand.u32 %v2254, 4294901760
    %2813 = vmatpush1.msra.mxu0 %v2812
    %v2814 = vand.u32 %v2248, 4294901760
    %2815 = vmatprep.subr.mxu0 %v2814
    %v2816 = vand.u32 %v2247, 4294901760
    %2817 = vmatpush1.msra.mxu0 %v2816
    %v2818 = vand.u32 %v2241, 4294901760
    %2819 = vmatprep.subr.mxu0 %v2818
    %v2820 = vand.u32 %v2240, 4294901760
    %2821 = vmatpush1.msra.mxu0 %v2820
    %v2822 = vand.u32 %v2234, 4294901760
    %2823 = vmatprep.subr.mxu0 %v2822
    %v2824 = vand.u32 %v2233, 4294901760
    %2825 = vmatpush1.msra.mxu0 %v2824
    %v2826 = vand.u32 %v2227, 4294901760
    %2827 = vmatprep.subr.mxu0 %v2826
    %v2828 = vand.u32 %v2226, 4294901760
    %2829 = vmatpush1.msra.mxu0 %v2828
    %v2830 = vand.u32 %v2220, 4294901760
    %2831 = vmatprep.subr.mxu0 %v2830
    %v2832 = vand.u32 %v2219, 4294901760
    %2833 = vmatpush1.msra.mxu0 %v2832
    %v2834 = vand.u32 %v2213, 4294901760
    %2835 = vmatprep.subr.mxu0 %v2834
    %v2836 = vand.u32 %v2212, 4294901760
    %2837 = vmatpush1.msra.mxu0 %v2836
    %v2838 = vand.u32 %v2206, 4294901760
    %2839 = vmatprep.subr.mxu0 %v2838
    %v2840 = vand.u32 %v2205, 4294901760
    %2841 = vmatpush1.msra.mxu0 %v2840
    %v2842 = vand.u32 %v2199, 4294901760
    %2843 = vmatprep.subr.mxu0 %v2842
    %v2844 = vand.u32 %v2198, 4294901760
    %2845 = vmatpush1.msra.mxu0 %v2844
    %v2846 = vand.u32 %v2192, 4294901760
    %2847 = vmatprep.subr.mxu0 %v2846
    %v2848 = vand.u32 %v2191, 4294901760
    %2849 = vmatpush1.msra.mxu0 %v2848
    %v2850 = vand.u32 %v2185, 4294901760
    %2851 = vmatprep.subr.mxu0 %v2850
    %v2852 = vand.u32 %v2184, 4294901760
    %2853 = vmatpush1.msra.mxu0 %v2852
    %v2854 = vand.u32 %v2178, 4294901760
    %2855 = vmatprep.subr.mxu0 %v2854
    %v2856 = vand.u32 %v2177, 4294901760
    %2857 = vmatpush1.msra.mxu0 %v2856
    %v2858 = vand.u32 %v2171, 4294901760
    %2859 = vmatprep.subr.mxu0 %v2858
    %v2860 = vand.u32 %v2170, 4294901760
    %2861 = vmatpush1.msra.mxu0 %v2860
    %2862 = vmatprep.subr.mxu0 0.0
    %2863 = vmatpush2.msra.mxu0 0.0
    %2864 = vmatprep.subr.mxu0 0.0
    %2865 = vmatpush2.msra.mxu0 0.0
    %2866 = vmatprep.subr.mxu0 0.0
    %2867 = vmatpush2.msra.mxu0 0.0
    %2868 = vmatprep.subr.mxu0 0.0
    %2869 = vmatpush2.msra.mxu0 0.0
    %2870 = vmatprep.subr.mxu0 0.0
    %2871 = vmatpush2.msra.mxu0 0.0
    %2872 = vmatprep.subr.mxu0 0.0
    %2873 = vmatpush2.msra.mxu0 0.0
    %2874 = vmatprep.subr.mxu0 0.0
    %2875 = vmatpush2.msra.mxu0 0.0
    %2876 = vmatprep.subr.mxu0 0.0
    %2877 = vmatpush2.msra.mxu0 0.0
    %2878 = vmatprep.subr.mxu0 0.0
    %2879 = vmatpush2.msra.mxu0 0.0
    %2880 = vmatprep.subr.mxu0 0.0
    %2881 = vmatpush2.msra.mxu0 0.0
    %2882 = vmatprep.subr.mxu0 0.0
    %2883 = vmatpush2.msra.mxu0 0.0
    %2884 = vmatprep.subr.mxu0 0.0
    %2885 = vmatpush2.msra.mxu0 0.0
    %2886 = vmatprep.subr.mxu0 0.0
    %2887 = vmatpush2.msra.mxu0 0.0
    %2888 = vmatprep.subr.mxu0 0.0
    %2889 = vmatpush2.msra.mxu0 0.0
    %2890 = vmatprep.subr.mxu0 0.0
    %2891 = vmatpush2.msra.mxu0 0.0
    %2892 = vmatprep.subr.mxu0 0.0
    %2893 = vmatpush2.msra.mxu0 0.0
    %2894 = vmatprep.mubr.f32.mxu0 0.0
    %v2895 = vand.u32 %v2165, 4294901760
    %v2896 = vsub.f32 %v2165, %v2895
    %v2897 = vand.u32 %v2896, 4294901760
    %2898 = vmatmul.mubr.f32.gmra.mxu0 %v2897
    %v2899 = vpop.f32.mrf.mxu0
    %v2900 = vadd.f32 %v2794, %v2899
    %v2901 = vpop.f32.mrf.mxu0
    %v2902 = vadd.f32 %v2796, %v2901
    %2903 = vdwg.mxu0
    %v2904 = vand.u32 %v2276, 4294901760
    %v2905 = vsub.f32 %v2276, %v2904
    %v2906 = vand.u32 %v2905, 4294901760
    %2907 = vmatprep.subr.mxu0 %v2906
    %v2908 = vand.u32 %v2275, 4294901760
    %v2909 = vsub.f32 %v2275, %v2908
    %v2910 = vand.u32 %v2909, 4294901760
    %2911 = vmatpush1.msra.mxu0 %v2910
    %v2912 = vand.u32 %v2269, 4294901760
    %v2913 = vsub.f32 %v2269, %v2912
    %v2914 = vand.u32 %v2913, 4294901760
    %2915 = vmatprep.subr.mxu0 %v2914
    %v2916 = vand.u32 %v2268, 4294901760
    %v2917 = vsub.f32 %v2268, %v2916
    %v2918 = vand.u32 %v2917, 4294901760
    %2919 = vmatpush1.msra.mxu0 %v2918
    %v2920 = vand.u32 %v2262, 4294901760
    %v2921 = vsub.f32 %v2262, %v2920
    %v2922 = vand.u32 %v2921, 4294901760
    %2923 = vmatprep.subr.mxu0 %v2922
    %v2924 = vand.u32 %v2261, 4294901760
    %v2925 = vsub.f32 %v2261, %v2924
    %v2926 = vand.u32 %v2925, 4294901760
    %2927 = vmatpush1.msra.mxu0 %v2926
    %v2928 = vand.u32 %v2255, 4294901760
    %v2929 = vsub.f32 %v2255, %v2928
    %v2930 = vand.u32 %v2929, 4294901760
    %2931 = vmatprep.subr.mxu0 %v2930
    %v2932 = vand.u32 %v2254, 4294901760
    %v2933 = vsub.f32 %v2254, %v2932
    %v2934 = vand.u32 %v2933, 4294901760
    %2935 = vmatpush1.msra.mxu0 %v2934
    %v2936 = vand.u32 %v2248, 4294901760
    %v2937 = vsub.f32 %v2248, %v2936
    %v2938 = vand.u32 %v2937, 4294901760
    %2939 = vmatprep.subr.mxu0 %v2938
    %v2940 = vand.u32 %v2247, 4294901760
    %v2941 = vsub.f32 %v2247, %v2940
    %v2942 = vand.u32 %v2941, 4294901760
    %2943 = vmatpush1.msra.mxu0 %v2942
    %v2944 = vand.u32 %v2241, 4294901760
    %v2945 = vsub.f32 %v2241, %v2944
    %v2946 = vand.u32 %v2945, 4294901760
    %2947 = vmatprep.subr.mxu0 %v2946
    %v2948 = vand.u32 %v2240, 4294901760
    %v2949 = vsub.f32 %v2240, %v2948
    %v2950 = vand.u32 %v2949, 4294901760
    %2951 = vmatpush1.msra.mxu0 %v2950
    %v2952 = vand.u32 %v2234, 4294901760
    %v2953 = vsub.f32 %v2234, %v2952
    %v2954 = vand.u32 %v2953, 4294901760
    %2955 = vmatprep.subr.mxu0 %v2954
    %v2956 = vand.u32 %v2233, 4294901760
    %v2957 = vsub.f32 %v2233, %v2956
    %v2958 = vand.u32 %v2957, 4294901760
    %2959 = vmatpush1.msra.mxu0 %v2958
    %v2960 = vand.u32 %v2227, 4294901760
    %v2961 = vsub.f32 %v2227, %v2960
    %v2962 = vand.u32 %v2961, 4294901760
    %2963 = vmatprep.subr.mxu0 %v2962
    %v2964 = vand.u32 %v2226, 4294901760
    %v2965 = vsub.f32 %v2226, %v2964
    %v2966 = vand.u32 %v2965, 4294901760
    %2967 = vmatpush1.msra.mxu0 %v2966
    %v2968 = vand.u32 %v2220, 4294901760
    %v2969 = vsub.f32 %v2220, %v2968
    %v2970 = vand.u32 %v2969, 4294901760
    %2971 = vmatprep.subr.mxu0 %v2970
    %v2972 = vand.u32 %v2219, 4294901760
    %v2973 = vsub.f32 %v2219, %v2972
    %v2974 = vand.u32 %v2973, 4294901760
    %2975 = vmatpush1.msra.mxu0 %v2974
    %v2976 = vand.u32 %v2213, 4294901760
    %v2977 = vsub.f32 %v2213, %v2976
    %v2978 = vand.u32 %v2977, 4294901760
    %2979 = vmatprep.subr.mxu0 %v2978
    %v2980 = vand.u32 %v2212, 4294901760
    %v2981 = vsub.f32 %v2212, %v2980
    %v2982 = vand.u32 %v2981, 4294901760
    %2983 = vmatpush1.msra.mxu0 %v2982
    %v2984 = vand.u32 %v2206, 4294901760
    %v2985 = vsub.f32 %v2206, %v2984
    %v2986 = vand.u32 %v2985, 4294901760
    %2987 = vmatprep.subr.mxu0 %v2986
    %v2988 = vand.u32 %v2205, 4294901760
    %v2989 = vsub.f32 %v2205, %v2988
    %v2990 = vand.u32 %v2989, 4294901760
    %2991 = vmatpush1.msra.mxu0 %v2990
    %v2992 = vand.u32 %v2199, 4294901760
    %v2993 = vsub.f32 %v2199, %v2992
    %v2994 = vand.u32 %v2993, 4294901760
    %2995 = vmatprep.subr.mxu0 %v2994
    %v2996 = vand.u32 %v2198, 4294901760
    %v2997 = vsub.f32 %v2198, %v2996
    %v2998 = vand.u32 %v2997, 4294901760
    %2999 = vmatpush1.msra.mxu0 %v2998
    %v3000 = vand.u32 %v2192, 4294901760
    %v3001 = vsub.f32 %v2192, %v3000
    %v3002 = vand.u32 %v3001, 4294901760
    %3003 = vmatprep.subr.mxu0 %v3002
    %v3004 = vand.u32 %v2191, 4294901760
    %v3005 = vsub.f32 %v2191, %v3004
    %v3006 = vand.u32 %v3005, 4294901760
    %3007 = vmatpush1.msra.mxu0 %v3006
    %v3008 = vand.u32 %v2185, 4294901760
    %v3009 = vsub.f32 %v2185, %v3008
    %v3010 = vand.u32 %v3009, 4294901760
    %3011 = vmatprep.subr.mxu0 %v3010
    %v3012 = vand.u32 %v2184, 4294901760
    %v3013 = vsub.f32 %v2184, %v3012
    %v3014 = vand.u32 %v3013, 4294901760
    %3015 = vmatpush1.msra.mxu0 %v3014
    %v3016 = vand.u32 %v2178, 4294901760
    %v3017 = vsub.f32 %v2178, %v3016
    %v3018 = vand.u32 %v3017, 4294901760
    %3019 = vmatprep.subr.mxu0 %v3018
    %v3020 = vand.u32 %v2177, 4294901760
    %v3021 = vsub.f32 %v2177, %v3020
    %v3022 = vand.u32 %v3021, 4294901760
    %3023 = vmatpush1.msra.mxu0 %v3022
    %v3024 = vand.u32 %v2171, 4294901760
    %v3025 = vsub.f32 %v2171, %v3024
    %v3026 = vand.u32 %v3025, 4294901760
    %3027 = vmatprep.subr.mxu0 %v3026
    %v3028 = vand.u32 %v2170, 4294901760
    %v3029 = vsub.f32 %v2170, %v3028
    %v3030 = vand.u32 %v3029, 4294901760
    %3031 = vmatpush1.msra.mxu0 %v3030
    %3032 = vmatprep.subr.mxu0 0.0
    %3033 = vmatpush2.msra.mxu0 0.0
    %3034 = vmatprep.subr.mxu0 0.0
    %3035 = vmatpush2.msra.mxu0 0.0
    %3036 = vmatprep.subr.mxu0 0.0
    %3037 = vmatpush2.msra.mxu0 0.0
    %3038 = vmatprep.subr.mxu0 0.0
    %3039 = vmatpush2.msra.mxu0 0.0
    %3040 = vmatprep.subr.mxu0 0.0
    %3041 = vmatpush2.msra.mxu0 0.0
    %3042 = vmatprep.subr.mxu0 0.0
    %3043 = vmatpush2.msra.mxu0 0.0
    %3044 = vmatprep.subr.mxu0 0.0
    %3045 = vmatpush2.msra.mxu0 0.0
    %3046 = vmatprep.subr.mxu0 0.0
    %3047 = vmatpush2.msra.mxu0 0.0
    %3048 = vmatprep.subr.mxu0 0.0
    %3049 = vmatpush2.msra.mxu0 0.0
    %3050 = vmatprep.subr.mxu0 0.0
    %3051 = vmatpush2.msra.mxu0 0.0
    %3052 = vmatprep.subr.mxu0 0.0
    %3053 = vmatpush2.msra.mxu0 0.0
    %3054 = vmatprep.subr.mxu0 0.0
    %3055 = vmatpush2.msra.mxu0 0.0
    %3056 = vmatprep.subr.mxu0 0.0
    %3057 = vmatpush2.msra.mxu0 0.0
    %3058 = vmatprep.subr.mxu0 0.0
    %3059 = vmatpush2.msra.mxu0 0.0
    %3060 = vmatprep.subr.mxu0 0.0
    %3061 = vmatpush2.msra.mxu0 0.0
    %3062 = vmatprep.subr.mxu0 0.0
    %3063 = vmatpush2.msra.mxu0 0.0
    %3064 = vmatprep.mubr.f32.mxu0 0.0
    %v3065 = vand.u32 %v2165, 4294901760
    %3066 = vmatmul.mubr.f32.gmra.mxu0 %v3065
    %v3067 = vpop.f32.mrf.mxu0
    %v3068 = vadd.f32 %v2900, %v3067
    %v3069 = vpop.f32.mrf.mxu0
    %v3070 = vadd.f32 %v2902, %v3069
    %3071 = vdwg.mxu0
    %v3072 = vand.u32 %v2276, 4294901760
    %3073 = vmatprep.subr.mxu0 %v3072
    %v3074 = vand.u32 %v2275, 4294901760
    %3075 = vmatpush1.msra.mxu0 %v3074
    %v3076 = vand.u32 %v2269, 4294901760
    %3077 = vmatprep.subr.mxu0 %v3076
    %v3078 = vand.u32 %v2268, 4294901760
    %3079 = vmatpush1.msra.mxu0 %v3078
    %v3080 = vand.u32 %v2262, 4294901760
    %3081 = vmatprep.subr.mxu0 %v3080
    %v3082 = vand.u32 %v2261, 4294901760
    %3083 = vmatpush1.msra.mxu0 %v3082
    %v3084 = vand.u32 %v2255, 4294901760
    %3085 = vmatprep.subr.mxu0 %v3084
    %v3086 = vand.u32 %v2254, 4294901760
    %3087 = vmatpush1.msra.mxu0 %v3086
    %v3088 = vand.u32 %v2248, 4294901760
    %3089 = vmatprep.subr.mxu0 %v3088
    %v3090 = vand.u32 %v2247, 4294901760
    %3091 = vmatpush1.msra.mxu0 %v3090
    %v3092 = vand.u32 %v2241, 4294901760
    %3093 = vmatprep.subr.mxu0 %v3092
    %v3094 = vand.u32 %v2240, 4294901760
    %3095 = vmatpush1.msra.mxu0 %v3094
    %v3096 = vand.u32 %v2234, 4294901760
    %3097 = vmatprep.subr.mxu0 %v3096
    %v3098 = vand.u32 %v2233, 4294901760
    %3099 = vmatpush1.msra.mxu0 %v3098
    %v3100 = vand.u32 %v2227, 4294901760
    %3101 = vmatprep.subr.mxu0 %v3100
    %v3102 = vand.u32 %v2226, 4294901760
    %3103 = vmatpush1.msra.mxu0 %v3102
    %v3104 = vand.u32 %v2220, 4294901760
    %3105 = vmatprep.subr.mxu0 %v3104
    %v3106 = vand.u32 %v2219, 4294901760
    %3107 = vmatpush1.msra.mxu0 %v3106
    %v3108 = vand.u32 %v2213, 4294901760
    %3109 = vmatprep.subr.mxu0 %v3108
    %v3110 = vand.u32 %v2212, 4294901760
    %3111 = vmatpush1.msra.mxu0 %v3110
    %v3112 = vand.u32 %v2206, 4294901760
    %3113 = vmatprep.subr.mxu0 %v3112
    %v3114 = vand.u32 %v2205, 4294901760
    %3115 = vmatpush1.msra.mxu0 %v3114
    %v3116 = vand.u32 %v2199, 4294901760
    %3117 = vmatprep.subr.mxu0 %v3116
    %v3118 = vand.u32 %v2198, 4294901760
    %3119 = vmatpush1.msra.mxu0 %v3118
    %v3120 = vand.u32 %v2192, 4294901760
    %3121 = vmatprep.subr.mxu0 %v3120
    %v3122 = vand.u32 %v2191, 4294901760
    %3123 = vmatpush1.msra.mxu0 %v3122
    %v3124 = vand.u32 %v2185, 4294901760
    %3125 = vmatprep.subr.mxu0 %v3124
    %v3126 = vand.u32 %v2184, 4294901760
    %3127 = vmatpush1.msra.mxu0 %v3126
    %v3128 = vand.u32 %v2178, 4294901760
    %3129 = vmatprep.subr.mxu0 %v3128
    %v3130 = vand.u32 %v2177, 4294901760
    %3131 = vmatpush1.msra.mxu0 %v3130
    %v3132 = vand.u32 %v2171, 4294901760
    %3133 = vmatprep.subr.mxu0 %v3132
    %v3134 = vand.u32 %v2170, 4294901760
    %3135 = vmatpush1.msra.mxu0 %v3134
    %3136 = vmatprep.subr.mxu0 0.0
    %3137 = vmatpush2.msra.mxu0 0.0
    %3138 = vmatprep.subr.mxu0 0.0
    %3139 = vmatpush2.msra.mxu0 0.0
    %3140 = vmatprep.subr.mxu0 0.0
    %3141 = vmatpush2.msra.mxu0 0.0
    %3142 = vmatprep.subr.mxu0 0.0
    %3143 = vmatpush2.msra.mxu0 0.0
    %3144 = vmatprep.subr.mxu0 0.0
    %3145 = vmatpush2.msra.mxu0 0.0
    %3146 = vmatprep.subr.mxu0 0.0
    %3147 = vmatpush2.msra.mxu0 0.0
    %3148 = vmatprep.subr.mxu0 0.0
    %3149 = vmatpush2.msra.mxu0 0.0
    %3150 = vmatprep.subr.mxu0 0.0
    %3151 = vmatpush2.msra.mxu0 0.0
    %3152 = vmatprep.subr.mxu0 0.0
    %3153 = vmatpush2.msra.mxu0 0.0
    %3154 = vmatprep.subr.mxu0 0.0
    %3155 = vmatpush2.msra.mxu0 0.0
    %3156 = vmatprep.subr.mxu0 0.0
    %3157 = vmatpush2.msra.mxu0 0.0
    %3158 = vmatprep.subr.mxu0 0.0
    %3159 = vmatpush2.msra.mxu0 0.0
    %3160 = vmatprep.subr.mxu0 0.0
    %3161 = vmatpush2.msra.mxu0 0.0
    %3162 = vmatprep.subr.mxu0 0.0
    %3163 = vmatpush2.msra.mxu0 0.0
    %3164 = vmatprep.subr.mxu0 0.0
    %3165 = vmatpush2.msra.mxu0 0.0
    %3166 = vmatprep.subr.mxu0 0.0
    %3167 = vmatpush2.msra.mxu0 0.0
    %3168 = vmatprep.mubr.f32.mxu0 0.0
    %v3169 = vand.u32 %v2165, 4294901760
    %3170 = vmatmul.mubr.f32.gmra.mxu0 %v3169
    %v3171 = vpop.f32.mrf.mxu0
    %v3172 = vadd.f32 %v3068, %v3171
    %v3173 = vpop.f32.mrf.mxu0
    %v3174 = vadd.f32 %v3070, %v3173
    %3175 = vdwg.mxu0
    %v3176 = vand.u32 %v2278, 4294901760
    %3177 = vmatprep.subr.mxu0 %v3176
    %v3178 = vand.u32 %v2277, 4294901760
    %3179 = vmatpush1.msra.mxu0 %v3178
    %v3180 = vand.u32 %v2271, 4294901760
    %3181 = vmatprep.subr.mxu0 %v3180
    %v3182 = vand.u32 %v2270, 4294901760
    %3183 = vmatpush1.msra.mxu0 %v3182
    %v3184 = vand.u32 %v2264, 4294901760
    %3185 = vmatprep.subr.mxu0 %v3184
    %v3186 = vand.u32 %v2263, 4294901760
    %3187 = vmatpush1.msra.mxu0 %v3186
    %v3188 = vand.u32 %v2257, 4294901760
    %3189 = vmatprep.subr.mxu0 %v3188
    %v3190 = vand.u32 %v2256, 4294901760
    %3191 = vmatpush1.msra.mxu0 %v3190
    %v3192 = vand.u32 %v2250, 4294901760
    %3193 = vmatprep.subr.mxu0 %v3192
    %v3194 = vand.u32 %v2249, 4294901760
    %3195 = vmatpush1.msra.mxu0 %v3194
    %v3196 = vand.u32 %v2243, 4294901760
    %3197 = vmatprep.subr.mxu0 %v3196
    %v3198 = vand.u32 %v2242, 4294901760
    %3199 = vmatpush1.msra.mxu0 %v3198
    %v3200 = vand.u32 %v2236, 4294901760
    %3201 = vmatprep.subr.mxu0 %v3200
    %v3202 = vand.u32 %v2235, 4294901760
    %3203 = vmatpush1.msra.mxu0 %v3202
    %v3204 = vand.u32 %v2229, 4294901760
    %3205 = vmatprep.subr.mxu0 %v3204
    %v3206 = vand.u32 %v2228, 4294901760
    %3207 = vmatpush1.msra.mxu0 %v3206
    %v3208 = vand.u32 %v2222, 4294901760
    %3209 = vmatprep.subr.mxu0 %v3208
    %v3210 = vand.u32 %v2221, 4294901760
    %3211 = vmatpush1.msra.mxu0 %v3210
    %v3212 = vand.u32 %v2215, 4294901760
    %3213 = vmatprep.subr.mxu0 %v3212
    %v3214 = vand.u32 %v2214, 4294901760
    %3215 = vmatpush1.msra.mxu0 %v3214
    %v3216 = vand.u32 %v2208, 4294901760
    %3217 = vmatprep.subr.mxu0 %v3216
    %v3218 = vand.u32 %v2207, 4294901760
    %3219 = vmatpush1.msra.mxu0 %v3218
    %v3220 = vand.u32 %v2201, 4294901760
    %3221 = vmatprep.subr.mxu0 %v3220
    %v3222 = vand.u32 %v2200, 4294901760
    %3223 = vmatpush1.msra.mxu0 %v3222
    %v3224 = vand.u32 %v2194, 4294901760
    %3225 = vmatprep.subr.mxu0 %v3224
    %v3226 = vand.u32 %v2193, 4294901760
    %3227 = vmatpush1.msra.mxu0 %v3226
    %v3228 = vand.u32 %v2187, 4294901760
    %3229 = vmatprep.subr.mxu0 %v3228
    %v3230 = vand.u32 %v2186, 4294901760
    %3231 = vmatpush1.msra.mxu0 %v3230
    %v3232 = vand.u32 %v2180, 4294901760
    %3233 = vmatprep.subr.mxu0 %v3232
    %v3234 = vand.u32 %v2179, 4294901760
    %3235 = vmatpush1.msra.mxu0 %v3234
    %v3236 = vand.u32 %v2173, 4294901760
    %3237 = vmatprep.subr.mxu0 %v3236
    %v3238 = vand.u32 %v2172, 4294901760
    %3239 = vmatpush1.msra.mxu0 %v3238
    %3240 = vmatprep.subr.mxu0 0.0
    %3241 = vmatpush2.msra.mxu0 0.0
    %3242 = vmatprep.subr.mxu0 0.0
    %3243 = vmatpush2.msra.mxu0 0.0
    %3244 = vmatprep.subr.mxu0 0.0
    %3245 = vmatpush2.msra.mxu0 0.0
    %3246 = vmatprep.subr.mxu0 0.0
    %3247 = vmatpush2.msra.mxu0 0.0
    %3248 = vmatprep.subr.mxu0 0.0
    %3249 = vmatpush2.msra.mxu0 0.0
    %3250 = vmatprep.subr.mxu0 0.0
    %3251 = vmatpush2.msra.mxu0 0.0
    %3252 = vmatprep.subr.mxu0 0.0
    %3253 = vmatpush2.msra.mxu0 0.0
    %3254 = vmatprep.subr.mxu0 0.0
    %3255 = vmatpush2.msra.mxu0 0.0
    %3256 = vmatprep.subr.mxu0 0.0
    %3257 = vmatpush2.msra.mxu0 0.0
    %3258 = vmatprep.subr.mxu0 0.0
    %3259 = vmatpush2.msra.mxu0 0.0
    %3260 = vmatprep.subr.mxu0 0.0
    %3261 = vmatpush2.msra.mxu0 0.0
    %3262 = vmatprep.subr.mxu0 0.0
    %3263 = vmatpush2.msra.mxu0 0.0
    %3264 = vmatprep.subr.mxu0 0.0
    %3265 = vmatpush2.msra.mxu0 0.0
    %3266 = vmatprep.subr.mxu0 0.0
    %3267 = vmatpush2.msra.mxu0 0.0
    %3268 = vmatprep.subr.mxu0 0.0
    %3269 = vmatpush2.msra.mxu0 0.0
    %3270 = vmatprep.subr.mxu0 0.0
    %3271 = vmatpush2.msra.mxu0 0.0
    %3272 = vmatprep.mubr.f32.mxu0 0.0
    %v3273 = vand.u32 %v2165, 4294901760
    %v3274 = vsub.f32 %v2165, %v3273
    %v3275 = vand.u32 %v3274, 4294901760
    %v3276 = vsub.f32 %v3274, %v3275
    %v3277 = vand.u32 %v3276, 4294901760
    %3278 = vmatmul.mubr.f32.gmra.mxu0 %v3277
    %v3279 = vpop.f32.mrf.mxu0
    %v3280 = vadd.f32 %v2297, %v3279
    %v3281 = vpop.f32.mrf.mxu0
    %v3282 = vadd.f32 %v2301, %v3281
    %3283 = vdwg.mxu0
    %v3284 = vand.u32 %v2278, 4294901760
    %v3285 = vsub.f32 %v2278, %v3284
    %v3286 = vand.u32 %v3285, 4294901760
    %v3287 = vsub.f32 %v3285, %v3286
    %v3288 = vand.u32 %v3287, 4294901760
    %3289 = vmatprep.subr.mxu0 %v3288
    %v3290 = vand.u32 %v2277, 4294901760
    %v3291 = vsub.f32 %v2277, %v3290
    %v3292 = vand.u32 %v3291, 4294901760
    %v3293 = vsub.f32 %v3291, %v3292
    %v3294 = vand.u32 %v3293, 4294901760
    %3295 = vmatpush1.msra.mxu0 %v3294
    %v3296 = vand.u32 %v2271, 4294901760
    %v3297 = vsub.f32 %v2271, %v3296
    %v3298 = vand.u32 %v3297, 4294901760
    %v3299 = vsub.f32 %v3297, %v3298
    %v3300 = vand.u32 %v3299, 4294901760
    %3301 = vmatprep.subr.mxu0 %v3300
    %v3302 = vand.u32 %v2270, 4294901760
    %v3303 = vsub.f32 %v2270, %v3302
    %v3304 = vand.u32 %v3303, 4294901760
    %v3305 = vsub.f32 %v3303, %v3304
    %v3306 = vand.u32 %v3305, 4294901760
    %3307 = vmatpush1.msra.mxu0 %v3306
    %v3308 = vand.u32 %v2264, 4294901760
    %v3309 = vsub.f32 %v2264, %v3308
    %v3310 = vand.u32 %v3309, 4294901760
    %v3311 = vsub.f32 %v3309, %v3310
    %v3312 = vand.u32 %v3311, 4294901760
    %3313 = vmatprep.subr.mxu0 %v3312
    %v3314 = vand.u32 %v2263, 4294901760
    %v3315 = vsub.f32 %v2263, %v3314
    %v3316 = vand.u32 %v3315, 4294901760
    %v3317 = vsub.f32 %v3315, %v3316
    %v3318 = vand.u32 %v3317, 4294901760
    %3319 = vmatpush1.msra.mxu0 %v3318
    %v3320 = vand.u32 %v2257, 4294901760
    %v3321 = vsub.f32 %v2257, %v3320
    %v3322 = vand.u32 %v3321, 4294901760
    %v3323 = vsub.f32 %v3321, %v3322
    %v3324 = vand.u32 %v3323, 4294901760
    %3325 = vmatprep.subr.mxu0 %v3324
    %v3326 = vand.u32 %v2256, 4294901760
    %v3327 = vsub.f32 %v2256, %v3326
    %v3328 = vand.u32 %v3327, 4294901760
    %v3329 = vsub.f32 %v3327, %v3328
    %v3330 = vand.u32 %v3329, 4294901760
    %3331 = vmatpush1.msra.mxu0 %v3330
    %v3332 = vand.u32 %v2250, 4294901760
    %v3333 = vsub.f32 %v2250, %v3332
    %v3334 = vand.u32 %v3333, 4294901760
    %v3335 = vsub.f32 %v3333, %v3334
    %v3336 = vand.u32 %v3335, 4294901760
    %3337 = vmatprep.subr.mxu0 %v3336
    %v3338 = vand.u32 %v2249, 4294901760
    %v3339 = vsub.f32 %v2249, %v3338
    %v3340 = vand.u32 %v3339, 4294901760
    %v3341 = vsub.f32 %v3339, %v3340
    %v3342 = vand.u32 %v3341, 4294901760
    %3343 = vmatpush1.msra.mxu0 %v3342
    %v3344 = vand.u32 %v2243, 4294901760
    %v3345 = vsub.f32 %v2243, %v3344
    %v3346 = vand.u32 %v3345, 4294901760
    %v3347 = vsub.f32 %v3345, %v3346
    %v3348 = vand.u32 %v3347, 4294901760
    %3349 = vmatprep.subr.mxu0 %v3348
    %v3350 = vand.u32 %v2242, 4294901760
    %v3351 = vsub.f32 %v2242, %v3350
    %v3352 = vand.u32 %v3351, 4294901760
    %v3353 = vsub.f32 %v3351, %v3352
    %v3354 = vand.u32 %v3353, 4294901760
    %3355 = vmatpush1.msra.mxu0 %v3354
    %v3356 = vand.u32 %v2236, 4294901760
    %v3357 = vsub.f32 %v2236, %v3356
    %v3358 = vand.u32 %v3357, 4294901760
    %v3359 = vsub.f32 %v3357, %v3358
    %v3360 = vand.u32 %v3359, 4294901760
    %3361 = vmatprep.subr.mxu0 %v3360
    %v3362 = vand.u32 %v2235, 4294901760
    %v3363 = vsub.f32 %v2235, %v3362
    %v3364 = vand.u32 %v3363, 4294901760
    %v3365 = vsub.f32 %v3363, %v3364
    %v3366 = vand.u32 %v3365, 4294901760
    %3367 = vmatpush1.msra.mxu0 %v3366
    %v3368 = vand.u32 %v2229, 4294901760
    %v3369 = vsub.f32 %v2229, %v3368
    %v3370 = vand.u32 %v3369, 4294901760
    %v3371 = vsub.f32 %v3369, %v3370
    %v3372 = vand.u32 %v3371, 4294901760
    %3373 = vmatprep.subr.mxu0 %v3372
    %v3374 = vand.u32 %v2228, 4294901760
    %v3375 = vsub.f32 %v2228, %v3374
    %v3376 = vand.u32 %v3375, 4294901760
    %v3377 = vsub.f32 %v3375, %v3376
    %v3378 = vand.u32 %v3377, 4294901760
    %3379 = vmatpush1.msra.mxu0 %v3378
    %v3380 = vand.u32 %v2222, 4294901760
    %v3381 = vsub.f32 %v2222, %v3380
    %v3382 = vand.u32 %v3381, 4294901760
    %v3383 = vsub.f32 %v3381, %v3382
    %v3384 = vand.u32 %v3383, 4294901760
    %3385 = vmatprep.subr.mxu0 %v3384
    %v3386 = vand.u32 %v2221, 4294901760
    %v3387 = vsub.f32 %v2221, %v3386
    %v3388 = vand.u32 %v3387, 4294901760
    %v3389 = vsub.f32 %v3387, %v3388
    %v3390 = vand.u32 %v3389, 4294901760
    %3391 = vmatpush1.msra.mxu0 %v3390
    %v3392 = vand.u32 %v2215, 4294901760
    %v3393 = vsub.f32 %v2215, %v3392
    %v3394 = vand.u32 %v3393, 4294901760
    %v3395 = vsub.f32 %v3393, %v3394
    %v3396 = vand.u32 %v3395, 4294901760
    %3397 = vmatprep.subr.mxu0 %v3396
    %v3398 = vand.u32 %v2214, 4294901760
    %v3399 = vsub.f32 %v2214, %v3398
    %v3400 = vand.u32 %v3399, 4294901760
    %v3401 = vsub.f32 %v3399, %v3400
    %v3402 = vand.u32 %v3401, 4294901760
    %3403 = vmatpush1.msra.mxu0 %v3402
    %v3404 = vand.u32 %v2208, 4294901760
    %v3405 = vsub.f32 %v2208, %v3404
    %v3406 = vand.u32 %v3405, 4294901760
    %v3407 = vsub.f32 %v3405, %v3406
    %v3408 = vand.u32 %v3407, 4294901760
    %3409 = vmatprep.subr.mxu0 %v3408
    %v3410 = vand.u32 %v2207, 4294901760
    %v3411 = vsub.f32 %v2207, %v3410
    %v3412 = vand.u32 %v3411, 4294901760
    %v3413 = vsub.f32 %v3411, %v3412
    %v3414 = vand.u32 %v3413, 4294901760
    %3415 = vmatpush1.msra.mxu0 %v3414
    %v3416 = vand.u32 %v2201, 4294901760
    %v3417 = vsub.f32 %v2201, %v3416
    %v3418 = vand.u32 %v3417, 4294901760
    %v3419 = vsub.f32 %v3417, %v3418
    %v3420 = vand.u32 %v3419, 4294901760
    %3421 = vmatprep.subr.mxu0 %v3420
    %v3422 = vand.u32 %v2200, 4294901760
    %v3423 = vsub.f32 %v2200, %v3422
    %v3424 = vand.u32 %v3423, 4294901760
    %v3425 = vsub.f32 %v3423, %v3424
    %v3426 = vand.u32 %v3425, 4294901760
    %3427 = vmatpush1.msra.mxu0 %v3426
    %v3428 = vand.u32 %v2194, 4294901760
    %v3429 = vsub.f32 %v2194, %v3428
    %v3430 = vand.u32 %v3429, 4294901760
    %v3431 = vsub.f32 %v3429, %v3430
    %v3432 = vand.u32 %v3431, 4294901760
    %3433 = vmatprep.subr.mxu0 %v3432
    %v3434 = vand.u32 %v2193, 4294901760
    %v3435 = vsub.f32 %v2193, %v3434
    %v3436 = vand.u32 %v3435, 4294901760
    %v3437 = vsub.f32 %v3435, %v3436
    %v3438 = vand.u32 %v3437, 4294901760
    %3439 = vmatpush1.msra.mxu0 %v3438
    %v3440 = vand.u32 %v2187, 4294901760
    %v3441 = vsub.f32 %v2187, %v3440
    %v3442 = vand.u32 %v3441, 4294901760
    %v3443 = vsub.f32 %v3441, %v3442
    %v3444 = vand.u32 %v3443, 4294901760
    %3445 = vmatprep.subr.mxu0 %v3444
    %v3446 = vand.u32 %v2186, 4294901760
    %v3447 = vsub.f32 %v2186, %v3446
    %v3448 = vand.u32 %v3447, 4294901760
    %v3449 = vsub.f32 %v3447, %v3448
    %v3450 = vand.u32 %v3449, 4294901760
    %3451 = vmatpush1.msra.mxu0 %v3450
    %v3452 = vand.u32 %v2180, 4294901760
    %v3453 = vsub.f32 %v2180, %v3452
    %v3454 = vand.u32 %v3453, 4294901760
    %v3455 = vsub.f32 %v3453, %v3454
    %v3456 = vand.u32 %v3455, 4294901760
    %3457 = vmatprep.subr.mxu0 %v3456
    %v3458 = vand.u32 %v2179, 4294901760
    %v3459 = vsub.f32 %v2179, %v3458
    %v3460 = vand.u32 %v3459, 4294901760
    %v3461 = vsub.f32 %v3459, %v3460
    %v3462 = vand.u32 %v3461, 4294901760
    %3463 = vmatpush1.msra.mxu0 %v3462
    %v3464 = vand.u32 %v2173, 4294901760
    %v3465 = vsub.f32 %v2173, %v3464
    %v3466 = vand.u32 %v3465, 4294901760
    %v3467 = vsub.f32 %v3465, %v3466
    %v3468 = vand.u32 %v3467, 4294901760
    %3469 = vmatprep.subr.mxu0 %v3468
    %v3470 = vand.u32 %v2172, 4294901760
    %v3471 = vsub.f32 %v2172, %v3470
    %v3472 = vand.u32 %v3471, 4294901760
    %v3473 = vsub.f32 %v3471, %v3472
    %v3474 = vand.u32 %v3473, 4294901760
    %3475 = vmatpush1.msra.mxu0 %v3474
    %3476 = vmatprep.subr.mxu0 0.0
    %3477 = vmatpush2.msra.mxu0 0.0
    %3478 = vmatprep.subr.mxu0 0.0
    %3479 = vmatpush2.msra.mxu0 0.0
    %3480 = vmatprep.subr.mxu0 0.0
    %3481 = vmatpush2.msra.mxu0 0.0
    %3482 = vmatprep.subr.mxu0 0.0
    %3483 = vmatpush2.msra.mxu0 0.0
    %3484 = vmatprep.subr.mxu0 0.0
    %3485 = vmatpush2.msra.mxu0 0.0
    %3486 = vmatprep.subr.mxu0 0.0
    %3487 = vmatpush2.msra.mxu0 0.0
    %3488 = vmatprep.subr.mxu0 0.0
    %3489 = vmatpush2.msra.mxu0 0.0
    %3490 = vmatprep.subr.mxu0 0.0
    %3491 = vmatpush2.msra.mxu0 0.0
    %3492 = vmatprep.subr.mxu0 0.0
    %3493 = vmatpush2.msra.mxu0 0.0
    %3494 = vmatprep.subr.mxu0 0.0
    %3495 = vmatpush2.msra.mxu0 0.0
    %3496 = vmatprep.subr.mxu0 0.0
    %3497 = vmatpush2.msra.mxu0 0.0
    %3498 = vmatprep.subr.mxu0 0.0
    %3499 = vmatpush2.msra.mxu0 0.0
    %3500 = vmatprep.subr.mxu0 0.0
    %3501 = vmatpush2.msra.mxu0 0.0
    %3502 = vmatprep.subr.mxu0 0.0
    %3503 = vmatpush2.msra.mxu0 0.0
    %3504 = vmatprep.subr.mxu0 0.0
    %3505 = vmatpush2.msra.mxu0 0.0
    %3506 = vmatprep.subr.mxu0 0.0
    %3507 = vmatpush2.msra.mxu0 0.0
    %3508 = vmatprep.mubr.f32.mxu0 0.0
    %v3509 = vand.u32 %v2165, 4294901760
    %3510 = vmatmul.mubr.f32.gmra.mxu0 %v3509
    %v3511 = vpop.f32.mrf.mxu0
    %v3512 = vadd.f32 %v3280, %v3511
    %v3513 = vpop.f32.mrf.mxu0
    %v3514 = vadd.f32 %v3282, %v3513
    %3515 = vdwg.mxu0
    %v3516 = vand.u32 %v2278, 4294901760
    %v3517 = vsub.f32 %v2278, %v3516
    %3518 = vmatprep.subr.mxu0 %v3517
    %v3519 = vand.u32 %v2277, 4294901760
    %v3520 = vsub.f32 %v2277, %v3519
    %3521 = vmatpush1.msra.mxu0 %v3520
    %v3522 = vand.u32 %v2271, 4294901760
    %v3523 = vsub.f32 %v2271, %v3522
    %3524 = vmatprep.subr.mxu0 %v3523
    %v3525 = vand.u32 %v2270, 4294901760
    %v3526 = vsub.f32 %v2270, %v3525
    %3527 = vmatpush1.msra.mxu0 %v3526
    %v3528 = vand.u32 %v2264, 4294901760
    %v3529 = vsub.f32 %v2264, %v3528
    %3530 = vmatprep.subr.mxu0 %v3529
    %v3531 = vand.u32 %v2263, 4294901760
    %v3532 = vsub.f32 %v2263, %v3531
    %3533 = vmatpush1.msra.mxu0 %v3532
    %v3534 = vand.u32 %v2257, 4294901760
    %v3535 = vsub.f32 %v2257, %v3534
    %3536 = vmatprep.subr.mxu0 %v3535
    %v3537 = vand.u32 %v2256, 4294901760
    %v3538 = vsub.f32 %v2256, %v3537
    %3539 = vmatpush1.msra.mxu0 %v3538
    %v3540 = vand.u32 %v2250, 4294901760
    %v3541 = vsub.f32 %v2250, %v3540
    %3542 = vmatprep.subr.mxu0 %v3541
    %v3543 = vand.u32 %v2249, 4294901760
    %v3544 = vsub.f32 %v2249, %v3543
    %3545 = vmatpush1.msra.mxu0 %v3544
    %v3546 = vand.u32 %v2243, 4294901760
    %v3547 = vsub.f32 %v2243, %v3546
    %3548 = vmatprep.subr.mxu0 %v3547
    %v3549 = vand.u32 %v2242, 4294901760
    %v3550 = vsub.f32 %v2242, %v3549
    %3551 = vmatpush1.msra.mxu0 %v3550
    %v3552 = vand.u32 %v2236, 4294901760
    %v3553 = vsub.f32 %v2236, %v3552
    %3554 = vmatprep.subr.mxu0 %v3553
    %v3555 = vand.u32 %v2235, 4294901760
    %v3556 = vsub.f32 %v2235, %v3555
    %3557 = vmatpush1.msra.mxu0 %v3556
    %v3558 = vand.u32 %v2229, 4294901760
    %v3559 = vsub.f32 %v2229, %v3558
    %3560 = vmatprep.subr.mxu0 %v3559
    %v3561 = vand.u32 %v2228, 4294901760
    %v3562 = vsub.f32 %v2228, %v3561
    %3563 = vmatpush1.msra.mxu0 %v3562
    %v3564 = vand.u32 %v2222, 4294901760
    %v3565 = vsub.f32 %v2222, %v3564
    %3566 = vmatprep.subr.mxu0 %v3565
    %v3567 = vand.u32 %v2221, 4294901760
    %v3568 = vsub.f32 %v2221, %v3567
    %3569 = vmatpush1.msra.mxu0 %v3568
    %v3570 = vand.u32 %v2215, 4294901760
    %v3571 = vsub.f32 %v2215, %v3570
    %3572 = vmatprep.subr.mxu0 %v3571
    %v3573 = vand.u32 %v2214, 4294901760
    %v3574 = vsub.f32 %v2214, %v3573
    %3575 = vmatpush1.msra.mxu0 %v3574
    %v3576 = vand.u32 %v2208, 4294901760
    %v3577 = vsub.f32 %v2208, %v3576
    %3578 = vmatprep.subr.mxu0 %v3577
    %v3579 = vand.u32 %v2207, 4294901760
    %v3580 = vsub.f32 %v2207, %v3579
    %3581 = vmatpush1.msra.mxu0 %v3580
    %v3582 = vand.u32 %v2201, 4294901760
    %v3583 = vsub.f32 %v2201, %v3582
    %3584 = vmatprep.subr.mxu0 %v3583
    %v3585 = vand.u32 %v2200, 4294901760
    %v3586 = vsub.f32 %v2200, %v3585
    %3587 = vmatpush1.msra.mxu0 %v3586
    %v3588 = vand.u32 %v2194, 4294901760
    %v3589 = vsub.f32 %v2194, %v3588
    %3590 = vmatprep.subr.mxu0 %v3589
    %v3591 = vand.u32 %v2193, 4294901760
    %v3592 = vsub.f32 %v2193, %v3591
    %3593 = vmatpush1.msra.mxu0 %v3592
    %v3594 = vand.u32 %v2187, 4294901760
    %v3595 = vsub.f32 %v2187, %v3594
    %3596 = vmatprep.subr.mxu0 %v3595
    %v3597 = vand.u32 %v2186, 4294901760
    %v3598 = vsub.f32 %v2186, %v3597
    %3599 = vmatpush1.msra.mxu0 %v3598
    %v3600 = vand.u32 %v2180, 4294901760
    %v3601 = vsub.f32 %v2180, %v3600
    %3602 = vmatprep.subr.mxu0 %v3601
    %v3603 = vand.u32 %v2179, 4294901760
    %v3604 = vsub.f32 %v2179, %v3603
    %3605 = vmatpush1.msra.mxu0 %v3604
    %v3606 = vand.u32 %v2173, 4294901760
    %v3607 = vsub.f32 %v2173, %v3606
    %3608 = vmatprep.subr.mxu0 %v3607
    %v3609 = vand.u32 %v2172, 4294901760
    %v3610 = vsub.f32 %v2172, %v3609
    %3611 = vmatpush1.msra.mxu0 %v3610
    %3612 = vmatprep.subr.mxu0 0.0
    %3613 = vmatpush2.msra.mxu0 0.0
    %3614 = vmatprep.subr.mxu0 0.0
    %3615 = vmatpush2.msra.mxu0 0.0
    %3616 = vmatprep.subr.mxu0 0.0
    %3617 = vmatpush2.msra.mxu0 0.0
    %3618 = vmatprep.subr.mxu0 0.0
    %3619 = vmatpush2.msra.mxu0 0.0
    %3620 = vmatprep.subr.mxu0 0.0
    %3621 = vmatpush2.msra.mxu0 0.0
    %3622 = vmatprep.subr.mxu0 0.0
    %3623 = vmatpush2.msra.mxu0 0.0
    %3624 = vmatprep.subr.mxu0 0.0
    %3625 = vmatpush2.msra.mxu0 0.0
    %3626 = vmatprep.subr.mxu0 0.0
    %3627 = vmatpush2.msra.mxu0 0.0
    %3628 = vmatprep.subr.mxu0 0.0
    %3629 = vmatpush2.msra.mxu0 0.0
    %3630 = vmatprep.subr.mxu0 0.0
    %3631 = vmatpush2.msra.mxu0 0.0
    %3632 = vmatprep.subr.mxu0 0.0
    %3633 = vmatpush2.msra.mxu0 0.0
    %3634 = vmatprep.subr.mxu0 0.0
    %3635 = vmatpush2.msra.mxu0 0.0
    %3636 = vmatprep.subr.mxu0 0.0
    %3637 = vmatpush2.msra.mxu0 0.0
    %3638 = vmatprep.subr.mxu0 0.0
    %3639 = vmatpush2.msra.mxu0 0.0
    %3640 = vmatprep.subr.mxu0 0.0
    %3641 = vmatpush2.msra.mxu0 0.0
    %3642 = vmatprep.subr.mxu0 0.0
    %3643 = vmatpush2.msra.mxu0 0.0
    %3644 = vmatprep.mubr.f32.mxu0 0.0
    %v3645 = vand.u32 %v2165, 4294901760
    %v3646 = vsub.f32 %v2165, %v3645
    %3647 = vmatmul.mubr.f32.gmra.mxu0 %v3646
    %v3648 = vpop.f32.mrf.mxu0
    %v3649 = vadd.f32 %v3512, %v3648
    %v3650 = vpop.f32.mrf.mxu0
    %v3651 = vadd.f32 %v3514, %v3650
    %3652 = vdwg.mxu0
    %v3653 = vand.u32 %v2278, 4294901760
    %3654 = vmatprep.subr.mxu0 %v3653
    %v3655 = vand.u32 %v2277, 4294901760
    %3656 = vmatpush1.msra.mxu0 %v3655
    %v3657 = vand.u32 %v2271, 4294901760
    %3658 = vmatprep.subr.mxu0 %v3657
    %v3659 = vand.u32 %v2270, 4294901760
    %3660 = vmatpush1.msra.mxu0 %v3659
    %v3661 = vand.u32 %v2264, 4294901760
    %3662 = vmatprep.subr.mxu0 %v3661
    %v3663 = vand.u32 %v2263, 4294901760
    %3664 = vmatpush1.msra.mxu0 %v3663
    %v3665 = vand.u32 %v2257, 4294901760
    %3666 = vmatprep.subr.mxu0 %v3665
    %v3667 = vand.u32 %v2256, 4294901760
    %3668 = vmatpush1.msra.mxu0 %v3667
    %v3669 = vand.u32 %v2250, 4294901760
    %3670 = vmatprep.subr.mxu0 %v3669
    %v3671 = vand.u32 %v2249, 4294901760
    %3672 = vmatpush1.msra.mxu0 %v3671
    %v3673 = vand.u32 %v2243, 4294901760
    %3674 = vmatprep.subr.mxu0 %v3673
    %v3675 = vand.u32 %v2242, 4294901760
    %3676 = vmatpush1.msra.mxu0 %v3675
    %v3677 = vand.u32 %v2236, 4294901760
    %3678 = vmatprep.subr.mxu0 %v3677
    %v3679 = vand.u32 %v2235, 4294901760
    %3680 = vmatpush1.msra.mxu0 %v3679
    %v3681 = vand.u32 %v2229, 4294901760
    %3682 = vmatprep.subr.mxu0 %v3681
    %v3683 = vand.u32 %v2228, 4294901760
    %3684 = vmatpush1.msra.mxu0 %v3683
    %v3685 = vand.u32 %v2222, 4294901760
    %3686 = vmatprep.subr.mxu0 %v3685
    %v3687 = vand.u32 %v2221, 4294901760
    %3688 = vmatpush1.msra.mxu0 %v3687
    %v3689 = vand.u32 %v2215, 4294901760
    %3690 = vmatprep.subr.mxu0 %v3689
    %v3691 = vand.u32 %v2214, 4294901760
    %3692 = vmatpush1.msra.mxu0 %v3691
    %v3693 = vand.u32 %v2208, 4294901760
    %3694 = vmatprep.subr.mxu0 %v3693
    %v3695 = vand.u32 %v2207, 4294901760
    %3696 = vmatpush1.msra.mxu0 %v3695
    %v3697 = vand.u32 %v2201, 4294901760
    %3698 = vmatprep.subr.mxu0 %v3697
    %v3699 = vand.u32 %v2200, 4294901760
    %3700 = vmatpush1.msra.mxu0 %v3699
    %v3701 = vand.u32 %v2194, 4294901760
    %3702 = vmatprep.subr.mxu0 %v3701
    %v3703 = vand.u32 %v2193, 4294901760
    %3704 = vmatpush1.msra.mxu0 %v3703
    %v3705 = vand.u32 %v2187, 4294901760
    %3706 = vmatprep.subr.mxu0 %v3705
    %v3707 = vand.u32 %v2186, 4294901760
    %3708 = vmatpush1.msra.mxu0 %v3707
    %v3709 = vand.u32 %v2180, 4294901760
    %3710 = vmatprep.subr.mxu0 %v3709
    %v3711 = vand.u32 %v2179, 4294901760
    %3712 = vmatpush1.msra.mxu0 %v3711
    %v3713 = vand.u32 %v2173, 4294901760
    %3714 = vmatprep.subr.mxu0 %v3713
    %v3715 = vand.u32 %v2172, 4294901760
    %3716 = vmatpush1.msra.mxu0 %v3715
    %3717 = vmatprep.subr.mxu0 0.0
    %3718 = vmatpush2.msra.mxu0 0.0
    %3719 = vmatprep.subr.mxu0 0.0
    %3720 = vmatpush2.msra.mxu0 0.0
    %3721 = vmatprep.subr.mxu0 0.0
    %3722 = vmatpush2.msra.mxu0 0.0
    %3723 = vmatprep.subr.mxu0 0.0
    %3724 = vmatpush2.msra.mxu0 0.0
    %3725 = vmatprep.subr.mxu0 0.0
    %3726 = vmatpush2.msra.mxu0 0.0
    %3727 = vmatprep.subr.mxu0 0.0
    %3728 = vmatpush2.msra.mxu0 0.0
    %3729 = vmatprep.subr.mxu0 0.0
    %3730 = vmatpush2.msra.mxu0 0.0
    %3731 = vmatprep.subr.mxu0 0.0
    %3732 = vmatpush2.msra.mxu0 0.0
    %3733 = vmatprep.subr.mxu0 0.0
    %3734 = vmatpush2.msra.mxu0 0.0
    %3735 = vmatprep.subr.mxu0 0.0
    %3736 = vmatpush2.msra.mxu0 0.0
    %3737 = vmatprep.subr.mxu0 0.0
    %3738 = vmatpush2.msra.mxu0 0.0
    %3739 = vmatprep.subr.mxu0 0.0
    %3740 = vmatpush2.msra.mxu0 0.0
    %3741 = vmatprep.subr.mxu0 0.0
    %3742 = vmatpush2.msra.mxu0 0.0
    %3743 = vmatprep.subr.mxu0 0.0
    %3744 = vmatpush2.msra.mxu0 0.0
    %3745 = vmatprep.subr.mxu0 0.0
    %3746 = vmatpush2.msra.mxu0 0.0
    %3747 = vmatprep.subr.mxu0 0.0
    %3748 = vmatpush2.msra.mxu0 0.0
    %3749 = vmatprep.mubr.f32.mxu0 0.0
    %v3750 = vand.u32 %v2165, 4294901760
    %v3751 = vsub.f32 %v2165, %v3750
    %v3752 = vand.u32 %v3751, 4294901760
    %3753 = vmatmul.mubr.f32.gmra.mxu0 %v3752
    %v3754 = vpop.f32.mrf.mxu0
    %v3755 = vadd.f32 %v3649, %v3754
    %v3756 = vpop.f32.mrf.mxu0
    %v3757 = vadd.f32 %v3651, %v3756
    %3758 = vdwg.mxu0
    %v3759 = vand.u32 %v2278, 4294901760
    %v3760 = vsub.f32 %v2278, %v3759
    %v3761 = vand.u32 %v3760, 4294901760
    %3762 = vmatprep.subr.mxu0 %v3761
    %v3763 = vand.u32 %v2277, 4294901760
    %v3764 = vsub.f32 %v2277, %v3763
    %v3765 = vand.u32 %v3764, 4294901760
    %3766 = vmatpush1.msra.mxu0 %v3765
    %v3767 = vand.u32 %v2271, 4294901760
    %v3768 = vsub.f32 %v2271, %v3767
    %v3769 = vand.u32 %v3768, 4294901760
    %3770 = vmatprep.subr.mxu0 %v3769
    %v3771 = vand.u32 %v2270, 4294901760
    %v3772 = vsub.f32 %v2270, %v3771
    %v3773 = vand.u32 %v3772, 4294901760
    %3774 = vmatpush1.msra.mxu0 %v3773
    %v3775 = vand.u32 %v2264, 4294901760
    %v3776 = vsub.f32 %v2264, %v3775
    %v3777 = vand.u32 %v3776, 4294901760
    %3778 = vmatprep.subr.mxu0 %v3777
    %v3779 = vand.u32 %v2263, 4294901760
    %v3780 = vsub.f32 %v2263, %v3779
    %v3781 = vand.u32 %v3780, 4294901760
    %3782 = vmatpush1.msra.mxu0 %v3781
    %v3783 = vand.u32 %v2257, 4294901760
    %v3784 = vsub.f32 %v2257, %v3783
    %v3785 = vand.u32 %v3784, 4294901760
    %3786 = vmatprep.subr.mxu0 %v3785
    %v3787 = vand.u32 %v2256, 4294901760
    %v3788 = vsub.f32 %v2256, %v3787
    %v3789 = vand.u32 %v3788, 4294901760
    %3790 = vmatpush1.msra.mxu0 %v3789
    %v3791 = vand.u32 %v2250, 4294901760
    %v3792 = vsub.f32 %v2250, %v3791
    %v3793 = vand.u32 %v3792, 4294901760
    %3794 = vmatprep.subr.mxu0 %v3793
    %v3795 = vand.u32 %v2249, 4294901760
    %v3796 = vsub.f32 %v2249, %v3795
    %v3797 = vand.u32 %v3796, 4294901760
    %3798 = vmatpush1.msra.mxu0 %v3797
    %v3799 = vand.u32 %v2243, 4294901760
    %v3800 = vsub.f32 %v2243, %v3799
    %v3801 = vand.u32 %v3800, 4294901760
    %3802 = vmatprep.subr.mxu0 %v3801
    %v3803 = vand.u32 %v2242, 4294901760
    %v3804 = vsub.f32 %v2242, %v3803
    %v3805 = vand.u32 %v3804, 4294901760
    %3806 = vmatpush1.msra.mxu0 %v3805
    %v3807 = vand.u32 %v2236, 4294901760
    %v3808 = vsub.f32 %v2236, %v3807
    %v3809 = vand.u32 %v3808, 4294901760
    %3810 = vmatprep.subr.mxu0 %v3809
    %v3811 = vand.u32 %v2235, 4294901760
    %v3812 = vsub.f32 %v2235, %v3811
    %v3813 = vand.u32 %v3812, 4294901760
    %3814 = vmatpush1.msra.mxu0 %v3813
    %v3815 = vand.u32 %v2229, 4294901760
    %v3816 = vsub.f32 %v2229, %v3815
    %v3817 = vand.u32 %v3816, 4294901760
    %3818 = vmatprep.subr.mxu0 %v3817
    %v3819 = vand.u32 %v2228, 4294901760
    %v3820 = vsub.f32 %v2228, %v3819
    %v3821 = vand.u32 %v3820, 4294901760
    %3822 = vmatpush1.msra.mxu0 %v3821
    %v3823 = vand.u32 %v2222, 4294901760
    %v3824 = vsub.f32 %v2222, %v3823
    %v3825 = vand.u32 %v3824, 4294901760
    %3826 = vmatprep.subr.mxu0 %v3825
    %v3827 = vand.u32 %v2221, 4294901760
    %v3828 = vsub.f32 %v2221, %v3827
    %v3829 = vand.u32 %v3828, 4294901760
    %3830 = vmatpush1.msra.mxu0 %v3829
    %v3831 = vand.u32 %v2215, 4294901760
    %v3832 = vsub.f32 %v2215, %v3831
    %v3833 = vand.u32 %v3832, 4294901760
    %3834 = vmatprep.subr.mxu0 %v3833
    %v3835 = vand.u32 %v2214, 4294901760
    %v3836 = vsub.f32 %v2214, %v3835
    %v3837 = vand.u32 %v3836, 4294901760
    %3838 = vmatpush1.msra.mxu0 %v3837
    %v3839 = vand.u32 %v2208, 4294901760
    %v3840 = vsub.f32 %v2208, %v3839
    %v3841 = vand.u32 %v3840, 4294901760
    %3842 = vmatprep.subr.mxu0 %v3841
    %v3843 = vand.u32 %v2207, 4294901760
    %v3844 = vsub.f32 %v2207, %v3843
    %v3845 = vand.u32 %v3844, 4294901760
    %3846 = vmatpush1.msra.mxu0 %v3845
    %v3847 = vand.u32 %v2201, 4294901760
    %v3848 = vsub.f32 %v2201, %v3847
    %v3849 = vand.u32 %v3848, 4294901760
    %3850 = vmatprep.subr.mxu0 %v3849
    %v3851 = vand.u32 %v2200, 4294901760
    %v3852 = vsub.f32 %v2200, %v3851
    %v3853 = vand.u32 %v3852, 4294901760
    %3854 = vmatpush1.msra.mxu0 %v3853
    %v3855 = vand.u32 %v2194, 4294901760
    %v3856 = vsub.f32 %v2194, %v3855
    %v3857 = vand.u32 %v3856, 4294901760
    %3858 = vmatprep.subr.mxu0 %v3857
    %v3859 = vand.u32 %v2193, 4294901760
    %v3860 = vsub.f32 %v2193, %v3859
    %v3861 = vand.u32 %v3860, 4294901760
    %3862 = vmatpush1.msra.mxu0 %v3861
    %v3863 = vand.u32 %v2187, 4294901760
    %v3864 = vsub.f32 %v2187, %v3863
    %v3865 = vand.u32 %v3864, 4294901760
    %3866 = vmatprep.subr.mxu0 %v3865
    %v3867 = vand.u32 %v2186, 4294901760
    %v3868 = vsub.f32 %v2186, %v3867
    %v3869 = vand.u32 %v3868, 4294901760
    %3870 = vmatpush1.msra.mxu0 %v3869
    %v3871 = vand.u32 %v2180, 4294901760
    %v3872 = vsub.f32 %v2180, %v3871
    %v3873 = vand.u32 %v3872, 4294901760
    %3874 = vmatprep.subr.mxu0 %v3873
    %v3875 = vand.u32 %v2179, 4294901760
    %v3876 = vsub.f32 %v2179, %v3875
    %v3877 = vand.u32 %v3876, 4294901760
    %3878 = vmatpush1.msra.mxu0 %v3877
    %v3879 = vand.u32 %v2173, 4294901760
    %v3880 = vsub.f32 %v2173, %v3879
    %v3881 = vand.u32 %v3880, 4294901760
    %3882 = vmatprep.subr.mxu0 %v3881
    %v3883 = vand.u32 %v2172, 4294901760
    %v3884 = vsub.f32 %v2172, %v3883
    %v3885 = vand.u32 %v3884, 4294901760
    %3886 = vmatpush1.msra.mxu0 %v3885
    %3887 = vmatprep.subr.mxu0 0.0
    %3888 = vmatpush2.msra.mxu0 0.0
    %3889 = vmatprep.subr.mxu0 0.0
    %3890 = vmatpush2.msra.mxu0 0.0
    %3891 = vmatprep.subr.mxu0 0.0
    %3892 = vmatpush2.msra.mxu0 0.0
    %3893 = vmatprep.subr.mxu0 0.0
    %3894 = vmatpush2.msra.mxu0 0.0
    %3895 = vmatprep.subr.mxu0 0.0
    %3896 = vmatpush2.msra.mxu0 0.0
    %3897 = vmatprep.subr.mxu0 0.0
    %3898 = vmatpush2.msra.mxu0 0.0
    %3899 = vmatprep.subr.mxu0 0.0
    %3900 = vmatpush2.msra.mxu0 0.0
    %3901 = vmatprep.subr.mxu0 0.0
    %3902 = vmatpush2.msra.mxu0 0.0
    %3903 = vmatprep.subr.mxu0 0.0
    %3904 = vmatpush2.msra.mxu0 0.0
    %3905 = vmatprep.subr.mxu0 0.0
    %3906 = vmatpush2.msra.mxu0 0.0
    %3907 = vmatprep.subr.mxu0 0.0
    %3908 = vmatpush2.msra.mxu0 0.0
    %3909 = vmatprep.subr.mxu0 0.0
    %3910 = vmatpush2.msra.mxu0 0.0
    %3911 = vmatprep.subr.mxu0 0.0
    %3912 = vmatpush2.msra.mxu0 0.0
    %3913 = vmatprep.subr.mxu0 0.0
    %3914 = vmatpush2.msra.mxu0 0.0
    %3915 = vmatprep.subr.mxu0 0.0
    %3916 = vmatpush2.msra.mxu0 0.0
    %3917 = vmatprep.subr.mxu0 0.0
    %3918 = vmatpush2.msra.mxu0 0.0
    %3919 = vmatprep.mubr.f32.mxu0 0.0
    %v3920 = vand.u32 %v2165, 4294901760
    %3921 = vmatmul.mubr.f32.gmra.mxu0 %v3920
    %v3922 = vpop.f32.mrf.mxu0
    %v3923 = vadd.f32 %v3755, %v3922
    %v3924 = vpop.f32.mrf.mxu0
    %v3925 = vadd.f32 %v3757, %v3924
    %3926 = vdwg.mxu0
    %v3927 = vand.u32 %v2278, 4294901760
    %3928 = vmatprep.subr.mxu0 %v3927
    %v3929 = vand.u32 %v2277, 4294901760
    %3930 = vmatpush1.msra.mxu0 %v3929
    %v3931 = vand.u32 %v2271, 4294901760
    %3932 = vmatprep.subr.mxu0 %v3931
    %v3933 = vand.u32 %v2270, 4294901760
    %3934 = vmatpush1.msra.mxu0 %v3933
    %v3935 = vand.u32 %v2264, 4294901760
    %3936 = vmatprep.subr.mxu0 %v3935
    %v3937 = vand.u32 %v2263, 4294901760
    %3938 = vmatpush1.msra.mxu0 %v3937
    %v3939 = vand.u32 %v2257, 4294901760
    %3940 = vmatprep.subr.mxu0 %v3939
    %v3941 = vand.u32 %v2256, 4294901760
    %3942 = vmatpush1.msra.mxu0 %v3941
    %v3943 = vand.u32 %v2250, 4294901760
    %3944 = vmatprep.subr.mxu0 %v3943
    %v3945 = vand.u32 %v2249, 4294901760
    %3946 = vmatpush1.msra.mxu0 %v3945
    %v3947 = vand.u32 %v2243, 4294901760
    %3948 = vmatprep.subr.mxu0 %v3947
    %v3949 = vand.u32 %v2242, 4294901760
    %3950 = vmatpush1.msra.mxu0 %v3949
    %v3951 = vand.u32 %v2236, 4294901760
    %3952 = vmatprep.subr.mxu0 %v3951
    %v3953 = vand.u32 %v2235, 4294901760
    %3954 = vmatpush1.msra.mxu0 %v3953
    %v3955 = vand.u32 %v2229, 4294901760
    %3956 = vmatprep.subr.mxu0 %v3955
    %v3957 = vand.u32 %v2228, 4294901760
    %3958 = vmatpush1.msra.mxu0 %v3957
    %v3959 = vand.u32 %v2222, 4294901760
    %3960 = vmatprep.subr.mxu0 %v3959
    %v3961 = vand.u32 %v2221, 4294901760
    %3962 = vmatpush1.msra.mxu0 %v3961
    %v3963 = vand.u32 %v2215, 4294901760
    %3964 = vmatprep.subr.mxu0 %v3963
    %v3965 = vand.u32 %v2214, 4294901760
    %3966 = vmatpush1.msra.mxu0 %v3965
    %v3967 = vand.u32 %v2208, 4294901760
    %3968 = vmatprep.subr.mxu0 %v3967
    %v3969 = vand.u32 %v2207, 4294901760
    %3970 = vmatpush1.msra.mxu0 %v3969
    %v3971 = vand.u32 %v2201, 4294901760
    %3972 = vmatprep.subr.mxu0 %v3971
    %v3973 = vand.u32 %v2200, 4294901760
    %3974 = vmatpush1.msra.mxu0 %v3973
    %v3975 = vand.u32 %v2194, 4294901760
    %3976 = vmatprep.subr.mxu0 %v3975
    %v3977 = vand.u32 %v2193, 4294901760
    %3978 = vmatpush1.msra.mxu0 %v3977
    %v3979 = vand.u32 %v2187, 4294901760
    %3980 = vmatprep.subr.mxu0 %v3979
    %v3981 = vand.u32 %v2186, 4294901760
    %3982 = vmatpush1.msra.mxu0 %v3981
    %v3983 = vand.u32 %v2180, 4294901760
    %3984 = vmatprep.subr.mxu0 %v3983
    %v3985 = vand.u32 %v2179, 4294901760
    %3986 = vmatpush1.msra.mxu0 %v3985
    %v3987 = vand.u32 %v2173, 4294901760
    %3988 = vmatprep.subr.mxu0 %v3987
    %v3989 = vand.u32 %v2172, 4294901760
    %3990 = vmatpush1.msra.mxu0 %v3989
    %3991 = vmatprep.subr.mxu0 0.0
    %3992 = vmatpush2.msra.mxu0 0.0
    %3993 = vmatprep.subr.mxu0 0.0
    %3994 = vmatpush2.msra.mxu0 0.0
    %3995 = vmatprep.subr.mxu0 0.0
    %3996 = vmatpush2.msra.mxu0 0.0
    %3997 = vmatprep.subr.mxu0 0.0
    %3998 = vmatpush2.msra.mxu0 0.0
    %3999 = vmatprep.subr.mxu0 0.0
    %4000 = vmatpush2.msra.mxu0 0.0
    %4001 = vmatprep.subr.mxu0 0.0
    %4002 = vmatpush2.msra.mxu0 0.0
    %4003 = vmatprep.subr.mxu0 0.0
    %4004 = vmatpush2.msra.mxu0 0.0
    %4005 = vmatprep.subr.mxu0 0.0
    %4006 = vmatpush2.msra.mxu0 0.0
    %4007 = vmatprep.subr.mxu0 0.0
    %4008 = vmatpush2.msra.mxu0 0.0
    %4009 = vmatprep.subr.mxu0 0.0
    %4010 = vmatpush2.msra.mxu0 0.0
    %4011 = vmatprep.subr.mxu0 0.0
    %4012 = vmatpush2.msra.mxu0 0.0
    %4013 = vmatprep.subr.mxu0 0.0
    %4014 = vmatpush2.msra.mxu0 0.0
    %4015 = vmatprep.subr.mxu0 0.0
    %4016 = vmatpush2.msra.mxu0 0.0
    %4017 = vmatprep.subr.mxu0 0.0
    %4018 = vmatpush2.msra.mxu0 0.0
    %4019 = vmatprep.subr.mxu0 0.0
    %4020 = vmatpush2.msra.mxu0 0.0
    %4021 = vmatprep.subr.mxu0 0.0
    %4022 = vmatpush2.msra.mxu0 0.0
    %4023 = vmatprep.mubr.f32.mxu0 0.0
    %v4024 = vand.u32 %v2165, 4294901760
    %4025 = vmatmul.mubr.f32.gmra.mxu0 %v4024
    %v4026 = vpop.f32.mrf.mxu0
    %v4027 = vadd.f32 %v3923, %v4026
    %v4028 = vpop.f32.mrf.mxu0
    %v4029 = vadd.f32 %v3925, %v4028
    %4030 = vdwg.mxu0
    %v4031 = vand.u32 %v2280, 4294901760
    %4032 = vmatprep.subr.mxu0 %v4031
    %v4033 = vand.u32 %v2279, 4294901760
    %4034 = vmatpush1.msra.mxu0 %v4033
    %v4035 = vand.u32 %v2273, 4294901760
    %4036 = vmatprep.subr.mxu0 %v4035
    %v4037 = vand.u32 %v2272, 4294901760
    %4038 = vmatpush1.msra.mxu0 %v4037
    %v4039 = vand.u32 %v2266, 4294901760
    %4040 = vmatprep.subr.mxu0 %v4039
    %v4041 = vand.u32 %v2265, 4294901760
    %4042 = vmatpush1.msra.mxu0 %v4041
    %v4043 = vand.u32 %v2259, 4294901760
    %4044 = vmatprep.subr.mxu0 %v4043
    %v4045 = vand.u32 %v2258, 4294901760
    %4046 = vmatpush1.msra.mxu0 %v4045
    %v4047 = vand.u32 %v2252, 4294901760
    %4048 = vmatprep.subr.mxu0 %v4047
    %v4049 = vand.u32 %v2251, 4294901760
    %4050 = vmatpush1.msra.mxu0 %v4049
    %v4051 = vand.u32 %v2245, 4294901760
    %4052 = vmatprep.subr.mxu0 %v4051
    %v4053 = vand.u32 %v2244, 4294901760
    %4054 = vmatpush1.msra.mxu0 %v4053
    %v4055 = vand.u32 %v2238, 4294901760
    %4056 = vmatprep.subr.mxu0 %v4055
    %v4057 = vand.u32 %v2237, 4294901760
    %4058 = vmatpush1.msra.mxu0 %v4057
    %v4059 = vand.u32 %v2231, 4294901760
    %4060 = vmatprep.subr.mxu0 %v4059
    %v4061 = vand.u32 %v2230, 4294901760
    %4062 = vmatpush1.msra.mxu0 %v4061
    %v4063 = vand.u32 %v2224, 4294901760
    %4064 = vmatprep.subr.mxu0 %v4063
    %v4065 = vand.u32 %v2223, 4294901760
    %4066 = vmatpush1.msra.mxu0 %v4065
    %v4067 = vand.u32 %v2217, 4294901760
    %4068 = vmatprep.subr.mxu0 %v4067
    %v4069 = vand.u32 %v2216, 4294901760
    %4070 = vmatpush1.msra.mxu0 %v4069
    %v4071 = vand.u32 %v2210, 4294901760
    %4072 = vmatprep.subr.mxu0 %v4071
    %v4073 = vand.u32 %v2209, 4294901760
    %4074 = vmatpush1.msra.mxu0 %v4073
    %v4075 = vand.u32 %v2203, 4294901760
    %4076 = vmatprep.subr.mxu0 %v4075
    %v4077 = vand.u32 %v2202, 4294901760
    %4078 = vmatpush1.msra.mxu0 %v4077
    %v4079 = vand.u32 %v2196, 4294901760
    %4080 = vmatprep.subr.mxu0 %v4079
    %v4081 = vand.u32 %v2195, 4294901760
    %4082 = vmatpush1.msra.mxu0 %v4081
    %v4083 = vand.u32 %v2189, 4294901760
    %4084 = vmatprep.subr.mxu0 %v4083
    %v4085 = vand.u32 %v2188, 4294901760
    %4086 = vmatpush1.msra.mxu0 %v4085
    %v4087 = vand.u32 %v2182, 4294901760
    %4088 = vmatprep.subr.mxu0 %v4087
    %v4089 = vand.u32 %v2181, 4294901760
    %4090 = vmatpush1.msra.mxu0 %v4089
    %v4091 = vand.u32 %v2175, 4294901760
    %4092 = vmatprep.subr.mxu0 %v4091
    %v4093 = vand.u32 %v2174, 4294901760
    %4094 = vmatpush1.msra.mxu0 %v4093
    %4095 = vmatprep.subr.mxu0 0.0
    %4096 = vmatpush2.msra.mxu0 0.0
    %4097 = vmatprep.subr.mxu0 0.0
    %4098 = vmatpush2.msra.mxu0 0.0
    %4099 = vmatprep.subr.mxu0 0.0
    %4100 = vmatpush2.msra.mxu0 0.0
    %4101 = vmatprep.subr.mxu0 0.0
    %4102 = vmatpush2.msra.mxu0 0.0
    %4103 = vmatprep.subr.mxu0 0.0
    %4104 = vmatpush2.msra.mxu0 0.0
    %4105 = vmatprep.subr.mxu0 0.0
    %4106 = vmatpush2.msra.mxu0 0.0
    %4107 = vmatprep.subr.mxu0 0.0
    %4108 = vmatpush2.msra.mxu0 0.0
    %4109 = vmatprep.subr.mxu0 0.0
    %4110 = vmatpush2.msra.mxu0 0.0
    %4111 = vmatprep.subr.mxu0 0.0
    %4112 = vmatpush2.msra.mxu0 0.0
    %4113 = vmatprep.subr.mxu0 0.0
    %4114 = vmatpush2.msra.mxu0 0.0
    %4115 = vmatprep.subr.mxu0 0.0
    %4116 = vmatpush2.msra.mxu0 0.0
    %4117 = vmatprep.subr.mxu0 0.0
    %4118 = vmatpush2.msra.mxu0 0.0
    %4119 = vmatprep.subr.mxu0 0.0
    %4120 = vmatpush2.msra.mxu0 0.0
    %4121 = vmatprep.subr.mxu0 0.0
    %4122 = vmatpush2.msra.mxu0 0.0
    %4123 = vmatprep.subr.mxu0 0.0
    %4124 = vmatpush2.msra.mxu0 0.0
    %4125 = vmatprep.subr.mxu0 0.0
    %4126 = vmatpush2.msra.mxu0 0.0
    %4127 = vmatprep.mubr.f32.mxu0 0.0
    %v4128 = vand.u32 %v2165, 4294901760
    %v4129 = vsub.f32 %v2165, %v4128
    %v4130 = vand.u32 %v4129, 4294901760
    %v4131 = vsub.f32 %v4129, %v4130
    %v4132 = vand.u32 %v4131, 4294901760
    %4133 = vmatmul.mubr.f32.gmra.mxu0 %v4132
    %v4134 = vpop.f32.mrf.mxu0
    %v4135 = vadd.f32 %v2305, %v4134
    %v4136 = vpop.f32.mrf.mxu0
    %v4137 = vadd.f32 %v2309, %v4136
    %4138 = vdwg.mxu0
    %v4139 = vand.u32 %v2280, 4294901760
    %v4140 = vsub.f32 %v2280, %v4139
    %v4141 = vand.u32 %v4140, 4294901760
    %v4142 = vsub.f32 %v4140, %v4141
    %v4143 = vand.u32 %v4142, 4294901760
    %4144 = vmatprep.subr.mxu0 %v4143
    %v4145 = vand.u32 %v2279, 4294901760
    %v4146 = vsub.f32 %v2279, %v4145
    %v4147 = vand.u32 %v4146, 4294901760
    %v4148 = vsub.f32 %v4146, %v4147
    %v4149 = vand.u32 %v4148, 4294901760
    %4150 = vmatpush1.msra.mxu0 %v4149
    %v4151 = vand.u32 %v2273, 4294901760
    %v4152 = vsub.f32 %v2273, %v4151
    %v4153 = vand.u32 %v4152, 4294901760
    %v4154 = vsub.f32 %v4152, %v4153
    %v4155 = vand.u32 %v4154, 4294901760
    %4156 = vmatprep.subr.mxu0 %v4155
    %v4157 = vand.u32 %v2272, 4294901760
    %v4158 = vsub.f32 %v2272, %v4157
    %v4159 = vand.u32 %v4158, 4294901760
    %v4160 = vsub.f32 %v4158, %v4159
    %v4161 = vand.u32 %v4160, 4294901760
    %4162 = vmatpush1.msra.mxu0 %v4161
    %v4163 = vand.u32 %v2266, 4294901760
    %v4164 = vsub.f32 %v2266, %v4163
    %v4165 = vand.u32 %v4164, 4294901760
    %v4166 = vsub.f32 %v4164, %v4165
    %v4167 = vand.u32 %v4166, 4294901760
    %4168 = vmatprep.subr.mxu0 %v4167
    %v4169 = vand.u32 %v2265, 4294901760
    %v4170 = vsub.f32 %v2265, %v4169
    %v4171 = vand.u32 %v4170, 4294901760
    %v4172 = vsub.f32 %v4170, %v4171
    %v4173 = vand.u32 %v4172, 4294901760
    %4174 = vmatpush1.msra.mxu0 %v4173
    %v4175 = vand.u32 %v2259, 4294901760
    %v4176 = vsub.f32 %v2259, %v4175
    %v4177 = vand.u32 %v4176, 4294901760
    %v4178 = vsub.f32 %v4176, %v4177
    %v4179 = vand.u32 %v4178, 4294901760
    %4180 = vmatprep.subr.mxu0 %v4179
    %v4181 = vand.u32 %v2258, 4294901760
    %v4182 = vsub.f32 %v2258, %v4181
    %v4183 = vand.u32 %v4182, 4294901760
    %v4184 = vsub.f32 %v4182, %v4183
    %v4185 = vand.u32 %v4184, 4294901760
    %4186 = vmatpush1.msra.mxu0 %v4185
    %v4187 = vand.u32 %v2252, 4294901760
    %v4188 = vsub.f32 %v2252, %v4187
    %v4189 = vand.u32 %v4188, 4294901760
    %v4190 = vsub.f32 %v4188, %v4189
    %v4191 = vand.u32 %v4190, 4294901760
    %4192 = vmatprep.subr.mxu0 %v4191
    %v4193 = vand.u32 %v2251, 4294901760
    %v4194 = vsub.f32 %v2251, %v4193
    %v4195 = vand.u32 %v4194, 4294901760
    %v4196 = vsub.f32 %v4194, %v4195
    %v4197 = vand.u32 %v4196, 4294901760
    %4198 = vmatpush1.msra.mxu0 %v4197
    %v4199 = vand.u32 %v2245, 4294901760
    %v4200 = vsub.f32 %v2245, %v4199
    %v4201 = vand.u32 %v4200, 4294901760
    %v4202 = vsub.f32 %v4200, %v4201
    %v4203 = vand.u32 %v4202, 4294901760
    %4204 = vmatprep.subr.mxu0 %v4203
    %v4205 = vand.u32 %v2244, 4294901760
    %v4206 = vsub.f32 %v2244, %v4205
    %v4207 = vand.u32 %v4206, 4294901760
    %v4208 = vsub.f32 %v4206, %v4207
    %v4209 = vand.u32 %v4208, 4294901760
    %4210 = vmatpush1.msra.mxu0 %v4209
    %v4211 = vand.u32 %v2238, 4294901760
    %v4212 = vsub.f32 %v2238, %v4211
    %v4213 = vand.u32 %v4212, 4294901760
    %v4214 = vsub.f32 %v4212, %v4213
    %v4215 = vand.u32 %v4214, 4294901760
    %4216 = vmatprep.subr.mxu0 %v4215
    %v4217 = vand.u32 %v2237, 4294901760
    %v4218 = vsub.f32 %v2237, %v4217
    %v4219 = vand.u32 %v4218, 4294901760
    %v4220 = vsub.f32 %v4218, %v4219
    %v4221 = vand.u32 %v4220, 4294901760
    %4222 = vmatpush1.msra.mxu0 %v4221
    %v4223 = vand.u32 %v2231, 4294901760
    %v4224 = vsub.f32 %v2231, %v4223
    %v4225 = vand.u32 %v4224, 4294901760
    %v4226 = vsub.f32 %v4224, %v4225
    %v4227 = vand.u32 %v4226, 4294901760
    %4228 = vmatprep.subr.mxu0 %v4227
    %v4229 = vand.u32 %v2230, 4294901760
    %v4230 = vsub.f32 %v2230, %v4229
    %v4231 = vand.u32 %v4230, 4294901760
    %v4232 = vsub.f32 %v4230, %v4231
    %v4233 = vand.u32 %v4232, 4294901760
    %4234 = vmatpush1.msra.mxu0 %v4233
    %v4235 = vand.u32 %v2224, 4294901760
    %v4236 = vsub.f32 %v2224, %v4235
    %v4237 = vand.u32 %v4236, 4294901760
    %v4238 = vsub.f32 %v4236, %v4237
    %v4239 = vand.u32 %v4238, 4294901760
    %4240 = vmatprep.subr.mxu0 %v4239
    %v4241 = vand.u32 %v2223, 4294901760
    %v4242 = vsub.f32 %v2223, %v4241
    %v4243 = vand.u32 %v4242, 4294901760
    %v4244 = vsub.f32 %v4242, %v4243
    %v4245 = vand.u32 %v4244, 4294901760
    %4246 = vmatpush1.msra.mxu0 %v4245
    %v4247 = vand.u32 %v2217, 4294901760
    %v4248 = vsub.f32 %v2217, %v4247
    %v4249 = vand.u32 %v4248, 4294901760
    %v4250 = vsub.f32 %v4248, %v4249
    %v4251 = vand.u32 %v4250, 4294901760
    %4252 = vmatprep.subr.mxu0 %v4251
    %v4253 = vand.u32 %v2216, 4294901760
    %v4254 = vsub.f32 %v2216, %v4253
    %v4255 = vand.u32 %v4254, 4294901760
    %v4256 = vsub.f32 %v4254, %v4255
    %v4257 = vand.u32 %v4256, 4294901760
    %4258 = vmatpush1.msra.mxu0 %v4257
    %v4259 = vand.u32 %v2210, 4294901760
    %v4260 = vsub.f32 %v2210, %v4259
    %v4261 = vand.u32 %v4260, 4294901760
    %v4262 = vsub.f32 %v4260, %v4261
    %v4263 = vand.u32 %v4262, 4294901760
    %4264 = vmatprep.subr.mxu0 %v4263
    %v4265 = vand.u32 %v2209, 4294901760
    %v4266 = vsub.f32 %v2209, %v4265
    %v4267 = vand.u32 %v4266, 4294901760
    %v4268 = vsub.f32 %v4266, %v4267
    %v4269 = vand.u32 %v4268, 4294901760
    %4270 = vmatpush1.msra.mxu0 %v4269
    %v4271 = vand.u32 %v2203, 4294901760
    %v4272 = vsub.f32 %v2203, %v4271
    %v4273 = vand.u32 %v4272, 4294901760
    %v4274 = vsub.f32 %v4272, %v4273
    %v4275 = vand.u32 %v4274, 4294901760
    %4276 = vmatprep.subr.mxu0 %v4275
    %v4277 = vand.u32 %v2202, 4294901760
    %v4278 = vsub.f32 %v2202, %v4277
    %v4279 = vand.u32 %v4278, 4294901760
    %v4280 = vsub.f32 %v4278, %v4279
    %v4281 = vand.u32 %v4280, 4294901760
    %4282 = vmatpush1.msra.mxu0 %v4281
    %v4283 = vand.u32 %v2196, 4294901760
    %v4284 = vsub.f32 %v2196, %v4283
    %v4285 = vand.u32 %v4284, 4294901760
    %v4286 = vsub.f32 %v4284, %v4285
    %v4287 = vand.u32 %v4286, 4294901760
    %4288 = vmatprep.subr.mxu0 %v4287
    %v4289 = vand.u32 %v2195, 4294901760
    %v4290 = vsub.f32 %v2195, %v4289
    %v4291 = vand.u32 %v4290, 4294901760
    %v4292 = vsub.f32 %v4290, %v4291
    %v4293 = vand.u32 %v4292, 4294901760
    %4294 = vmatpush1.msra.mxu0 %v4293
    %v4295 = vand.u32 %v2189, 4294901760
    %v4296 = vsub.f32 %v2189, %v4295
    %v4297 = vand.u32 %v4296, 4294901760
    %v4298 = vsub.f32 %v4296, %v4297
    %v4299 = vand.u32 %v4298, 4294901760
    %4300 = vmatprep.subr.mxu0 %v4299
    %v4301 = vand.u32 %v2188, 4294901760
    %v4302 = vsub.f32 %v2188, %v4301
    %v4303 = vand.u32 %v4302, 4294901760
    %v4304 = vsub.f32 %v4302, %v4303
    %v4305 = vand.u32 %v4304, 4294901760
    %4306 = vmatpush1.msra.mxu0 %v4305
    %v4307 = vand.u32 %v2182, 4294901760
    %v4308 = vsub.f32 %v2182, %v4307
    %v4309 = vand.u32 %v4308, 4294901760
    %v4310 = vsub.f32 %v4308, %v4309
    %v4311 = vand.u32 %v4310, 4294901760
    %4312 = vmatprep.subr.mxu0 %v4311
    %v4313 = vand.u32 %v2181, 4294901760
    %v4314 = vsub.f32 %v2181, %v4313
    %v4315 = vand.u32 %v4314, 4294901760
    %v4316 = vsub.f32 %v4314, %v4315
    %v4317 = vand.u32 %v4316, 4294901760
    %4318 = vmatpush1.msra.mxu0 %v4317
    %v4319 = vand.u32 %v2175, 4294901760
    %v4320 = vsub.f32 %v2175, %v4319
    %v4321 = vand.u32 %v4320, 4294901760
    %v4322 = vsub.f32 %v4320, %v4321
    %v4323 = vand.u32 %v4322, 4294901760
    %4324 = vmatprep.subr.mxu0 %v4323
    %v4325 = vand.u32 %v2174, 4294901760
    %v4326 = vsub.f32 %v2174, %v4325
    %v4327 = vand.u32 %v4326, 4294901760
    %v4328 = vsub.f32 %v4326, %v4327
    %v4329 = vand.u32 %v4328, 4294901760
    %4330 = vmatpush1.msra.mxu0 %v4329
    %4331 = vmatprep.subr.mxu0 0.0
    %4332 = vmatpush2.msra.mxu0 0.0
    %4333 = vmatprep.subr.mxu0 0.0
    %4334 = vmatpush2.msra.mxu0 0.0
    %4335 = vmatprep.subr.mxu0 0.0
    %4336 = vmatpush2.msra.mxu0 0.0
    %4337 = vmatprep.subr.mxu0 0.0
    %4338 = vmatpush2.msra.mxu0 0.0
    %4339 = vmatprep.subr.mxu0 0.0
    %4340 = vmatpush2.msra.mxu0 0.0
    %4341 = vmatprep.subr.mxu0 0.0
    %4342 = vmatpush2.msra.mxu0 0.0
    %4343 = vmatprep.subr.mxu0 0.0
    %4344 = vmatpush2.msra.mxu0 0.0
    %4345 = vmatprep.subr.mxu0 0.0
    %4346 = vmatpush2.msra.mxu0 0.0
    %4347 = vmatprep.subr.mxu0 0.0
    %4348 = vmatpush2.msra.mxu0 0.0
    %4349 = vmatprep.subr.mxu0 0.0
    %4350 = vmatpush2.msra.mxu0 0.0
    %4351 = vmatprep.subr.mxu0 0.0
    %4352 = vmatpush2.msra.mxu0 0.0
    %4353 = vmatprep.subr.mxu0 0.0
    %4354 = vmatpush2.msra.mxu0 0.0
    %4355 = vmatprep.subr.mxu0 0.0
    %4356 = vmatpush2.msra.mxu0 0.0
    %4357 = vmatprep.subr.mxu0 0.0
    %4358 = vmatpush2.msra.mxu0 0.0
    %4359 = vmatprep.subr.mxu0 0.0
    %4360 = vmatpush2.msra.mxu0 0.0
    %4361 = vmatprep.subr.mxu0 0.0
    %4362 = vmatpush2.msra.mxu0 0.0
    %4363 = vmatprep.mubr.f32.mxu0 0.0
    %v4364 = vand.u32 %v2165, 4294901760
    %4365 = vmatmul.mubr.f32.gmra.mxu0 %v4364
    %v4366 = vpop.f32.mrf.mxu0
    %v4367 = vadd.f32 %v4135, %v4366
    %v4368 = vpop.f32.mrf.mxu0
    %v4369 = vadd.f32 %v4137, %v4368
    %4370 = vdwg.mxu0
    %v4371 = vand.u32 %v2280, 4294901760
    %v4372 = vsub.f32 %v2280, %v4371
    %4373 = vmatprep.subr.mxu0 %v4372
    %v4374 = vand.u32 %v2279, 4294901760
    %v4375 = vsub.f32 %v2279, %v4374
    %4376 = vmatpush1.msra.mxu0 %v4375
    %v4377 = vand.u32 %v2273, 4294901760
    %v4378 = vsub.f32 %v2273, %v4377
    %4379 = vmatprep.subr.mxu0 %v4378
    %v4380 = vand.u32 %v2272, 4294901760
    %v4381 = vsub.f32 %v2272, %v4380
    %4382 = vmatpush1.msra.mxu0 %v4381
    %v4383 = vand.u32 %v2266, 4294901760
    %v4384 = vsub.f32 %v2266, %v4383
    %4385 = vmatprep.subr.mxu0 %v4384
    %v4386 = vand.u32 %v2265, 4294901760
    %v4387 = vsub.f32 %v2265, %v4386
    %4388 = vmatpush1.msra.mxu0 %v4387
    %v4389 = vand.u32 %v2259, 4294901760
    %v4390 = vsub.f32 %v2259, %v4389
    %4391 = vmatprep.subr.mxu0 %v4390
    %v4392 = vand.u32 %v2258, 4294901760
    %v4393 = vsub.f32 %v2258, %v4392
    %4394 = vmatpush1.msra.mxu0 %v4393
    %v4395 = vand.u32 %v2252, 4294901760
    %v4396 = vsub.f32 %v2252, %v4395
    %4397 = vmatprep.subr.mxu0 %v4396
    %v4398 = vand.u32 %v2251, 4294901760
    %v4399 = vsub.f32 %v2251, %v4398
    %4400 = vmatpush1.msra.mxu0 %v4399
    %v4401 = vand.u32 %v2245, 4294901760
    %v4402 = vsub.f32 %v2245, %v4401
    %4403 = vmatprep.subr.mxu0 %v4402
    %v4404 = vand.u32 %v2244, 4294901760
    %v4405 = vsub.f32 %v2244, %v4404
    %4406 = vmatpush1.msra.mxu0 %v4405
    %v4407 = vand.u32 %v2238, 4294901760
    %v4408 = vsub.f32 %v2238, %v4407
    %4409 = vmatprep.subr.mxu0 %v4408
    %v4410 = vand.u32 %v2237, 4294901760
    %v4411 = vsub.f32 %v2237, %v4410
    %4412 = vmatpush1.msra.mxu0 %v4411
    %v4413 = vand.u32 %v2231, 4294901760
    %v4414 = vsub.f32 %v2231, %v4413
    %4415 = vmatprep.subr.mxu0 %v4414
    %v4416 = vand.u32 %v2230, 4294901760
    %v4417 = vsub.f32 %v2230, %v4416
    %4418 = vmatpush1.msra.mxu0 %v4417
    %v4419 = vand.u32 %v2224, 4294901760
    %v4420 = vsub.f32 %v2224, %v4419
    %4421 = vmatprep.subr.mxu0 %v4420
    %v4422 = vand.u32 %v2223, 4294901760
    %v4423 = vsub.f32 %v2223, %v4422
    %4424 = vmatpush1.msra.mxu0 %v4423
    %v4425 = vand.u32 %v2217, 4294901760
    %v4426 = vsub.f32 %v2217, %v4425
    %4427 = vmatprep.subr.mxu0 %v4426
    %v4428 = vand.u32 %v2216, 4294901760
    %v4429 = vsub.f32 %v2216, %v4428
    %4430 = vmatpush1.msra.mxu0 %v4429
    %v4431 = vand.u32 %v2210, 4294901760
    %v4432 = vsub.f32 %v2210, %v4431
    %4433 = vmatprep.subr.mxu0 %v4432
    %v4434 = vand.u32 %v2209, 4294901760
    %v4435 = vsub.f32 %v2209, %v4434
    %4436 = vmatpush1.msra.mxu0 %v4435
    %v4437 = vand.u32 %v2203, 4294901760
    %v4438 = vsub.f32 %v2203, %v4437
    %4439 = vmatprep.subr.mxu0 %v4438
    %v4440 = vand.u32 %v2202, 4294901760
    %v4441 = vsub.f32 %v2202, %v4440
    %4442 = vmatpush1.msra.mxu0 %v4441
    %v4443 = vand.u32 %v2196, 4294901760
    %v4444 = vsub.f32 %v2196, %v4443
    %4445 = vmatprep.subr.mxu0 %v4444
    %v4446 = vand.u32 %v2195, 4294901760
    %v4447 = vsub.f32 %v2195, %v4446
    %4448 = vmatpush1.msra.mxu0 %v4447
    %v4449 = vand.u32 %v2189, 4294901760
    %v4450 = vsub.f32 %v2189, %v4449
    %4451 = vmatprep.subr.mxu0 %v4450
    %v4452 = vand.u32 %v2188, 4294901760
    %v4453 = vsub.f32 %v2188, %v4452
    %4454 = vmatpush1.msra.mxu0 %v4453
    %v4455 = vand.u32 %v2182, 4294901760
    %v4456 = vsub.f32 %v2182, %v4455
    %4457 = vmatprep.subr.mxu0 %v4456
    %v4458 = vand.u32 %v2181, 4294901760
    %v4459 = vsub.f32 %v2181, %v4458
    %4460 = vmatpush1.msra.mxu0 %v4459
    %v4461 = vand.u32 %v2175, 4294901760
    %v4462 = vsub.f32 %v2175, %v4461
    %4463 = vmatprep.subr.mxu0 %v4462
    %v4464 = vand.u32 %v2174, 4294901760
    %v4465 = vsub.f32 %v2174, %v4464
    %4466 = vmatpush1.msra.mxu0 %v4465
    %4467 = vmatprep.subr.mxu0 0.0
    %4468 = vmatpush2.msra.mxu0 0.0
    %4469 = vmatprep.subr.mxu0 0.0
    %4470 = vmatpush2.msra.mxu0 0.0
    %4471 = vmatprep.subr.mxu0 0.0
    %4472 = vmatpush2.msra.mxu0 0.0
    %4473 = vmatprep.subr.mxu0 0.0
    %4474 = vmatpush2.msra.mxu0 0.0
    %4475 = vmatprep.subr.mxu0 0.0
    %4476 = vmatpush2.msra.mxu0 0.0
    %4477 = vmatprep.subr.mxu0 0.0
    %4478 = vmatpush2.msra.mxu0 0.0
    %4479 = vmatprep.subr.mxu0 0.0
    %4480 = vmatpush2.msra.mxu0 0.0
    %4481 = vmatprep.subr.mxu0 0.0
    %4482 = vmatpush2.msra.mxu0 0.0
    %4483 = vmatprep.subr.mxu0 0.0
    %4484 = vmatpush2.msra.mxu0 0.0
    %4485 = vmatprep.subr.mxu0 0.0
    %4486 = vmatpush2.msra.mxu0 0.0
    %4487 = vmatprep.subr.mxu0 0.0
    %4488 = vmatpush2.msra.mxu0 0.0
    %4489 = vmatprep.subr.mxu0 0.0
    %4490 = vmatpush2.msra.mxu0 0.0
    %4491 = vmatprep.subr.mxu0 0.0
    %4492 = vmatpush2.msra.mxu0 0.0
    %4493 = vmatprep.subr.mxu0 0.0
    %4494 = vmatpush2.msra.mxu0 0.0
    %4495 = vmatprep.subr.mxu0 0.0
    %4496 = vmatpush2.msra.mxu0 0.0
    %4497 = vmatprep.subr.mxu0 0.0
    %4498 = vmatpush2.msra.mxu0 0.0
    %4499 = vmatprep.mubr.f32.mxu0 0.0
    %v4500 = vand.u32 %v2165, 4294901760
    %v4501 = vsub.f32 %v2165, %v4500
    %4502 = vmatmul.mubr.f32.gmra.mxu0 %v4501
    %v4503 = vpop.f32.mrf.mxu0
    %v4504 = vadd.f32 %v4367, %v4503
    %v4505 = vpop.f32.mrf.mxu0
    %v4506 = vadd.f32 %v4369, %v4505
    %4507 = vdwg.mxu0
    %v4508 = vand.u32 %v2280, 4294901760
    %4509 = vmatprep.subr.mxu0 %v4508
    %v4510 = vand.u32 %v2279, 4294901760
    %4511 = vmatpush1.msra.mxu0 %v4510
    %v4512 = vand.u32 %v2273, 4294901760
    %4513 = vmatprep.subr.mxu0 %v4512
    %v4514 = vand.u32 %v2272, 4294901760
    %4515 = vmatpush1.msra.mxu0 %v4514
    %v4516 = vand.u32 %v2266, 4294901760
    %4517 = vmatprep.subr.mxu0 %v4516
    %v4518 = vand.u32 %v2265, 4294901760
    %4519 = vmatpush1.msra.mxu0 %v4518
    %v4520 = vand.u32 %v2259, 4294901760
    %4521 = vmatprep.subr.mxu0 %v4520
    %v4522 = vand.u32 %v2258, 4294901760
    %4523 = vmatpush1.msra.mxu0 %v4522
    %v4524 = vand.u32 %v2252, 4294901760
    %4525 = vmatprep.subr.mxu0 %v4524
    %v4526 = vand.u32 %v2251, 4294901760
    %4527 = vmatpush1.msra.mxu0 %v4526
    %v4528 = vand.u32 %v2245, 4294901760
    %4529 = vmatprep.subr.mxu0 %v4528
    %v4530 = vand.u32 %v2244, 4294901760
    %4531 = vmatpush1.msra.mxu0 %v4530
    %v4532 = vand.u32 %v2238, 4294901760
    %4533 = vmatprep.subr.mxu0 %v4532
    %v4534 = vand.u32 %v2237, 4294901760
    %4535 = vmatpush1.msra.mxu0 %v4534
    %v4536 = vand.u32 %v2231, 4294901760
    %4537 = vmatprep.subr.mxu0 %v4536
    %v4538 = vand.u32 %v2230, 4294901760
    %4539 = vmatpush1.msra.mxu0 %v4538
    %v4540 = vand.u32 %v2224, 4294901760
    %4541 = vmatprep.subr.mxu0 %v4540
    %v4542 = vand.u32 %v2223, 4294901760
    %4543 = vmatpush1.msra.mxu0 %v4542
    %v4544 = vand.u32 %v2217, 4294901760
    %4545 = vmatprep.subr.mxu0 %v4544
    %v4546 = vand.u32 %v2216, 4294901760
    %4547 = vmatpush1.msra.mxu0 %v4546
    %v4548 = vand.u32 %v2210, 4294901760
    %4549 = vmatprep.subr.mxu0 %v4548
    %v4550 = vand.u32 %v2209, 4294901760
    %4551 = vmatpush1.msra.mxu0 %v4550
    %v4552 = vand.u32 %v2203, 4294901760
    %4553 = vmatprep.subr.mxu0 %v4552
    %v4554 = vand.u32 %v2202, 4294901760
    %4555 = vmatpush1.msra.mxu0 %v4554
    %v4556 = vand.u32 %v2196, 4294901760
    %4557 = vmatprep.subr.mxu0 %v4556
    %v4558 = vand.u32 %v2195, 4294901760
    %4559 = vmatpush1.msra.mxu0 %v4558
    %v4560 = vand.u32 %v2189, 4294901760
    %4561 = vmatprep.subr.mxu0 %v4560
    %v4562 = vand.u32 %v2188, 4294901760
    %4563 = vmatpush1.msra.mxu0 %v4562
    %v4564 = vand.u32 %v2182, 4294901760
    %4565 = vmatprep.subr.mxu0 %v4564
    %v4566 = vand.u32 %v2181, 4294901760
    %4567 = vmatpush1.msra.mxu0 %v4566
    %v4568 = vand.u32 %v2175, 4294901760
    %4569 = vmatprep.subr.mxu0 %v4568
    %v4570 = vand.u32 %v2174, 4294901760
    %4571 = vmatpush1.msra.mxu0 %v4570
    %4572 = vmatprep.subr.mxu0 0.0
    %4573 = vmatpush2.msra.mxu0 0.0
    %4574 = vmatprep.subr.mxu0 0.0
    %4575 = vmatpush2.msra.mxu0 0.0
    %4576 = vmatprep.subr.mxu0 0.0
    %4577 = vmatpush2.msra.mxu0 0.0
    %4578 = vmatprep.subr.mxu0 0.0
    %4579 = vmatpush2.msra.mxu0 0.0
    %4580 = vmatprep.subr.mxu0 0.0
    %4581 = vmatpush2.msra.mxu0 0.0
    %4582 = vmatprep.subr.mxu0 0.0
    %4583 = vmatpush2.msra.mxu0 0.0
    %4584 = vmatprep.subr.mxu0 0.0
    %4585 = vmatpush2.msra.mxu0 0.0
    %4586 = vmatprep.subr.mxu0 0.0
    %4587 = vmatpush2.msra.mxu0 0.0
    %4588 = vmatprep.subr.mxu0 0.0
    %4589 = vmatpush2.msra.mxu0 0.0
    %4590 = vmatprep.subr.mxu0 0.0
    %4591 = vmatpush2.msra.mxu0 0.0
    %4592 = vmatprep.subr.mxu0 0.0
    %4593 = vmatpush2.msra.mxu0 0.0
    %4594 = vmatprep.subr.mxu0 0.0
    %4595 = vmatpush2.msra.mxu0 0.0
    %4596 = vmatprep.subr.mxu0 0.0
    %4597 = vmatpush2.msra.mxu0 0.0
    %4598 = vmatprep.subr.mxu0 0.0
    %4599 = vmatpush2.msra.mxu0 0.0
    %4600 = vmatprep.subr.mxu0 0.0
    %4601 = vmatpush2.msra.mxu0 0.0
    %4602 = vmatprep.subr.mxu0 0.0
    %4603 = vmatpush2.msra.mxu0 0.0
    %4604 = vmatprep.mubr.f32.mxu0 0.0
    %v4605 = vand.u32 %v2165, 4294901760
    %v4606 = vsub.f32 %v2165, %v4605
    %v4607 = vand.u32 %v4606, 4294901760
    %4608 = vmatmul.mubr.f32.gmra.mxu0 %v4607
    %v4609 = vpop.f32.mrf.mxu0
    %v4610 = vadd.f32 %v4504, %v4609
    %v4611 = vpop.f32.mrf.mxu0
    %v4612 = vadd.f32 %v4506, %v4611
    %4613 = vdwg.mxu0
    %v4614 = vand.u32 %v2280, 4294901760
    %v4615 = vsub.f32 %v2280, %v4614
    %v4616 = vand.u32 %v4615, 4294901760
    %4617 = vmatprep.subr.mxu0 %v4616
    %v4618 = vand.u32 %v2279, 4294901760
    %v4619 = vsub.f32 %v2279, %v4618
    %v4620 = vand.u32 %v4619, 4294901760
    %4621 = vmatpush1.msra.mxu0 %v4620
    %v4622 = vand.u32 %v2273, 4294901760
    %v4623 = vsub.f32 %v2273, %v4622
    %v4624 = vand.u32 %v4623, 4294901760
    %4625 = vmatprep.subr.mxu0 %v4624
    %v4626 = vand.u32 %v2272, 4294901760
    %v4627 = vsub.f32 %v2272, %v4626
    %v4628 = vand.u32 %v4627, 4294901760
    %4629 = vmatpush1.msra.mxu0 %v4628
    %v4630 = vand.u32 %v2266, 4294901760
    %v4631 = vsub.f32 %v2266, %v4630
    %v4632 = vand.u32 %v4631, 4294901760
    %4633 = vmatprep.subr.mxu0 %v4632
    %v4634 = vand.u32 %v2265, 4294901760
    %v4635 = vsub.f32 %v2265, %v4634
    %v4636 = vand.u32 %v4635, 4294901760
    %4637 = vmatpush1.msra.mxu0 %v4636
    %v4638 = vand.u32 %v2259, 4294901760
    %v4639 = vsub.f32 %v2259, %v4638
    %v4640 = vand.u32 %v4639, 4294901760
    %4641 = vmatprep.subr.mxu0 %v4640
    %v4642 = vand.u32 %v2258, 4294901760
    %v4643 = vsub.f32 %v2258, %v4642
    %v4644 = vand.u32 %v4643, 4294901760
    %4645 = vmatpush1.msra.mxu0 %v4644
    %v4646 = vand.u32 %v2252, 4294901760
    %v4647 = vsub.f32 %v2252, %v4646
    %v4648 = vand.u32 %v4647, 4294901760
    %4649 = vmatprep.subr.mxu0 %v4648
    %v4650 = vand.u32 %v2251, 4294901760
    %v4651 = vsub.f32 %v2251, %v4650
    %v4652 = vand.u32 %v4651, 4294901760
    %4653 = vmatpush1.msra.mxu0 %v4652
    %v4654 = vand.u32 %v2245, 4294901760
    %v4655 = vsub.f32 %v2245, %v4654
    %v4656 = vand.u32 %v4655, 4294901760
    %4657 = vmatprep.subr.mxu0 %v4656
    %v4658 = vand.u32 %v2244, 4294901760
    %v4659 = vsub.f32 %v2244, %v4658
    %v4660 = vand.u32 %v4659, 4294901760
    %4661 = vmatpush1.msra.mxu0 %v4660
    %v4662 = vand.u32 %v2238, 4294901760
    %v4663 = vsub.f32 %v2238, %v4662
    %v4664 = vand.u32 %v4663, 4294901760
    %4665 = vmatprep.subr.mxu0 %v4664
    %v4666 = vand.u32 %v2237, 4294901760
    %v4667 = vsub.f32 %v2237, %v4666
    %v4668 = vand.u32 %v4667, 4294901760
    %4669 = vmatpush1.msra.mxu0 %v4668
    %v4670 = vand.u32 %v2231, 4294901760
    %v4671 = vsub.f32 %v2231, %v4670
    %v4672 = vand.u32 %v4671, 4294901760
    %4673 = vmatprep.subr.mxu0 %v4672
    %v4674 = vand.u32 %v2230, 4294901760
    %v4675 = vsub.f32 %v2230, %v4674
    %v4676 = vand.u32 %v4675, 4294901760
    %4677 = vmatpush1.msra.mxu0 %v4676
    %v4678 = vand.u32 %v2224, 4294901760
    %v4679 = vsub.f32 %v2224, %v4678
    %v4680 = vand.u32 %v4679, 4294901760
    %4681 = vmatprep.subr.mxu0 %v4680
    %v4682 = vand.u32 %v2223, 4294901760
    %v4683 = vsub.f32 %v2223, %v4682
    %v4684 = vand.u32 %v4683, 4294901760
    %4685 = vmatpush1.msra.mxu0 %v4684
    %v4686 = vand.u32 %v2217, 4294901760
    %v4687 = vsub.f32 %v2217, %v4686
    %v4688 = vand.u32 %v4687, 4294901760
    %4689 = vmatprep.subr.mxu0 %v4688
    %v4690 = vand.u32 %v2216, 4294901760
    %v4691 = vsub.f32 %v2216, %v4690
    %v4692 = vand.u32 %v4691, 4294901760
    %4693 = vmatpush1.msra.mxu0 %v4692
    %v4694 = vand.u32 %v2210, 4294901760
    %v4695 = vsub.f32 %v2210, %v4694
    %v4696 = vand.u32 %v4695, 4294901760
    %4697 = vmatprep.subr.mxu0 %v4696
    %v4698 = vand.u32 %v2209, 4294901760
    %v4699 = vsub.f32 %v2209, %v4698
    %v4700 = vand.u32 %v4699, 4294901760
    %4701 = vmatpush1.msra.mxu0 %v4700
    %v4702 = vand.u32 %v2203, 4294901760
    %v4703 = vsub.f32 %v2203, %v4702
    %v4704 = vand.u32 %v4703, 4294901760
    %4705 = vmatprep.subr.mxu0 %v4704
    %v4706 = vand.u32 %v2202, 4294901760
    %v4707 = vsub.f32 %v2202, %v4706
    %v4708 = vand.u32 %v4707, 4294901760
    %4709 = vmatpush1.msra.mxu0 %v4708
    %v4710 = vand.u32 %v2196, 4294901760
    %v4711 = vsub.f32 %v2196, %v4710
    %v4712 = vand.u32 %v4711, 4294901760
    %4713 = vmatprep.subr.mxu0 %v4712
    %v4714 = vand.u32 %v2195, 4294901760
    %v4715 = vsub.f32 %v2195, %v4714
    %v4716 = vand.u32 %v4715, 4294901760
    %4717 = vmatpush1.msra.mxu0 %v4716
    %v4718 = vand.u32 %v2189, 4294901760
    %v4719 = vsub.f32 %v2189, %v4718
    %v4720 = vand.u32 %v4719, 4294901760
    %4721 = vmatprep.subr.mxu0 %v4720
    %v4722 = vand.u32 %v2188, 4294901760
    %v4723 = vsub.f32 %v2188, %v4722
    %v4724 = vand.u32 %v4723, 4294901760
    %4725 = vmatpush1.msra.mxu0 %v4724
    %v4726 = vand.u32 %v2182, 4294901760
    %v4727 = vsub.f32 %v2182, %v4726
    %v4728 = vand.u32 %v4727, 4294901760
    %4729 = vmatprep.subr.mxu0 %v4728
    %v4730 = vand.u32 %v2181, 4294901760
    %v4731 = vsub.f32 %v2181, %v4730
    %v4732 = vand.u32 %v4731, 4294901760
    %4733 = vmatpush1.msra.mxu0 %v4732
    %v4734 = vand.u32 %v2175, 4294901760
    %v4735 = vsub.f32 %v2175, %v4734
    %v4736 = vand.u32 %v4735, 4294901760
    %4737 = vmatprep.subr.mxu0 %v4736
    %v4738 = vand.u32 %v2174, 4294901760
    %v4739 = vsub.f32 %v2174, %v4738
    %v4740 = vand.u32 %v4739, 4294901760
    %4741 = vmatpush1.msra.mxu0 %v4740
    %4742 = vmatprep.subr.mxu0 0.0
    %4743 = vmatpush2.msra.mxu0 0.0
    %4744 = vmatprep.subr.mxu0 0.0
    %4745 = vmatpush2.msra.mxu0 0.0
    %4746 = vmatprep.subr.mxu0 0.0
    %4747 = vmatpush2.msra.mxu0 0.0
    %4748 = vmatprep.subr.mxu0 0.0
    %4749 = vmatpush2.msra.mxu0 0.0
    %4750 = vmatprep.subr.mxu0 0.0
    %4751 = vmatpush2.msra.mxu0 0.0
    %4752 = vmatprep.subr.mxu0 0.0
    %4753 = vmatpush2.msra.mxu0 0.0
    %4754 = vmatprep.subr.mxu0 0.0
    %4755 = vmatpush2.msra.mxu0 0.0
    %4756 = vmatprep.subr.mxu0 0.0
    %4757 = vmatpush2.msra.mxu0 0.0
    %4758 = vmatprep.subr.mxu0 0.0
    %4759 = vmatpush2.msra.mxu0 0.0
    %4760 = vmatprep.subr.mxu0 0.0
    %4761 = vmatpush2.msra.mxu0 0.0
    %4762 = vmatprep.subr.mxu0 0.0
    %4763 = vmatpush2.msra.mxu0 0.0
    %4764 = vmatprep.subr.mxu0 0.0
    %4765 = vmatpush2.msra.mxu0 0.0
    %4766 = vmatprep.subr.mxu0 0.0
    %4767 = vmatpush2.msra.mxu0 0.0
    %4768 = vmatprep.subr.mxu0 0.0
    %4769 = vmatpush2.msra.mxu0 0.0
    %4770 = vmatprep.subr.mxu0 0.0
    %4771 = vmatpush2.msra.mxu0 0.0
    %4772 = vmatprep.subr.mxu0 0.0
    %4773 = vmatpush2.msra.mxu0 0.0
    %4774 = vmatprep.mubr.f32.mxu0 0.0
    %v4775 = vand.u32 %v2165, 4294901760
    %4776 = vmatmul.mubr.f32.gmra.mxu0 %v4775
    %v4777 = vpop.f32.mrf.mxu0
    %v4778 = vadd.f32 %v4610, %v4777
    %v4779 = vpop.f32.mrf.mxu0
    %v4780 = vadd.f32 %v4612, %v4779
    %4781 = vdwg.mxu0
    %v4782 = vand.u32 %v2280, 4294901760
    %4783 = vmatprep.subr.mxu0 %v4782
    %v4784 = vand.u32 %v2279, 4294901760
    %4785 = vmatpush1.msra.mxu0 %v4784
    %v4786 = vand.u32 %v2273, 4294901760
    %4787 = vmatprep.subr.mxu0 %v4786
    %v4788 = vand.u32 %v2272, 4294901760
    %4789 = vmatpush1.msra.mxu0 %v4788
    %v4790 = vand.u32 %v2266, 4294901760
    %4791 = vmatprep.subr.mxu0 %v4790
    %v4792 = vand.u32 %v2265, 4294901760
    %4793 = vmatpush1.msra.mxu0 %v4792
    %v4794 = vand.u32 %v2259, 4294901760
    %4795 = vmatprep.subr.mxu0 %v4794
    %v4796 = vand.u32 %v2258, 4294901760
    %4797 = vmatpush1.msra.mxu0 %v4796
    %v4798 = vand.u32 %v2252, 4294901760
    %4799 = vmatprep.subr.mxu0 %v4798
    %v4800 = vand.u32 %v2251, 4294901760
    %4801 = vmatpush1.msra.mxu0 %v4800
    %v4802 = vand.u32 %v2245, 4294901760
    %4803 = vmatprep.subr.mxu0 %v4802
    %v4804 = vand.u32 %v2244, 4294901760
    %4805 = vmatpush1.msra.mxu0 %v4804
    %v4806 = vand.u32 %v2238, 4294901760
    %4807 = vmatprep.subr.mxu0 %v4806
    %v4808 = vand.u32 %v2237, 4294901760
    %4809 = vmatpush1.msra.mxu0 %v4808
    %v4810 = vand.u32 %v2231, 4294901760
    %4811 = vmatprep.subr.mxu0 %v4810
    %v4812 = vand.u32 %v2230, 4294901760
    %4813 = vmatpush1.msra.mxu0 %v4812
    %v4814 = vand.u32 %v2224, 4294901760
    %4815 = vmatprep.subr.mxu0 %v4814
    %v4816 = vand.u32 %v2223, 4294901760
    %4817 = vmatpush1.msra.mxu0 %v4816
    %v4818 = vand.u32 %v2217, 4294901760
    %4819 = vmatprep.subr.mxu0 %v4818
    %v4820 = vand.u32 %v2216, 4294901760
    %4821 = vmatpush1.msra.mxu0 %v4820
    %v4822 = vand.u32 %v2210, 4294901760
    %4823 = vmatprep.subr.mxu0 %v4822
    %v4824 = vand.u32 %v2209, 4294901760
    %4825 = vmatpush1.msra.mxu0 %v4824
    %v4826 = vand.u32 %v2203, 4294901760
    %4827 = vmatprep.subr.mxu0 %v4826
    %v4828 = vand.u32 %v2202, 4294901760
    %4829 = vmatpush1.msra.mxu0 %v4828
    %v4830 = vand.u32 %v2196, 4294901760
    %4831 = vmatprep.subr.mxu0 %v4830
    %v4832 = vand.u32 %v2195, 4294901760
    %4833 = vmatpush1.msra.mxu0 %v4832
    %v4834 = vand.u32 %v2189, 4294901760
    %4835 = vmatprep.subr.mxu0 %v4834
    %v4836 = vand.u32 %v2188, 4294901760
    %4837 = vmatpush1.msra.mxu0 %v4836
    %v4838 = vand.u32 %v2182, 4294901760
    %4839 = vmatprep.subr.mxu0 %v4838
    %v4840 = vand.u32 %v2181, 4294901760
    %4841 = vmatpush1.msra.mxu0 %v4840
    %v4842 = vand.u32 %v2175, 4294901760
    %4843 = vmatprep.subr.mxu0 %v4842
    %v4844 = vand.u32 %v2174, 4294901760
    %4845 = vmatpush1.msra.mxu0 %v4844
    %4846 = vmatprep.subr.mxu0 0.0
    %4847 = vmatpush2.msra.mxu0 0.0
    %4848 = vmatprep.subr.mxu0 0.0
    %4849 = vmatpush2.msra.mxu0 0.0
    %4850 = vmatprep.subr.mxu0 0.0
    %4851 = vmatpush2.msra.mxu0 0.0
    %4852 = vmatprep.subr.mxu0 0.0
    %4853 = vmatpush2.msra.mxu0 0.0
    %4854 = vmatprep.subr.mxu0 0.0
    %4855 = vmatpush2.msra.mxu0 0.0
    %4856 = vmatprep.subr.mxu0 0.0
    %4857 = vmatpush2.msra.mxu0 0.0
    %4858 = vmatprep.subr.mxu0 0.0
    %4859 = vmatpush2.msra.mxu0 0.0
    %4860 = vmatprep.subr.mxu0 0.0
    %4861 = vmatpush2.msra.mxu0 0.0
    %4862 = vmatprep.subr.mxu0 0.0
    %4863 = vmatpush2.msra.mxu0 0.0
    %4864 = vmatprep.subr.mxu0 0.0
    %4865 = vmatpush2.msra.mxu0 0.0
    %4866 = vmatprep.subr.mxu0 0.0
    %4867 = vmatpush2.msra.mxu0 0.0
    %4868 = vmatprep.subr.mxu0 0.0
    %4869 = vmatpush2.msra.mxu0 0.0
    %4870 = vmatprep.subr.mxu0 0.0
    %4871 = vmatpush2.msra.mxu0 0.0
    %4872 = vmatprep.subr.mxu0 0.0
    %4873 = vmatpush2.msra.mxu0 0.0
    %4874 = vmatprep.subr.mxu0 0.0
    %4875 = vmatpush2.msra.mxu0 0.0
    %4876 = vmatprep.subr.mxu0 0.0
    %4877 = vmatpush2.msra.mxu0 0.0
    %4878 = vmatprep.mubr.f32.mxu0 0.0
    %v4879 = vand.u32 %v2165, 4294901760
    %4880 = vmatmul.mubr.f32.gmra.mxu0 %v4879
    %v4881 = vpop.f32.mrf.mxu0
    %v4882 = vadd.f32 %v4778, %v4881
    %v4883 = vpop.f32.mrf.mxu0
    %v4884 = vadd.f32 %v4780, %v4883
    %4885 = vdwg.mxu0
    %4886 = vmatprep.subr.mxu0 0.0
    %v4887 = vand.u32 %v2281, 4294901760
    %4888 = vmatpush1.msra.mxu0 %v4887
    %4889 = vmatprep.subr.mxu0 0.0
    %v4890 = vand.u32 %v2274, 4294901760
    %4891 = vmatpush1.msra.mxu0 %v4890
    %4892 = vmatprep.subr.mxu0 0.0
    %v4893 = vand.u32 %v2267, 4294901760
    %4894 = vmatpush1.msra.mxu0 %v4893
    %4895 = vmatprep.subr.mxu0 0.0
    %v4896 = vand.u32 %v2260, 4294901760
    %4897 = vmatpush1.msra.mxu0 %v4896
    %4898 = vmatprep.subr.mxu0 0.0
    %v4899 = vand.u32 %v2253, 4294901760
    %4900 = vmatpush1.msra.mxu0 %v4899
    %4901 = vmatprep.subr.mxu0 0.0
    %v4902 = vand.u32 %v2246, 4294901760
    %4903 = vmatpush1.msra.mxu0 %v4902
    %4904 = vmatprep.subr.mxu0 0.0
    %v4905 = vand.u32 %v2239, 4294901760
    %4906 = vmatpush1.msra.mxu0 %v4905
    %4907 = vmatprep.subr.mxu0 0.0
    %v4908 = vand.u32 %v2232, 4294901760
    %4909 = vmatpush1.msra.mxu0 %v4908
    %4910 = vmatprep.subr.mxu0 0.0
    %v4911 = vand.u32 %v2225, 4294901760
    %4912 = vmatpush1.msra.mxu0 %v4911
    %4913 = vmatprep.subr.mxu0 0.0
    %v4914 = vand.u32 %v2218, 4294901760
    %4915 = vmatpush1.msra.mxu0 %v4914
    %4916 = vmatprep.subr.mxu0 0.0
    %v4917 = vand.u32 %v2211, 4294901760
    %4918 = vmatpush1.msra.mxu0 %v4917
    %4919 = vmatprep.subr.mxu0 0.0
    %v4920 = vand.u32 %v2204, 4294901760
    %4921 = vmatpush1.msra.mxu0 %v4920
    %4922 = vmatprep.subr.mxu0 0.0
    %v4923 = vand.u32 %v2197, 4294901760
    %4924 = vmatpush1.msra.mxu0 %v4923
    %4925 = vmatprep.subr.mxu0 0.0
    %v4926 = vand.u32 %v2190, 4294901760
    %4927 = vmatpush1.msra.mxu0 %v4926
    %4928 = vmatprep.subr.mxu0 0.0
    %v4929 = vand.u32 %v2183, 4294901760
    %4930 = vmatpush1.msra.mxu0 %v4929
    %4931 = vmatprep.subr.mxu0 0.0
    %v4932 = vand.u32 %v2176, 4294901760
    %4933 = vmatpush1.msra.mxu0 %v4932
    %4934 = vmatprep.subr.mxu0 0.0
    %4935 = vmatpush2.msra.mxu0 0.0
    %4936 = vmatprep.subr.mxu0 0.0
    %4937 = vmatpush2.msra.mxu0 0.0
    %4938 = vmatprep.subr.mxu0 0.0
    %4939 = vmatpush2.msra.mxu0 0.0
    %4940 = vmatprep.subr.mxu0 0.0
    %4941 = vmatpush2.msra.mxu0 0.0
    %4942 = vmatprep.subr.mxu0 0.0
    %4943 = vmatpush2.msra.mxu0 0.0
    %4944 = vmatprep.subr.mxu0 0.0
    %4945 = vmatpush2.msra.mxu0 0.0
    %4946 = vmatprep.subr.mxu0 0.0
    %4947 = vmatpush2.msra.mxu0 0.0
    %4948 = vmatprep.subr.mxu0 0.0
    %4949 = vmatpush2.msra.mxu0 0.0
    %4950 = vmatprep.subr.mxu0 0.0
    %4951 = vmatpush2.msra.mxu0 0.0
    %4952 = vmatprep.subr.mxu0 0.0
    %4953 = vmatpush2.msra.mxu0 0.0
    %4954 = vmatprep.subr.mxu0 0.0
    %4955 = vmatpush2.msra.mxu0 0.0
    %4956 = vmatprep.subr.mxu0 0.0
    %4957 = vmatpush2.msra.mxu0 0.0
    %4958 = vmatprep.subr.mxu0 0.0
    %4959 = vmatpush2.msra.mxu0 0.0
    %4960 = vmatprep.subr.mxu0 0.0
    %4961 = vmatpush2.msra.mxu0 0.0
    %4962 = vmatprep.subr.mxu0 0.0
    %4963 = vmatpush2.msra.mxu0 0.0
    %4964 = vmatprep.subr.mxu0 0.0
    %4965 = vmatpush2.msra.mxu0 0.0
    %4966 = vmatprep.mubr.f32.mxu0 0.0
    %v4967 = vand.u32 %v2165, 4294901760
    %v4968 = vsub.f32 %v2165, %v4967
    %v4969 = vand.u32 %v4968, 4294901760
    %v4970 = vsub.f32 %v4968, %v4969
    %v4971 = vand.u32 %v4970, 4294901760
    %4972 = vmatmul.mubr.f32.gmra.mxu0 %v4971
    %v4973 = vpop.f32.mrf.mxu0
    %v4974 = vadd.f32 %v2313, %v4973
    %v4975 = vpop.f32.mrf.mxu0
    %4976 = vdwg.mxu0
    %4977 = vmatprep.subr.mxu0 0.0
    %v4978 = vand.u32 %v2281, 4294901760
    %v4979 = vsub.f32 %v2281, %v4978
    %v4980 = vand.u32 %v4979, 4294901760
    %v4981 = vsub.f32 %v4979, %v4980
    %v4982 = vand.u32 %v4981, 4294901760
    %4983 = vmatpush1.msra.mxu0 %v4982
    %4984 = vmatprep.subr.mxu0 0.0
    %v4985 = vand.u32 %v2274, 4294901760
    %v4986 = vsub.f32 %v2274, %v4985
    %v4987 = vand.u32 %v4986, 4294901760
    %v4988 = vsub.f32 %v4986, %v4987
    %v4989 = vand.u32 %v4988, 4294901760
    %4990 = vmatpush1.msra.mxu0 %v4989
    %4991 = vmatprep.subr.mxu0 0.0
    %v4992 = vand.u32 %v2267, 4294901760
    %v4993 = vsub.f32 %v2267, %v4992
    %v4994 = vand.u32 %v4993, 4294901760
    %v4995 = vsub.f32 %v4993, %v4994
    %v4996 = vand.u32 %v4995, 4294901760
    %4997 = vmatpush1.msra.mxu0 %v4996
    %4998 = vmatprep.subr.mxu0 0.0
    %v4999 = vand.u32 %v2260, 4294901760
    %v5000 = vsub.f32 %v2260, %v4999
    %v5001 = vand.u32 %v5000, 4294901760
    %v5002 = vsub.f32 %v5000, %v5001
    %v5003 = vand.u32 %v5002, 4294901760
    %5004 = vmatpush1.msra.mxu0 %v5003
    %5005 = vmatprep.subr.mxu0 0.0
    %v5006 = vand.u32 %v2253, 4294901760
    %v5007 = vsub.f32 %v2253, %v5006
    %v5008 = vand.u32 %v5007, 4294901760
    %v5009 = vsub.f32 %v5007, %v5008
    %v5010 = vand.u32 %v5009, 4294901760
    %5011 = vmatpush1.msra.mxu0 %v5010
    %5012 = vmatprep.subr.mxu0 0.0
    %v5013 = vand.u32 %v2246, 4294901760
    %v5014 = vsub.f32 %v2246, %v5013
    %v5015 = vand.u32 %v5014, 4294901760
    %v5016 = vsub.f32 %v5014, %v5015
    %v5017 = vand.u32 %v5016, 4294901760
    %5018 = vmatpush1.msra.mxu0 %v5017
    %5019 = vmatprep.subr.mxu0 0.0
    %v5020 = vand.u32 %v2239, 4294901760
    %v5021 = vsub.f32 %v2239, %v5020
    %v5022 = vand.u32 %v5021, 4294901760
    %v5023 = vsub.f32 %v5021, %v5022
    %v5024 = vand.u32 %v5023, 4294901760
    %5025 = vmatpush1.msra.mxu0 %v5024
    %5026 = vmatprep.subr.mxu0 0.0
    %v5027 = vand.u32 %v2232, 4294901760
    %v5028 = vsub.f32 %v2232, %v5027
    %v5029 = vand.u32 %v5028, 4294901760
    %v5030 = vsub.f32 %v5028, %v5029
    %v5031 = vand.u32 %v5030, 4294901760
    %5032 = vmatpush1.msra.mxu0 %v5031
    %5033 = vmatprep.subr.mxu0 0.0
    %v5034 = vand.u32 %v2225, 4294901760
    %v5035 = vsub.f32 %v2225, %v5034
    %v5036 = vand.u32 %v5035, 4294901760
    %v5037 = vsub.f32 %v5035, %v5036
    %v5038 = vand.u32 %v5037, 4294901760
    %5039 = vmatpush1.msra.mxu0 %v5038
    %5040 = vmatprep.subr.mxu0 0.0
    %v5041 = vand.u32 %v2218, 4294901760
    %v5042 = vsub.f32 %v2218, %v5041
    %v5043 = vand.u32 %v5042, 4294901760
    %v5044 = vsub.f32 %v5042, %v5043
    %v5045 = vand.u32 %v5044, 4294901760
    %5046 = vmatpush1.msra.mxu0 %v5045
    %5047 = vmatprep.subr.mxu0 0.0
    %v5048 = vand.u32 %v2211, 4294901760
    %v5049 = vsub.f32 %v2211, %v5048
    %v5050 = vand.u32 %v5049, 4294901760
    %v5051 = vsub.f32 %v5049, %v5050
    %v5052 = vand.u32 %v5051, 4294901760
    %5053 = vmatpush1.msra.mxu0 %v5052
    %5054 = vmatprep.subr.mxu0 0.0
    %v5055 = vand.u32 %v2204, 4294901760
    %v5056 = vsub.f32 %v2204, %v5055
    %v5057 = vand.u32 %v5056, 4294901760
    %v5058 = vsub.f32 %v5056, %v5057
    %v5059 = vand.u32 %v5058, 4294901760
    %5060 = vmatpush1.msra.mxu0 %v5059
    %5061 = vmatprep.subr.mxu0 0.0
    %v5062 = vand.u32 %v2197, 4294901760
    %v5063 = vsub.f32 %v2197, %v5062
    %v5064 = vand.u32 %v5063, 4294901760
    %v5065 = vsub.f32 %v5063, %v5064
    %v5066 = vand.u32 %v5065, 4294901760
    %5067 = vmatpush1.msra.mxu0 %v5066
    %5068 = vmatprep.subr.mxu0 0.0
    %v5069 = vand.u32 %v2190, 4294901760
    %v5070 = vsub.f32 %v2190, %v5069
    %v5071 = vand.u32 %v5070, 4294901760
    %v5072 = vsub.f32 %v5070, %v5071
    %v5073 = vand.u32 %v5072, 4294901760
    %5074 = vmatpush1.msra.mxu0 %v5073
    %5075 = vmatprep.subr.mxu0 0.0
    %v5076 = vand.u32 %v2183, 4294901760
    %v5077 = vsub.f32 %v2183, %v5076
    %v5078 = vand.u32 %v5077, 4294901760
    %v5079 = vsub.f32 %v5077, %v5078
    %v5080 = vand.u32 %v5079, 4294901760
    %5081 = vmatpush1.msra.mxu0 %v5080
    %5082 = vmatprep.subr.mxu0 0.0
    %v5083 = vand.u32 %v2176, 4294901760
    %v5084 = vsub.f32 %v2176, %v5083
    %v5085 = vand.u32 %v5084, 4294901760
    %v5086 = vsub.f32 %v5084, %v5085
    %v5087 = vand.u32 %v5086, 4294901760
    %5088 = vmatpush1.msra.mxu0 %v5087
    %5089 = vmatprep.subr.mxu0 0.0
    %5090 = vmatpush2.msra.mxu0 0.0
    %5091 = vmatprep.subr.mxu0 0.0
    %5092 = vmatpush2.msra.mxu0 0.0
    %5093 = vmatprep.subr.mxu0 0.0
    %5094 = vmatpush2.msra.mxu0 0.0
    %5095 = vmatprep.subr.mxu0 0.0
    %5096 = vmatpush2.msra.mxu0 0.0
    %5097 = vmatprep.subr.mxu0 0.0
    %5098 = vmatpush2.msra.mxu0 0.0
    %5099 = vmatprep.subr.mxu0 0.0
    %5100 = vmatpush2.msra.mxu0 0.0
    %5101 = vmatprep.subr.mxu0 0.0
    %5102 = vmatpush2.msra.mxu0 0.0
    %5103 = vmatprep.subr.mxu0 0.0
    %5104 = vmatpush2.msra.mxu0 0.0
    %5105 = vmatprep.subr.mxu0 0.0
    %5106 = vmatpush2.msra.mxu0 0.0
    %5107 = vmatprep.subr.mxu0 0.0
    %5108 = vmatpush2.msra.mxu0 0.0
    %5109 = vmatprep.subr.mxu0 0.0
    %5110 = vmatpush2.msra.mxu0 0.0
    %5111 = vmatprep.subr.mxu0 0.0
    %5112 = vmatpush2.msra.mxu0 0.0
    %5113 = vmatprep.subr.mxu0 0.0
    %5114 = vmatpush2.msra.mxu0 0.0
    %5115 = vmatprep.subr.mxu0 0.0
    %5116 = vmatpush2.msra.mxu0 0.0
    %5117 = vmatprep.subr.mxu0 0.0
    %5118 = vmatpush2.msra.mxu0 0.0
    %5119 = vmatprep.subr.mxu0 0.0
    %5120 = vmatpush2.msra.mxu0 0.0
    %5121 = vmatprep.mubr.f32.mxu0 0.0
    %v5122 = vand.u32 %v2165, 4294901760
    %5123 = vmatmul.mubr.f32.gmra.mxu0 %v5122
    %v5124 = vpop.f32.mrf.mxu0
    %v5125 = vadd.f32 %v4974, %v5124
    %v5126 = vpop.f32.mrf.mxu0
    %5127 = vdwg.mxu0
    %5128 = vmatprep.subr.mxu0 0.0
    %v5129 = vand.u32 %v2281, 4294901760
    %v5130 = vsub.f32 %v2281, %v5129
    %5131 = vmatpush1.msra.mxu0 %v5130
    %5132 = vmatprep.subr.mxu0 0.0
    %v5133 = vand.u32 %v2274, 4294901760
    %v5134 = vsub.f32 %v2274, %v5133
    %5135 = vmatpush1.msra.mxu0 %v5134
    %5136 = vmatprep.subr.mxu0 0.0
    %v5137 = vand.u32 %v2267, 4294901760
    %v5138 = vsub.f32 %v2267, %v5137
    %5139 = vmatpush1.msra.mxu0 %v5138
    %5140 = vmatprep.subr.mxu0 0.0
    %v5141 = vand.u32 %v2260, 4294901760
    %v5142 = vsub.f32 %v2260, %v5141
    %5143 = vmatpush1.msra.mxu0 %v5142
    %5144 = vmatprep.subr.mxu0 0.0
    %v5145 = vand.u32 %v2253, 4294901760
    %v5146 = vsub.f32 %v2253, %v5145
    %5147 = vmatpush1.msra.mxu0 %v5146
    %5148 = vmatprep.subr.mxu0 0.0
    %v5149 = vand.u32 %v2246, 4294901760
    %v5150 = vsub.f32 %v2246, %v5149
    %5151 = vmatpush1.msra.mxu0 %v5150
    %5152 = vmatprep.subr.mxu0 0.0
    %v5153 = vand.u32 %v2239, 4294901760
    %v5154 = vsub.f32 %v2239, %v5153
    %5155 = vmatpush1.msra.mxu0 %v5154
    %5156 = vmatprep.subr.mxu0 0.0
    %v5157 = vand.u32 %v2232, 4294901760
    %v5158 = vsub.f32 %v2232, %v5157
    %5159 = vmatpush1.msra.mxu0 %v5158
    %5160 = vmatprep.subr.mxu0 0.0
    %v5161 = vand.u32 %v2225, 4294901760
    %v5162 = vsub.f32 %v2225, %v5161
    %5163 = vmatpush1.msra.mxu0 %v5162
    %5164 = vmatprep.subr.mxu0 0.0
    %v5165 = vand.u32 %v2218, 4294901760
    %v5166 = vsub.f32 %v2218, %v5165
    %5167 = vmatpush1.msra.mxu0 %v5166
    %5168 = vmatprep.subr.mxu0 0.0
    %v5169 = vand.u32 %v2211, 4294901760
    %v5170 = vsub.f32 %v2211, %v5169
    %5171 = vmatpush1.msra.mxu0 %v5170
    %5172 = vmatprep.subr.mxu0 0.0
    %v5173 = vand.u32 %v2204, 4294901760
    %v5174 = vsub.f32 %v2204, %v5173
    %5175 = vmatpush1.msra.mxu0 %v5174
    %5176 = vmatprep.subr.mxu0 0.0
    %v5177 = vand.u32 %v2197, 4294901760
    %v5178 = vsub.f32 %v2197, %v5177
    %5179 = vmatpush1.msra.mxu0 %v5178
    %5180 = vmatprep.subr.mxu0 0.0
    %v5181 = vand.u32 %v2190, 4294901760
    %v5182 = vsub.f32 %v2190, %v5181
    %5183 = vmatpush1.msra.mxu0 %v5182
    %5184 = vmatprep.subr.mxu0 0.0
    %v5185 = vand.u32 %v2183, 4294901760
    %v5186 = vsub.f32 %v2183, %v5185
    %5187 = vmatpush1.msra.mxu0 %v5186
    %5188 = vmatprep.subr.mxu0 0.0
    %v5189 = vand.u32 %v2176, 4294901760
    %v5190 = vsub.f32 %v2176, %v5189
    %5191 = vmatpush1.msra.mxu0 %v5190
    %5192 = vmatprep.subr.mxu0 0.0
    %5193 = vmatpush2.msra.mxu0 0.0
    %5194 = vmatprep.subr.mxu0 0.0
    %5195 = vmatpush2.msra.mxu0 0.0
    %5196 = vmatprep.subr.mxu0 0.0
    %5197 = vmatpush2.msra.mxu0 0.0
    %5198 = vmatprep.subr.mxu0 0.0
    %5199 = vmatpush2.msra.mxu0 0.0
    %5200 = vmatprep.subr.mxu0 0.0
    %5201 = vmatpush2.msra.mxu0 0.0
    %5202 = vmatprep.subr.mxu0 0.0
    %5203 = vmatpush2.msra.mxu0 0.0
    %5204 = vmatprep.subr.mxu0 0.0
    %5205 = vmatpush2.msra.mxu0 0.0
    %5206 = vmatprep.subr.mxu0 0.0
    %5207 = vmatpush2.msra.mxu0 0.0
    %5208 = vmatprep.subr.mxu0 0.0
    %5209 = vmatpush2.msra.mxu0 0.0
    %5210 = vmatprep.subr.mxu0 0.0
    %5211 = vmatpush2.msra.mxu0 0.0
    %5212 = vmatprep.subr.mxu0 0.0
    %5213 = vmatpush2.msra.mxu0 0.0
    %5214 = vmatprep.subr.mxu0 0.0
    %5215 = vmatpush2.msra.mxu0 0.0
    %5216 = vmatprep.subr.mxu0 0.0
    %5217 = vmatpush2.msra.mxu0 0.0
    %5218 = vmatprep.subr.mxu0 0.0
    %5219 = vmatpush2.msra.mxu0 0.0
    %5220 = vmatprep.subr.mxu0 0.0
    %5221 = vmatpush2.msra.mxu0 0.0
    %5222 = vmatprep.subr.mxu0 0.0
    %5223 = vmatpush2.msra.mxu0 0.0
    %5224 = vmatprep.mubr.f32.mxu0 0.0
    %v5225 = vand.u32 %v2165, 4294901760
    %v5226 = vsub.f32 %v2165, %v5225
    %5227 = vmatmul.mubr.f32.gmra.mxu0 %v5226
    %v5228 = vpop.f32.mrf.mxu0
    %v5229 = vadd.f32 %v5125, %v5228
    %v5230 = vpop.f32.mrf.mxu0
    %5231 = vdwg.mxu0
    %5232 = vmatprep.subr.mxu0 0.0
    %v5233 = vand.u32 %v2281, 4294901760
    %5234 = vmatpush1.msra.mxu0 %v5233
    %5235 = vmatprep.subr.mxu0 0.0
    %v5236 = vand.u32 %v2274, 4294901760
    %5237 = vmatpush1.msra.mxu0 %v5236
    %5238 = vmatprep.subr.mxu0 0.0
    %v5239 = vand.u32 %v2267, 4294901760
    %5240 = vmatpush1.msra.mxu0 %v5239
    %5241 = vmatprep.subr.mxu0 0.0
    %v5242 = vand.u32 %v2260, 4294901760
    %5243 = vmatpush1.msra.mxu0 %v5242
    %5244 = vmatprep.subr.mxu0 0.0
    %v5245 = vand.u32 %v2253, 4294901760
    %5246 = vmatpush1.msra.mxu0 %v5245
    %5247 = vmatprep.subr.mxu0 0.0
    %v5248 = vand.u32 %v2246, 4294901760
    %5249 = vmatpush1.msra.mxu0 %v5248
    %5250 = vmatprep.subr.mxu0 0.0
    %v5251 = vand.u32 %v2239, 4294901760
    %5252 = vmatpush1.msra.mxu0 %v5251
    %5253 = vmatprep.subr.mxu0 0.0
    %v5254 = vand.u32 %v2232, 4294901760
    %5255 = vmatpush1.msra.mxu0 %v5254
    %5256 = vmatprep.subr.mxu0 0.0
    %v5257 = vand.u32 %v2225, 4294901760
    %5258 = vmatpush1.msra.mxu0 %v5257
    %5259 = vmatprep.subr.mxu0 0.0
    %v5260 = vand.u32 %v2218, 4294901760
    %5261 = vmatpush1.msra.mxu0 %v5260
    %5262 = vmatprep.subr.mxu0 0.0
    %v5263 = vand.u32 %v2211, 4294901760
    %5264 = vmatpush1.msra.mxu0 %v5263
    %5265 = vmatprep.subr.mxu0 0.0
    %v5266 = vand.u32 %v2204, 4294901760
    %5267 = vmatpush1.msra.mxu0 %v5266
    %5268 = vmatprep.subr.mxu0 0.0
    %v5269 = vand.u32 %v2197, 4294901760
    %5270 = vmatpush1.msra.mxu0 %v5269
    %5271 = vmatprep.subr.mxu0 0.0
    %v5272 = vand.u32 %v2190, 4294901760
    %5273 = vmatpush1.msra.mxu0 %v5272
    %5274 = vmatprep.subr.mxu0 0.0
    %v5275 = vand.u32 %v2183, 4294901760
    %5276 = vmatpush1.msra.mxu0 %v5275
    %5277 = vmatprep.subr.mxu0 0.0
    %v5278 = vand.u32 %v2176, 4294901760
    %5279 = vmatpush1.msra.mxu0 %v5278
    %5280 = vmatprep.subr.mxu0 0.0
    %5281 = vmatpush2.msra.mxu0 0.0
    %5282 = vmatprep.subr.mxu0 0.0
    %5283 = vmatpush2.msra.mxu0 0.0
    %5284 = vmatprep.subr.mxu0 0.0
    %5285 = vmatpush2.msra.mxu0 0.0
    %5286 = vmatprep.subr.mxu0 0.0
    %5287 = vmatpush2.msra.mxu0 0.0
    %5288 = vmatprep.subr.mxu0 0.0
    %5289 = vmatpush2.msra.mxu0 0.0
    %5290 = vmatprep.subr.mxu0 0.0
    %5291 = vmatpush2.msra.mxu0 0.0
    %5292 = vmatprep.subr.mxu0 0.0
    %5293 = vmatpush2.msra.mxu0 0.0
    %5294 = vmatprep.subr.mxu0 0.0
    %5295 = vmatpush2.msra.mxu0 0.0
    %5296 = vmatprep.subr.mxu0 0.0
    %5297 = vmatpush2.msra.mxu0 0.0
    %5298 = vmatprep.subr.mxu0 0.0
    %5299 = vmatpush2.msra.mxu0 0.0
    %5300 = vmatprep.subr.mxu0 0.0
    %5301 = vmatpush2.msra.mxu0 0.0
    %5302 = vmatprep.subr.mxu0 0.0
    %5303 = vmatpush2.msra.mxu0 0.0
    %5304 = vmatprep.subr.mxu0 0.0
    %5305 = vmatpush2.msra.mxu0 0.0
    %5306 = vmatprep.subr.mxu0 0.0
    %5307 = vmatpush2.msra.mxu0 0.0
    %5308 = vmatprep.subr.mxu0 0.0
    %5309 = vmatpush2.msra.mxu0 0.0
    %5310 = vmatprep.subr.mxu0 0.0
    %5311 = vmatpush2.msra.mxu0 0.0
    %5312 = vmatprep.mubr.f32.mxu0 0.0
    %v5313 = vand.u32 %v2165, 4294901760
    %v5314 = vsub.f32 %v2165, %v5313
    %v5315 = vand.u32 %v5314, 4294901760
    %5316 = vmatmul.mubr.f32.gmra.mxu0 %v5315
    %v5317 = vpop.f32.mrf.mxu0
    %v5318 = vadd.f32 %v5229, %v5317
    %v5319 = vpop.f32.mrf.mxu0
    %5320 = vdwg.mxu0
    %5321 = vmatprep.subr.mxu0 0.0
    %v5322 = vand.u32 %v2281, 4294901760
    %v5323 = vsub.f32 %v2281, %v5322
    %v5324 = vand.u32 %v5323, 4294901760
    %5325 = vmatpush1.msra.mxu0 %v5324
    %5326 = vmatprep.subr.mxu0 0.0
    %v5327 = vand.u32 %v2274, 4294901760
    %v5328 = vsub.f32 %v2274, %v5327
    %v5329 = vand.u32 %v5328, 4294901760
    %5330 = vmatpush1.msra.mxu0 %v5329
    %5331 = vmatprep.subr.mxu0 0.0
    %v5332 = vand.u32 %v2267, 4294901760
    %v5333 = vsub.f32 %v2267, %v5332
    %v5334 = vand.u32 %v5333, 4294901760
    %5335 = vmatpush1.msra.mxu0 %v5334
    %5336 = vmatprep.subr.mxu0 0.0
    %v5337 = vand.u32 %v2260, 4294901760
    %v5338 = vsub.f32 %v2260, %v5337
    %v5339 = vand.u32 %v5338, 4294901760
    %5340 = vmatpush1.msra.mxu0 %v5339
    %5341 = vmatprep.subr.mxu0 0.0
    %v5342 = vand.u32 %v2253, 4294901760
    %v5343 = vsub.f32 %v2253, %v5342
    %v5344 = vand.u32 %v5343, 4294901760
    %5345 = vmatpush1.msra.mxu0 %v5344
    %5346 = vmatprep.subr.mxu0 0.0
    %v5347 = vand.u32 %v2246, 4294901760
    %v5348 = vsub.f32 %v2246, %v5347
    %v5349 = vand.u32 %v5348, 4294901760
    %5350 = vmatpush1.msra.mxu0 %v5349
    %5351 = vmatprep.subr.mxu0 0.0
    %v5352 = vand.u32 %v2239, 4294901760
    %v5353 = vsub.f32 %v2239, %v5352
    %v5354 = vand.u32 %v5353, 4294901760
    %5355 = vmatpush1.msra.mxu0 %v5354
    %5356 = vmatprep.subr.mxu0 0.0
    %v5357 = vand.u32 %v2232, 4294901760
    %v5358 = vsub.f32 %v2232, %v5357
    %v5359 = vand.u32 %v5358, 4294901760
    %5360 = vmatpush1.msra.mxu0 %v5359
    %5361 = vmatprep.subr.mxu0 0.0
    %v5362 = vand.u32 %v2225, 4294901760
    %v5363 = vsub.f32 %v2225, %v5362
    %v5364 = vand.u32 %v5363, 4294901760
    %5365 = vmatpush1.msra.mxu0 %v5364
    %5366 = vmatprep.subr.mxu0 0.0
    %v5367 = vand.u32 %v2218, 4294901760
    %v5368 = vsub.f32 %v2218, %v5367
    %v5369 = vand.u32 %v5368, 4294901760
    %5370 = vmatpush1.msra.mxu0 %v5369
    %5371 = vmatprep.subr.mxu0 0.0
    %v5372 = vand.u32 %v2211, 4294901760
    %v5373 = vsub.f32 %v2211, %v5372
    %v5374 = vand.u32 %v5373, 4294901760
    %5375 = vmatpush1.msra.mxu0 %v5374
    %5376 = vmatprep.subr.mxu0 0.0
    %v5377 = vand.u32 %v2204, 4294901760
    %v5378 = vsub.f32 %v2204, %v5377
    %v5379 = vand.u32 %v5378, 4294901760
    %5380 = vmatpush1.msra.mxu0 %v5379
    %5381 = vmatprep.subr.mxu0 0.0
    %v5382 = vand.u32 %v2197, 4294901760
    %v5383 = vsub.f32 %v2197, %v5382
    %v5384 = vand.u32 %v5383, 4294901760
    %5385 = vmatpush1.msra.mxu0 %v5384
    %5386 = vmatprep.subr.mxu0 0.0
    %v5387 = vand.u32 %v2190, 4294901760
    %v5388 = vsub.f32 %v2190, %v5387
    %v5389 = vand.u32 %v5388, 4294901760
    %5390 = vmatpush1.msra.mxu0 %v5389
    %5391 = vmatprep.subr.mxu0 0.0
    %v5392 = vand.u32 %v2183, 4294901760
    %v5393 = vsub.f32 %v2183, %v5392
    %v5394 = vand.u32 %v5393, 4294901760
    %5395 = vmatpush1.msra.mxu0 %v5394
    %5396 = vmatprep.subr.mxu0 0.0
    %v5397 = vand.u32 %v2176, 4294901760
    %v5398 = vsub.f32 %v2176, %v5397
    %v5399 = vand.u32 %v5398, 4294901760
    %5400 = vmatpush1.msra.mxu0 %v5399
    %5401 = vmatprep.subr.mxu0 0.0
    %5402 = vmatpush2.msra.mxu0 0.0
    %5403 = vmatprep.subr.mxu0 0.0
    %5404 = vmatpush2.msra.mxu0 0.0
    %5405 = vmatprep.subr.mxu0 0.0
    %5406 = vmatpush2.msra.mxu0 0.0
    %5407 = vmatprep.subr.mxu0 0.0
    %5408 = vmatpush2.msra.mxu0 0.0
    %5409 = vmatprep.subr.mxu0 0.0
    %5410 = vmatpush2.msra.mxu0 0.0
    %5411 = vmatprep.subr.mxu0 0.0
    %5412 = vmatpush2.msra.mxu0 0.0
    %5413 = vmatprep.subr.mxu0 0.0
    %5414 = vmatpush2.msra.mxu0 0.0
    %5415 = vmatprep.subr.mxu0 0.0
    %5416 = vmatpush2.msra.mxu0 0.0
    %5417 = vmatprep.subr.mxu0 0.0
    %5418 = vmatpush2.msra.mxu0 0.0
    %5419 = vmatprep.subr.mxu0 0.0
    %5420 = vmatpush2.msra.mxu0 0.0
    %5421 = vmatprep.subr.mxu0 0.0
    %5422 = vmatpush2.msra.mxu0 0.0
    %5423 = vmatprep.subr.mxu0 0.0
    %5424 = vmatpush2.msra.mxu0 0.0
    %5425 = vmatprep.subr.mxu0 0.0
    %5426 = vmatpush2.msra.mxu0 0.0
    %5427 = vmatprep.subr.mxu0 0.0
    %5428 = vmatpush2.msra.mxu0 0.0
    %5429 = vmatprep.subr.mxu0 0.0
    %5430 = vmatpush2.msra.mxu0 0.0
    %5431 = vmatprep.subr.mxu0 0.0
    %5432 = vmatpush2.msra.mxu0 0.0
    %5433 = vmatprep.mubr.f32.mxu0 0.0
    %v5434 = vand.u32 %v2165, 4294901760
    %5435 = vmatmul.mubr.f32.gmra.mxu0 %v5434
    %v5436 = vpop.f32.mrf.mxu0
    %v5437 = vadd.f32 %v5318, %v5436
    %v5438 = vpop.f32.mrf.mxu0
    %5439 = vdwg.mxu0
    %5440 = vmatprep.subr.mxu0 0.0
    %v5441 = vand.u32 %v2281, 4294901760
    %5442 = vmatpush1.msra.mxu0 %v5441
    %5443 = vmatprep.subr.mxu0 0.0
    %v5444 = vand.u32 %v2274, 4294901760
    %5445 = vmatpush1.msra.mxu0 %v5444
    %5446 = vmatprep.subr.mxu0 0.0
    %v5447 = vand.u32 %v2267, 4294901760
    %5448 = vmatpush1.msra.mxu0 %v5447
    %5449 = vmatprep.subr.mxu0 0.0
    %v5450 = vand.u32 %v2260, 4294901760
    %5451 = vmatpush1.msra.mxu0 %v5450
    %5452 = vmatprep.subr.mxu0 0.0
    %v5453 = vand.u32 %v2253, 4294901760
    %5454 = vmatpush1.msra.mxu0 %v5453
    %5455 = vmatprep.subr.mxu0 0.0
    %v5456 = vand.u32 %v2246, 4294901760
    %5457 = vmatpush1.msra.mxu0 %v5456
    %5458 = vmatprep.subr.mxu0 0.0
    %v5459 = vand.u32 %v2239, 4294901760
    %5460 = vmatpush1.msra.mxu0 %v5459
    %5461 = vmatprep.subr.mxu0 0.0
    %v5462 = vand.u32 %v2232, 4294901760
    %5463 = vmatpush1.msra.mxu0 %v5462
    %5464 = vmatprep.subr.mxu0 0.0
    %v5465 = vand.u32 %v2225, 4294901760
    %5466 = vmatpush1.msra.mxu0 %v5465
    %5467 = vmatprep.subr.mxu0 0.0
    %v5468 = vand.u32 %v2218, 4294901760
    %5469 = vmatpush1.msra.mxu0 %v5468
    %5470 = vmatprep.subr.mxu0 0.0
    %v5471 = vand.u32 %v2211, 4294901760
    %5472 = vmatpush1.msra.mxu0 %v5471
    %5473 = vmatprep.subr.mxu0 0.0
    %v5474 = vand.u32 %v2204, 4294901760
    %5475 = vmatpush1.msra.mxu0 %v5474
    %5476 = vmatprep.subr.mxu0 0.0
    %v5477 = vand.u32 %v2197, 4294901760
    %5478 = vmatpush1.msra.mxu0 %v5477
    %5479 = vmatprep.subr.mxu0 0.0
    %v5480 = vand.u32 %v2190, 4294901760
    %5481 = vmatpush1.msra.mxu0 %v5480
    %5482 = vmatprep.subr.mxu0 0.0
    %v5483 = vand.u32 %v2183, 4294901760
    %5484 = vmatpush1.msra.mxu0 %v5483
    %5485 = vmatprep.subr.mxu0 0.0
    %v5486 = vand.u32 %v2176, 4294901760
    %5487 = vmatpush1.msra.mxu0 %v5486
    %5488 = vmatprep.subr.mxu0 0.0
    %5489 = vmatpush2.msra.mxu0 0.0
    %5490 = vmatprep.subr.mxu0 0.0
    %5491 = vmatpush2.msra.mxu0 0.0
    %5492 = vmatprep.subr.mxu0 0.0
    %5493 = vmatpush2.msra.mxu0 0.0
    %5494 = vmatprep.subr.mxu0 0.0
    %5495 = vmatpush2.msra.mxu0 0.0
    %5496 = vmatprep.subr.mxu0 0.0
    %5497 = vmatpush2.msra.mxu0 0.0
    %5498 = vmatprep.subr.mxu0 0.0
    %5499 = vmatpush2.msra.mxu0 0.0
    %5500 = vmatprep.subr.mxu0 0.0
    %5501 = vmatpush2.msra.mxu0 0.0
    %5502 = vmatprep.subr.mxu0 0.0
    %5503 = vmatpush2.msra.mxu0 0.0
    %5504 = vmatprep.subr.mxu0 0.0
    %5505 = vmatpush2.msra.mxu0 0.0
    %5506 = vmatprep.subr.mxu0 0.0
    %5507 = vmatpush2.msra.mxu0 0.0
    %5508 = vmatprep.subr.mxu0 0.0
    %5509 = vmatpush2.msra.mxu0 0.0
    %5510 = vmatprep.subr.mxu0 0.0
    %5511 = vmatpush2.msra.mxu0 0.0
    %5512 = vmatprep.subr.mxu0 0.0
    %5513 = vmatpush2.msra.mxu0 0.0
    %5514 = vmatprep.subr.mxu0 0.0
    %5515 = vmatpush2.msra.mxu0 0.0
    %5516 = vmatprep.subr.mxu0 0.0
    %5517 = vmatpush2.msra.mxu0 0.0
    %5518 = vmatprep.subr.mxu0 0.0
    %5519 = vmatpush2.msra.mxu0 0.0
    %5520 = vmatprep.mubr.f32.mxu0 0.0
    %v5521 = vand.u32 %v2165, 4294901760
    %5522 = vmatmul.mubr.f32.gmra.mxu0 %v5521
    %v5523 = vpop.f32.mrf.mxu0
    %v5524 = vadd.f32 %v5437, %v5523
    %v5525 = vpop.f32.mrf.mxu0
    %5526 = vdwg.mxu0
    %v5527 = vmul.f32 %v3172, 0.01
    %v5528 = vmul.f32 %v3174, 0.01
    %v5529 = vmul.f32 %v4027, 0.01
    %v5530 = vmul.f32 %v4029, 0.01
    %v5531 = vmul.f32 %v4882, 0.01
    %v5532 = vmul.f32 %v4884, 0.01
    %v5533 = vmul.f32 %v5524, 0.01
    %v5534 = vmax.f32 %v3172, %v5527
    %v5535 = vmax.f32 %v3174, %v5528
    %v5536 = vmax.f32 %v4027, %v5529
    %v5537 = vmax.f32 %v4029, %v5530
    %v5538 = vmax.f32 %v4882, %v5531
    %v5539 = vmax.f32 %v4884, %v5532
    %v5540 = vmax.f32 %v5524, %v5533
    %v5541 = vrot.slane %v5534, 4
    %v5542 = vadd.f32 %v5534, %v5541
    %v5543 = vrot.slane %v5542, 2
    %v5544 = vadd.f32 %v5542, %v5543
    %v5545 = vrot.slane %v5544, 1
    %v5546 = vadd.f32 %v5544, %v5545
    %v5547 = vrot.slane %v5535, 4
    %v5548 = vadd.f32 %v5535, %v5547
    %v5549 = vrot.slane %v5548, 2
    %v5550 = vadd.f32 %v5548, %v5549
    %v5551 = vrot.slane %v5550, 1
    %v5552 = vadd.f32 %v5550, %v5551
    %v5553 = vrot.slane %v5536, 4
    %v5554 = vadd.f32 %v5536, %v5553
    %v5555 = vrot.slane %v5554, 2
    %v5556 = vadd.f32 %v5554, %v5555
    %v5557 = vrot.slane %v5556, 1
    %v5558 = vadd.f32 %v5556, %v5557
    %v5559 = vrot.slane %v5537, 4
    %v5560 = vadd.f32 %v5537, %v5559
    %v5561 = vrot.slane %v5560, 2
    %v5562 = vadd.f32 %v5560, %v5561
    %v5563 = vrot.slane %v5562, 1
    %v5564 = vadd.f32 %v5562, %v5563
    %v5565 = vrot.slane %v5538, 4
    %v5566 = vadd.f32 %v5538, %v5565
    %v5567 = vrot.slane %v5566, 2
    %v5568 = vadd.f32 %v5566, %v5567
    %v5569 = vrot.slane %v5568, 1
    %v5570 = vadd.f32 %v5568, %v5569
    %v5571 = vrot.slane %v5539, 4
    %v5572 = vadd.f32 %v5539, %v5571
    %v5573 = vrot.slane %v5572, 2
    %v5574 = vadd.f32 %v5572, %v5573
    %v5575 = vrot.slane %v5574, 1
    %v5576 = vadd.f32 %v5574, %v5575
    %v5577 = vrot.slane %v5540, 4
    %v5578 = vadd.f32 %v5540, %v5577
    %v5579 = vrot.slane %v5578, 2
    %v5580 = vadd.f32 %v5578, %v5579
    %v5581 = vrot.slane %v5580, 1
    %v5582 = vadd.f32 %v5580, %v5581
    %v5583 = vmul.f32 %v5534, %v5534
    %v5584 = vmul.f32 %v5535, %v5535
    %v5585 = vmul.f32 %v5536, %v5536
    %v5586 = vmul.f32 %v5537, %v5537
    %v5587 = vmul.f32 %v5538, %v5538
    %v5588 = vmul.f32 %v5539, %v5539
    %v5589 = vmul.f32 %v5540, %v5540
    %v5590 = vrot.slane %v5583, 4
    %v5591 = vadd.f32 %v5583, %v5590
    %v5592 = vrot.slane %v5591, 2
    %v5593 = vadd.f32 %v5591, %v5592
    %v5594 = vrot.slane %v5593, 1
    %v5595 = vadd.f32 %v5593, %v5594
    %v5596 = vrot.slane %v5584, 4
    %v5597 = vadd.f32 %v5584, %v5596
    %v5598 = vrot.slane %v5597, 2
    %v5599 = vadd.f32 %v5597, %v5598
    %v5600 = vrot.slane %v5599, 1
    %v5601 = vadd.f32 %v5599, %v5600
    %v5602 = vrot.slane %v5585, 4
    %v5603 = vadd.f32 %v5585, %v5602
    %v5604 = vrot.slane %v5603, 2
    %v5605 = vadd.f32 %v5603, %v5604
    %v5606 = vrot.slane %v5605, 1
    %v5607 = vadd.f32 %v5605, %v5606
    %v5608 = vrot.slane %v5586, 4
    %v5609 = vadd.f32 %v5586, %v5608
    %v5610 = vrot.slane %v5609, 2
    %v5611 = vadd.f32 %v5609, %v5610
    %v5612 = vrot.slane %v5611, 1
    %v5613 = vadd.f32 %v5611, %v5612
    %v5614 = vrot.slane %v5587, 4
    %v5615 = vadd.f32 %v5587, %v5614
    %v5616 = vrot.slane %v5615, 2
    %v5617 = vadd.f32 %v5615, %v5616
    %v5618 = vrot.slane %v5617, 1
    %v5619 = vadd.f32 %v5617, %v5618
    %v5620 = vrot.slane %v5588, 4
    %v5621 = vadd.f32 %v5588, %v5620
    %v5622 = vrot.slane %v5621, 2
    %v5623 = vadd.f32 %v5621, %v5622
    %v5624 = vrot.slane %v5623, 1
    %v5625 = vadd.f32 %v5623, %v5624
    %v5626 = vrot.slane %v5589, 4
    %v5627 = vadd.f32 %v5589, %v5626
    %v5628 = vrot.slane %v5627, 2
    %v5629 = vadd.f32 %v5627, %v5628
    %v5630 = vrot.slane %v5629, 1
    %v5631 = vadd.f32 %v5629, %v5630
    %v5632 = vmul.f32 %v5546, 0.125
    %v5633 = vmul.f32 %v5552, 0.125
    %v5634 = vmul.f32 %v5558, 0.125
    %v5635 = vmul.f32 %v5564, 0.125
    %v5636 = vmul.f32 %v5570, 0.125
    %v5637 = vmul.f32 %v5576, 0.125
    %v5638 = vmul.f32 %v5582, 0.125
    %v5639 = vmul.f32 %v5595, 0.125
    %v5640 = vmul.f32 %v5601, 0.125
    %v5641 = vmul.f32 %v5607, 0.125
    %v5642 = vmul.f32 %v5613, 0.125
    %v5643 = vmul.f32 %v5619, 0.125
    %v5644 = vmul.f32 %v5625, 0.125
    %v5645 = vmul.f32 %v5631, 0.125
    %v5646 = vmul.f32 %v5632, %v5632
    %v5647 = vmul.f32 %v5633, %v5633
    %v5648 = vmul.f32 %v5634, %v5634
    %v5649 = vmul.f32 %v5635, %v5635
    %v5650 = vmul.f32 %v5636, %v5636
    %v5651 = vmul.f32 %v5637, %v5637
    %v5652 = vmul.f32 %v5638, %v5638
    %v5653 = vsub.f32 %v5639, %v5646
    %v5654 = vsub.f32 %v5640, %v5647
    %v5655 = vsub.f32 %v5641, %v5648
    %v5656 = vsub.f32 %v5642, %v5649
    %v5657 = vsub.f32 %v5643, %v5650
    %v5658 = vsub.f32 %v5644, %v5651
    %v5659 = vsub.f32 %v5645, %v5652
    %v5660 = vmax.f32 %v5653, 0.0
    %v5661 = vmax.f32 %v5654, 0.0
    %v5662 = vmax.f32 %v5655, 0.0
    %v5663 = vmax.f32 %v5656, 0.0
    %v5664 = vmax.f32 %v5657, 0.0
    %v5665 = vmax.f32 %v5658, 0.0
    %v5666 = vmax.f32 %v5659, 0.0
    %v5667 = vadd.f32 %v5660, 1e-05
    %v5668 = vadd.f32 %v5661, 1e-05
    %v5669 = vadd.f32 %v5662, 1e-05
    %v5670 = vadd.f32 %v5663, 1e-05
    %v5671 = vadd.f32 %v5664, 1e-05
    %v5672 = vadd.f32 %v5665, 1e-05
    %v5673 = vadd.f32 %v5666, 1e-05
    %v5674 = vrsqrt.pop %v5667
    %v5675 = vrsqrt.pop %v5668
    %v5676 = vrsqrt.pop %v5669
    %v5677 = vrsqrt.pop %v5670
    %v5678 = vrsqrt.pop %v5671
    %v5679 = vrsqrt.pop %v5672
    %v5680 = vrsqrt.pop %v5673
    %v5688 = vcombine.low %v5674, %v5675
    %v5689 = vcombine.low %v5676, %v5677
    %v5690 = vcombine.low %v5678, %v5679
    %v5692 = vunpack.c.l.s4 1966171168
    %v5693 = vunpack.c.0.s8 %v5692
    %v5694 = vlaneseq
    %v5695 = vshrl.u32 %v5694, 7
    %v5696 = vsub.s32 %v5693, %v5695
    %v5697 = vrot.slane %v5688, %v5696
    %v5699 = vunpack.c.l.s4 1966171168
    %v5700 = vunpack.c.0.s8 %v5699
    %v5701 = vlaneseq
    %v5702 = vshrl.u32 %v5701, 7
    %v5703 = vsub.s32 %v5700, %v5702
    %v5704 = vrot.slane %v5689, %v5703
    %v5706 = vunpack.c.l.s4 1966171168
    %v5707 = vunpack.c.0.s8 %v5706
    %v5708 = vlaneseq
    %v5709 = vshrl.u32 %v5708, 7
    %v5710 = vsub.s32 %v5707, %v5709
    %v5711 = vrot.slane %v5690, %v5710
    %v5713 = vunpack.c.l.s4 1966171168
    %v5714 = vunpack.c.0.s8 %v5713
    %v5715 = vlaneseq
    %v5716 = vshrl.u32 %v5715, 7
    %v5717 = vsub.s32 %v5714, %v5716
    %v5718 = vrot.slane %v5680, %v5717
    %v5719 = vcombine.low %v5697, %v5704
    %v5720 = vcombine.low %v5711, %v5718
    %v5722 = vunpack.c.l.s4 1966171168
    %v5723 = vunpack.c.0.s8 %v5722
    %v5724 = vlaneseq
    %v5725 = vshrl.u32 %v5724, 7
    %v5726 = vsub.s32 %v5723, %v5725
    %v5727 = vrot.slane %v5719, %v5726
    %v5729 = vunpack.c.l.s4 1966171168
    %v5730 = vunpack.c.0.s8 %v5729
    %v5731 = vlaneseq
    %v5732 = vshrl.u32 %v5731, 7
    %v5733 = vsub.s32 %v5730, %v5732
    %v5734 = vrot.slane %v5720, %v5733
    %v5735 = vcombine.low %v5727, %v5734
    %v5737 = vmul.f32 %v2283, %v5735
    %v5738 = vsub.f32 %v5534, %v5632
    %v5739 = vsub.f32 %v5535, %v5633
    %v5740 = vsub.f32 %v5536, %v5634
    %v5741 = vsub.f32 %v5537, %v5635
    %v5742 = vsub.f32 %v5538, %v5636
    %v5743 = vsub.f32 %v5539, %v5637
    %v5744 = vsub.f32 %v5540, %v5638
    %v5746 = vlaneseq
    %v5747 = vshrl.u32 %v5746, 7
    %v5748 = vsub.s32 0, %v5747
    %v5749 = vrot.slane %v5737, %v5748
    %v5750 = vlaneseq
    %v5751 = vshrl.u32 %v5750, 7
    %v5752 = vsub.s32 1, %v5751
    %v5753 = vrot.slane %v5737, %v5752
    %v5754 = vlaneseq
    %v5755 = vshrl.u32 %v5754, 7
    %v5756 = vsub.s32 2, %v5755
    %v5757 = vrot.slane %v5737, %v5756
    %v5758 = vlaneseq
    %v5759 = vshrl.u32 %v5758, 7
    %v5760 = vsub.s32 3, %v5759
    %v5761 = vrot.slane %v5737, %v5760
    %v5762 = vlaneseq
    %v5763 = vshrl.u32 %v5762, 7
    %v5764 = vsub.s32 4, %v5763
    %v5765 = vrot.slane %v5737, %v5764
    %v5766 = vlaneseq
    %v5767 = vshrl.u32 %v5766, 7
    %v5768 = vsub.s32 5, %v5767
    %v5769 = vrot.slane %v5737, %v5768
    %v5770 = vlaneseq
    %v5771 = vshrl.u32 %v5770, 7
    %v5772 = vsub.s32 6, %v5771
    %v5773 = vrot.slane %v5737, %v5772
    %v5781 = vmul.f32 %v5738, %v5749
    %v5782 = vmul.f32 %v5739, %v5753
    %v5783 = vmul.f32 %v5740, %v5757
    %v5784 = vmul.f32 %v5741, %v5761
    %v5785 = vmul.f32 %v5742, %v5765
    %v5786 = vmul.f32 %v5743, %v5769
    %v5787 = vmul.f32 %v5744, %v5773
    %v5789 = vlaneseq
    %v5790 = vshrl.u32 %v5789, 7
    %v5791 = vsub.s32 0, %v5790
    %v5792 = vrot.slane %v2284, %v5791
    %v5793 = vlaneseq
    %v5794 = vshrl.u32 %v5793, 7
    %v5795 = vsub.s32 1, %v5794
    %v5796 = vrot.slane %v2284, %v5795
    %v5797 = vlaneseq
    %v5798 = vshrl.u32 %v5797, 7
    %v5799 = vsub.s32 2, %v5798
    %v5800 = vrot.slane %v2284, %v5799
    %v5801 = vlaneseq
    %v5802 = vshrl.u32 %v5801, 7
    %v5803 = vsub.s32 3, %v5802
    %v5804 = vrot.slane %v2284, %v5803
    %v5805 = vlaneseq
    %v5806 = vshrl.u32 %v5805, 7
    %v5807 = vsub.s32 4, %v5806
    %v5808 = vrot.slane %v2284, %v5807
    %v5809 = vlaneseq
    %v5810 = vshrl.u32 %v5809, 7
    %v5811 = vsub.s32 5, %v5810
    %v5812 = vrot.slane %v2284, %v5811
    %v5813 = vlaneseq
    %v5814 = vshrl.u32 %v5813, 7
    %v5815 = vsub.s32 6, %v5814
    %v5816 = vrot.slane %v2284, %v5815
    %v5824 = vadd.f32 %v5781, %v5792
    %v5825 = vadd.f32 %v5782, %v5796
    %v5826 = vadd.f32 %v5783, %v5800
    %v5827 = vadd.f32 %v5784, %v5804
    %v5828 = vadd.f32 %v5785, %v5808
    %v5829 = vadd.f32 %v5786, %v5812
    %v5830 = vadd.f32 %v5787, %v5816
    %5831 = vst [vmem:[#allocation9] sm:$0xff] %v5824
    %5832 = vst [vmem:[#allocation9 + $0x8] sm:$0xff] %v5825
    %5833 = vst [vmem:[#allocation9 + $0x10] sm:$0xff] %v5826
    %5834 = vst [vmem:[#allocation9 + $0x18] sm:$0xff] %v5827
    %5835 = vst [vmem:[#allocation9 + $0x20] sm:$0xff] %v5828
    %5836 = vst [vmem:[#allocation9 + $0x28] sm:$0xff] %v5829
    %5837 = vst [vmem:[#allocation9 + $0x30] sm:$0xff] %v5830
    // Predicated region
    $region26: #{forward.1} parent=1 // pred_check
      _
    $region27: #{forward.1} parent=1 // pred_check_branch
      %5839 = sbr.rel (0) target = $region29
    $region28: #{forward.1} parent=1 // pred_region
      %s5841 = ssub.s32 896, 896
      %5842 = vsyncadd [#allocation6], %s5841
      %s5844 = sshll.u32 [#allocation9], 4
      %s5845 = int_to_ptr.vmem [resolvable:$true] %s5844
      %5847 = dma.vmem_to_hbm [thread:$0]  %s5845, 896, %s4, [#allocation6]
    $region29: #{forward.1} parent=1 // pred_fallthru
      _
    // Predicated region
    $region30: #{forward.1} parent=1 // pred_check
      _
    $region31: #{forward.1} parent=1 // pred_check_branch
      %5849 = sbr.rel (0) target = $region33
    $region32: #{forward.1} parent=1 // pred_region
      %5850 = dma.done [#allocation6], 896
    $region33: #{forward.1} parent=1 // pred_fallthru
      _
    %5851 = vsyncpa [#allocation5], 1
    %5852 = vsyncpa [#allocation8], 1
    %5853 = vsyncpa [#allocation6], 1
  %5854 = vsyncmov [#allocation3]
  %s5855 = vpop.sfrf %5854
  %p5856 = scmp.eq.s32.totalorder %s5855, 0
  %p5857 = pneg %p5856
  %5859 = shalt.err (%p5857)

</llo_original>
